<compile_context>
chip_gen: v7x
topology: tpu7x:2x2x1
jax: 0.10.0
libtpu: 0.0.40
codegen_flags: <defaults>
</compile_context>

<pallas_src>
import math
import numpy as np
import jax
import jax.numpy as jnp
from jax.experimental import pallas as pl
from jax.experimental.pallas import tpu as pltpu

NUM_DIFFUSE = 3
NUM_SPECULAR = 6
NUM_SCENES = NUM_DIFFUSE + NUM_SPECULAR
C_SVBRDF = 12
EPS_RENDER = 1e-5
PI = math.pi
INV_PI = 1.0 / math.pi
LN2 = math.log(2.0)
LANES = 128
STRIP = 8          # sublane-sized row slab: every temporary is exactly one vreg


def _round_up(a, b):
    return -(-a // b) * b


# ---------------------------------------------------------------------------
# Shared per-pixel rendering math (pure jnp; used by the Pallas kernel on
# (8, 128) vreg slabs and by the plain-JAX reference on flat (P,) arrays).
# ---------------------------------------------------------------------------
def _normalize3(x, y, z):
    inv = jax.lax.rsqrt(x * x + y * y + z * z + 1e-12)
    return x * inv, y * inv, z * inv


def _geometry(px, py, cam, light):
    """Scene/position-only terms, shared between the input and target renders."""
    wix, wiy, wiz = _normalize3(light[0] - px, light[1] - py, light[2])
    wox, woy, woz = _normalize3(cam[0] - px, cam[1] - py, cam[2])
    hx, hy, hz = _normalize3(wix + wox, wiy + woy, wiz + woz)
    vdh = jnp.maximum(wox * hx + woy * hy + woz * hz, 1e-4)
    # Schlick Fresnel (spherical-gaussian approximation) power term.
    f_pow = jnp.exp(((-5.55473 * vdh - 6.98316) * vdh) * LN2)
    return (wix, wiy, wiz, wox, woy, woz, hx, hy, hz, f_pow)


def _prep_svbrdf(get):
    """Scene-invariant SVBRDF terms, computed once per pixel slab and reused for all
    9 scenes.  `get(c)` returns channel c of the SVBRDF."""
    nx, ny, nz = _normalize3(get(0), get(1), get(2))
    drp = jnp.clip(get(3), 0.0, 1.0) * INV_PI
    dgp = jnp.clip(get(4), 0.0, 1.0) * INV_PI
    dbp = jnp.clip(get(5), 0.0, 1.0) * INV_PI
    rough = jnp.clip(get(6), 0.05, 1.0)
    alpha = rough * rough
    a2 = alpha * alpha
    k = alpha * 0.5
    sr = jnp.clip(get(9), 0.0, 1.0)
    sg = jnp.clip(get(10), 0.0, 1.0)
    sb = jnp.clip(get(11), 0.0, 1.0)
    return (nx, ny, nz, drp, dgp, dbp, a2, k, sr, sg, sb)


def _render_prepped(prep, geom, lcol, recip):
    """Cook-Torrance point-light render from prepped SVBRDF + per-scene geometry."""
    (nx, ny, nz, drp, dgp, dbp, a2, k, sr, sg, sb) = prep
    (wix, wiy, wiz, wox, woy, woz, hx, hy, hz, f_pow) = geom

    ndl = jnp.maximum(nx * wix + ny * wiy + nz * wiz, 1e-4)
    ndv = jnp.maximum(nx * wox + ny * woy + nz * woz, 1e-4)
    ndh = jnp.maximum(nx * hx + ny * hy + nz * hz, 1e-4)

    # GGX D * Smith/Schlick G / (4 ndl ndv) folded into a single reciprocal:
    #   D = a2 / (pi * denom^2),  G = ndl*ndv / (gl*gv)
    #   => spec_common = a2 / (4*pi*denom^2*gl*gv)
    denom = ndh * ndh * (a2 - 1.0) + 1.0
    omk = 1.0 - k
    gl = ndl * omk + k
    gv = ndv * omk + k
    spec_common = a2 * recip(4.0 * PI * denom * denom * gl * gv)

    fr = sr + (1.0 - sr) * f_pow
    fg = sg + (1.0 - sg) * f_pow
    fb = sb + (1.0 - sb) * f_pow

    rr = (drp + fr * spec_common) * ndl * lcol[0]
    rg = (dgp + fg * spec_common) * ndl * lcol[1]
    rb = (dbp + fb * spec_common) * ndl * lcol[2]
    return (jnp.maximum(rr, 0.0), jnp.maximum(rg, 0.0), jnp.maximum(rb, 0.0))


def _pixel_coords(B, H, W):
    """Reference-side pixel coords, same formula as the in-kernel computation."""
    p = jnp.arange(B * H * W, dtype=jnp.int32)
    x_idx = (p % W).astype(jnp.float32)
    y_idx = ((p // W) % H).astype(jnp.float32)
    sx = 2.0 / (W - 1) if W > 1 else 0.0
    sy = 2.0 / (H - 1) if H > 1 else 0.0
    return jnp.stack([x_idx * sx - 1.0, y_idx * sy - 1.0], axis=0)


# ---------------------------------------------------------------------------
# Pallas kernel: grid = (num_tiles,).  Each grid step strip-mines its
# (tile_r, 128) pixel block into 8-row slabs; per slab the scene-invariant
# SVBRDF prep is done once, the 9-scene loop runs unrolled, and the accumulated
# |log diff| slab is stored exactly once.
# ---------------------------------------------------------------------------
def _make_kernel(use_log, tile_r, H, W):
    num_strips = tile_r // STRIP
    sx = 2.0 / (W - 1) if W > 1 else 0.0
    sy = 2.0 / (H - 1) if H > 1 else 0.0
    inv_w = 1.0 / W
    inv_h = 1.0 / H

    def kernel(scene_ref, x_ref, t_ref, out_ref):
        tile = pl.program_id(0)
        recip = lambda v: pl.reciprocal(v, approx=True)

        @pl.loop(0, num_strips)
        def _strip(i):
            row0 = i * STRIP
            sl = pl.ds(pl.multiple_of(row0, STRIP), STRIP)

            # ---- pixel coordinates of this (8,128) slab (scene-invariant) ----
            # flat pixel index = global_row*128 + lane; x = flat % W, y = flat//W % H,
            # remapped to [-1, 1].  div/mod done in f32 (exact for flat < 2^24; the
            # +0.5 guard keeps the floor on the right integer).
            row_i = jax.lax.broadcasted_iota(jnp.int32, (STRIP, LANES), 0)
            lane_i = jax.lax.broadcasted_iota(jnp.int32, (STRIP, LANES), 1)
            base = (tile * tile_r + row0) * LANES
            flat_f = (base + row_i * LANES + lane_i).astype(jnp.float32)
            qx = jnp.floor((flat_f + 0.5) * inv_w)          # flat // W
            x_idx = flat_f - qx * W                         # flat %  W
            qy = jnp.floor((qx + 0.5) * inv_h)              # (flat // W) // H
            y_idx = qx - qy * H                             # (flat // W) %  H
            px = x_idx * sx - 1.0
            py = y_idx * sy - 1.0

            # ---- scene-invariant SVBRDF prep (hoisted out of the 9-scene loop) ----
            xprep = _prep_svbrdf(lambda c: x_ref[c, sl, :])
            tprep = _prep_svbrdf(lambda c: t_ref[c, sl, :])

            # ---- 9-scene loop, unrolled inside the kernel ----
            d = None
            for s in range(NUM_SCENES):
                cam = (scene_ref[s * 9 + 0], scene_ref[s * 9 + 1], scene_ref[s * 9 + 2])
                light = (scene_ref[s * 9 + 3], scene_ref[s * 9 + 4], scene_ref[s * 9 + 5])
                lcol = (scene_ref[s * 9 + 6], scene_ref[s * 9 + 7], scene_ref[s * 9 + 8])

                geom = _geometry(px, py, cam, light)   # shared by input & target
                x_rgb = _render_prepped(xprep, geom, lcol, recip)
                t_rgb = _render_prepped(tprep, geom, lcol, recip)
                for xc, tc in zip(x_rgb, t_rgb):
                    if use_log:
                        term = jnp.abs(jnp.log(xc + EPS_RENDER) - jnp.log(tc + EPS_RENDER))
                    else:
                        term = jnp.abs(xc - tc)
                    d = term if d is None else d + term

            out_ref[sl, :] = d          # single store per slab

    return kernel


def rendering_loss_pallas(svbrdf_in, svbrdf_tgt, scenes, *, use_log=True, tile_rows=256):
    """svbrdf_in / svbrdf_tgt: NCHW [B, 12, H, W] f32.  scenes: (9, 9) f32."""
    B, C, H, W = svbrdf_in.shape
    assert C == C_SVBRDF
    P = B * H * W

    # Channel-major planes (12, P), pixels packed into lane-dense (rows, 128) slabs.
    # TODO(synk): when W % 128 == 0 the NCHW tensors could be read directly in-kernel
    # (BlockSpec (1, C, tile_h, W)) and this transpose avoided entirely.
    x = jnp.transpose(svbrdf_in.astype(jnp.float32), (1, 0, 2, 3)).reshape(C, P)
    t = jnp.transpose(svbrdf_tgt.astype(jnp.float32), (1, 0, 2, 3)).reshape(C, P)

    rows = -(-P // LANES)
    rows8 = _round_up(rows, 8)
    tile_r = max((min(tile_rows, rows8) // 8) * 8, 8)      # sublane-aligned tile
    if rows8 >= 16:
        # Keep >= 2 pixel tiles so the "parallel" axis can shard over both v7x cores.
        tile_r = min(tile_r, max(((rows8 // 2) // 8) * 8, 8))
    rows_padded = _round_up(rows, tile_r)
    num_tiles = rows_padded // tile_r

    P_pad = rows_padded * LANES
    if P_pad != P:
        pad = P_pad - P
        # Input and target padded identically -> padded pixels render identically, so
        # their diff terms are exactly 0; the lanes are additionally dropped before
        # the final sum below.
        x = jnp.pad(x, ((0, 0), (0, pad)))
        t = jnp.pad(t, ((0, 0), (0, pad)))

    x3 = x.reshape(C, rows_padded, LANES)
    t3 = t.reshape(C, rows_padded, LANES)
    scene_flat = scenes.astype(jnp.float32).reshape(-1)     # (81,) 1-D SMEM table

    partial = pl.pallas_call(
        _make_kernel(use_log, tile_r, H, W),
        out_shape=jax.ShapeDtypeStruct((rows_padded, LANES), jnp.float32),
        grid_spec=pltpu.PrefetchScalarGridSpec(
            num_scalar_prefetch=0,
            grid=(num_tiles,),
            in_specs=[
                pl.BlockSpec(memory_space=pltpu.MemorySpace.SMEM),       # scene table
                pl.BlockSpec((C, tile_r, LANES), lambda p: (0, p, 0)),   # input
                pl.BlockSpec((C, tile_r, LANES), lambda p: (0, p, 0)),   # target
            ],
            out_specs=pl.BlockSpec((tile_r, LANES), lambda p: (p, 0)),
        ),
        compiler_params=pltpu.CompilerParams(
            dimension_semantics=("parallel",)),
    )(scene_flat, x3, t3)

    total_elems = NUM_SCENES * 3 * P
    # Drop padded pixels exactly and reduce to the scalar loss outside the kernel.
    return jnp.sum(partial.reshape(-1)[:P]) / jnp.float32(total_elems)


# ---------------------------------------------------------------------------
# Deterministic scene generation (3 diffuse + 6 specular configurations).
# ---------------------------------------------------------------------------
def generate_scenes(key):
    keys = jax.random.split(key, 4)

    def hemi_dirs(k, n):
        u = jax.random.uniform(k, (n, 2))
        r = jnp.sqrt(u[:, 0])
        phi = 2.0 * math.pi * u[:, 1]
        x = r * jnp.cos(phi)
        y = r * jnp.sin(phi)
        z = jnp.sqrt(jnp.maximum(1.0 - r * r, 1e-3))
        return jnp.stack([x, y, z], axis=-1)

    # diffuse scenes: distant random view & light directions
    cam_d = hemi_dirs(keys[0], NUM_DIFFUSE) * 3.0
    light_d = hemi_dirs(keys[1], NUM_DIFFUSE) * 3.0
    col_d = jnp.full((NUM_DIFFUSE, 3), math.pi * 3.0)

    # specular scenes: camera & light mirrored around a random surface point
    surf = jax.random.uniform(keys[2], (NUM_SPECULAR, 2), minval=-1.0, maxval=1.0)
    dirs = hemi_dirs(keys[3], NUM_SPECULAR)
    dist = 2.0
    cam_s = jnp.concatenate([surf + dirs[:, :2] * dist, dirs[:, 2:3] * dist], axis=-1)
    light_s = jnp.concatenate([surf - dirs[:, :2] * dist, dirs[:, 2:3] * dist], axis=-1)
    col_s = jnp.full((NUM_SPECULAR, 3), math.pi * 6.0)

    cams = jnp.concatenate([cam_d, cam_s], axis=0)
    lights = jnp.concatenate([light_d, light_s], axis=0)
    cols = jnp.concatenate([col_d, col_s], axis=0)
    return jnp.concatenate([cams, lights, cols], axis=-1).astype(jnp.float32)  # (9, 9)


# ---------------------------------------------------------------------------
# Pure-JAX reference (same math, exact reciprocals, no Pallas).
# ---------------------------------------------------------------------------
def rendering_loss_ref(svbrdf_in, svbrdf_tgt, scenes, use_log=True):
    B, C, H, W = svbrdf_in.shape
    P = B * H * W
    x = jnp.transpose(svbrdf_in.astype(jnp.float32), (1, 0, 2, 3)).reshape(C, P)
    t = jnp.transpose(svbrdf_tgt.astype(jnp.float32), (1, 0, 2, 3)).reshape(C, P)
    pos = _pixel_coords(B, H, W)
    px, py = pos[0], pos[1]
    recip = lambda v: 1.0 / v

    xprep = _prep_svbrdf(lambda c: x[c])
    tprep = _prep_svbrdf(lambda c: t[c])

    sc = np.asarray(scenes)
    diffs = []
    for i in range(NUM_SCENES):
        cam = tuple(float(v) for v in sc[i, 0:3])
        light = tuple(float(v) for v in sc[i, 3:6])
        col = tuple(float(v) for v in sc[i, 6:9])
        geom = _geometry(px, py, cam, light)
        xr = _render_prepped(xprep, geom, col, recip)
        tr = _render_prepped(tprep, geom, col, recip)
        for xc, tc in zip(xr, tr):
            if use_log:
                diffs.append(jnp.abs(jnp.log(xc + EPS_RENDER) - jnp.log(tc + EPS_RENDER)))
            else:
                diffs.append(jnp.abs(xc - tc))
    return jnp.mean(jnp.stack(diffs))


if __name__ == "__main__":
    key = jax.random.PRNGKey(0)
    k_in, k_tgt, k_scene = jax.random.split(key, 3)

    B, H, W = 2, 16, 16

    def make_svbrdf(k):
        kn, kd, kr, ks = jax.random.split(k, 4)
        normals = jnp.concatenate(
            [jax.random.uniform(kn, (B, 2, H, W), minval=-1.0, maxval=1.0),
             jax.random.uniform(kn, (B, 1, H, W), minval=0.5, maxval=1.0)], axis=1)
        diffuse = jax.random.uniform(kd, (B, 3, H, W))
        rough1 = jax.random.uniform(kr, (B, 1, H, W), minval=0.1, maxval=1.0)
        rough = jnp.tile(rough1, (1, 3, 1, 1))
        spec = jax.random.uniform(ks, (B, 3, H, W), minval=0.0, maxval=0.5)
        return jnp.concatenate([normals, diffuse, rough, spec], axis=1).astype(jnp.float32)

    svbrdf_in = make_svbrdf(k_in)      # [2, 12, 16, 16]
    svbrdf_tgt = make_svbrdf(k_tgt)    # [2, 12, 16, 16]
    scenes = generate_scenes(k_scene)  # [9, 9]

    loss = rendering_loss_pallas(svbrdf_in, svbrdf_tgt, scenes, use_log=True)
    loss = jax.block_until_ready(loss)

    loss_ref = jax.block_until_ready(
        rendering_loss_ref(svbrdf_in, svbrdf_tgt, scenes, use_log=True))

    # Approx (EUP vrcp) reciprocal is only inside the specular common factor now;
    # the loss-term logs are exact, so the match is tight.
    np.testing.assert_allclose(np.asarray(loss), np.asarray(loss_ref),
                               rtol=2e-3, atol=1e-3)
    print("KERNEL_OK")
</pallas_src>

<mosaic_0001>
module attributes {stable_mosaic.version = 11 : i64} {
  func.func @kernel(%arg0: i32, %arg1: memref<81xf32, #tpu.memory_space<smem>>, %arg2: memref<12x8x128xf32, #tpu.memory_space<vmem>>, %arg3: memref<12x8x128xf32, #tpu.memory_space<vmem>>, %arg4: memref<8x128xf32, #tpu.memory_space<vmem>>) attributes {dimension_semantics = [#tpu.dimension_semantics<parallel>], iteration_bounds = array<i64: 1>, scalar_prefetch = 0 : i64, scratch_operands = 0 : i64, tpu.core_type = #tpu.core_type<tc>, window_params = [{transform_indices = @transform_0, window_bounds = array<i64: 81>}, {transform_indices = @transform_1, window_bounds = array<i64: 12, 8, 128>}, {transform_indices = @transform_2, window_bounds = array<i64: 12, 8, 128>}, {transform_indices = @transform_3, window_bounds = array<i64: 8, 128>}]} {
    %c0_i32 = arith.constant 0 : i32
    %c1_i32 = arith.constant 1 : i32
    %0 = arith.muli %c0_i32, %c1_i32 : i32
    %c0_i32_0 = arith.constant 0 : i32
    %1 = arith.addi %c0_i32_0, %0 : i32
    %c8_i32 = arith.constant 8 : i32
    %2 = arith.muli %1, %c8_i32 : i32
    %3 = tpu.assume_multiple %2, 8 : i32
    %4 = tpu.iota {dimensions = array<i32: 0>} : vector<8x128xi32>
    %5 = tpu.iota {dimensions = array<i32: 1>} : vector<8x128xi32>
    %c8_i32_1 = arith.constant 8 : i32
    %6 = arith.muli %arg0, %c8_i32_1 : i32
    %7 = arith.addi %6, %2 : i32
    %c128_i32 = arith.constant 128 : i32
    %8 = arith.muli %7, %c128_i32 : i32
    %c128_i32_2 = arith.constant 128 : i32
    %9 = vector.broadcast %c128_i32_2 : i32 to vector<8x128xi32>
    %10 = arith.muli %4, %9 : vector<8x128xi32>
    %11 = vector.broadcast %8 : i32 to vector<8x128xi32>
    %12 = arith.addi %11, %10 : vector<8x128xi32>
    %13 = arith.addi %12, %5 : vector<8x128xi32>
    %14 = arith.sitofp %13 : vector<8x128xi32> to vector<8x128xf32>
    %cst = arith.constant 5.000000e-01 : f32
    %15 = vector.broadcast %cst : f32 to vector<8x128xf32>
    %16 = arith.addf %14, %15 : vector<8x128xf32>
    %cst_3 = arith.constant 6.250000e-02 : f32
    %17 = vector.broadcast %cst_3 : f32 to vector<8x128xf32>
    %18 = arith.mulf %16, %17 : vector<8x128xf32>
    %19 = math.floor %18 : vector<8x128xf32>
    %cst_4 = arith.constant 1.600000e+01 : f32
    %20 = vector.broadcast %cst_4 : f32 to vector<8x128xf32>
    %21 = arith.mulf %19, %20 : vector<8x128xf32>
    %22 = arith.subf %14, %21 : vector<8x128xf32>
    %cst_5 = arith.constant 5.000000e-01 : f32
    %23 = vector.broadcast %cst_5 : f32 to vector<8x128xf32>
    %24 = arith.addf %19, %23 : vector<8x128xf32>
    %cst_6 = arith.constant 6.250000e-02 : f32
    %25 = vector.broadcast %cst_6 : f32 to vector<8x128xf32>
    %26 = arith.mulf %24, %25 : vector<8x128xf32>
    %27 = math.floor %26 : vector<8x128xf32>
    %cst_7 = arith.constant 1.600000e+01 : f32
    %28 = vector.broadcast %cst_7 : f32 to vector<8x128xf32>
    %29 = arith.mulf %27, %28 : vector<8x128xf32>
    %30 = arith.subf %19, %29 : vector<8x128xf32>
    %cst_8 = arith.constant 0.13333334 : f32
    %31 = vector.broadcast %cst_8 : f32 to vector<8x128xf32>
    %32 = arith.mulf %22, %31 : vector<8x128xf32>
    %cst_9 = arith.constant 1.000000e+00 : f32
    %33 = vector.broadcast %cst_9 : f32 to vector<8x128xf32>
    %34 = arith.subf %32, %33 : vector<8x128xf32>
    %cst_10 = arith.constant 0.13333334 : f32
    %35 = vector.broadcast %cst_10 : f32 to vector<8x128xf32>
    %36 = arith.mulf %30, %35 : vector<8x128xf32>
    %cst_11 = arith.constant 1.000000e+00 : f32
    %37 = vector.broadcast %cst_11 : f32 to vector<8x128xf32>
    %38 = arith.subf %36, %37 : vector<8x128xf32>
    %c0 = arith.constant 0 : index
    %39 = arith.index_cast %3 : i32 to index
    %c0_12 = arith.constant 0 : index
    %40 = vector.load %arg2[%c0, %39, %c0_12] : memref<12x8x128xf32, #tpu.memory_space<vmem>>, vector<1x8x128xf32>
    %41 = vector.shape_cast %40 : vector<1x8x128xf32> to vector<8x128xf32>
    %c1 = arith.constant 1 : index
    %42 = arith.index_cast %3 : i32 to index
    %c0_13 = arith.constant 0 : index
    %43 = vector.load %arg2[%c1, %42, %c0_13] : memref<12x8x128xf32, #tpu.memory_space<vmem>>, vector<1x8x128xf32>
    %44 = vector.shape_cast %43 : vector<1x8x128xf32> to vector<8x128xf32>
    %c2 = arith.constant 2 : index
    %45 = arith.index_cast %3 : i32 to index
    %c0_14 = arith.constant 0 : index
    %46 = vector.load %arg2[%c2, %45, %c0_14] : memref<12x8x128xf32, #tpu.memory_space<vmem>>, vector<1x8x128xf32>
    %47 = vector.shape_cast %46 : vector<1x8x128xf32> to vector<8x128xf32>
    %48 = arith.mulf %41, %41 : vector<8x128xf32>
    %49 = arith.mulf %44, %44 : vector<8x128xf32>
    %50 = arith.addf %48, %49 : vector<8x128xf32>
    %51 = arith.mulf %47, %47 : vector<8x128xf32>
    %52 = arith.addf %50, %51 : vector<8x128xf32>
    %cst_15 = arith.constant 9.99999996E-13 : f32
    %53 = vector.broadcast %cst_15 : f32 to vector<8x128xf32>
    %54 = arith.addf %52, %53 : vector<8x128xf32>
    %55 = math.rsqrt %54 : vector<8x128xf32>
    %56 = arith.mulf %41, %55 : vector<8x128xf32>
    %57 = arith.mulf %44, %55 : vector<8x128xf32>
    %58 = arith.mulf %47, %55 : vector<8x128xf32>
    %c3 = arith.constant 3 : index
    %59 = arith.index_cast %3 : i32 to index
    %c0_16 = arith.constant 0 : index
    %60 = vector.load %arg2[%c3, %59, %c0_16] : memref<12x8x128xf32, #tpu.memory_space<vmem>>, vector<1x8x128xf32>
    %61 = vector.shape_cast %60 : vector<1x8x128xf32> to vector<8x128xf32>
    %cst_17 = arith.constant 0.000000e+00 : f32
    %cst_18 = arith.constant 1.000000e+00 : f32
    %62 = vector.broadcast %cst_17 : f32 to vector<8x128xf32>
    %63 = arith.maximumf %62, %61 : vector<8x128xf32>
    %64 = vector.broadcast %cst_18 : f32 to vector<8x128xf32>
    %65 = arith.minimumf %64, %63 : vector<8x128xf32>
    %cst_19 = arith.constant 0.318309873 : f32
    %66 = vector.broadcast %cst_19 : f32 to vector<8x128xf32>
    %67 = arith.mulf %65, %66 : vector<8x128xf32>
    %c4 = arith.constant 4 : index
    %68 = arith.index_cast %3 : i32 to index
    %c0_20 = arith.constant 0 : index
    %69 = vector.load %arg2[%c4, %68, %c0_20] : memref<12x8x128xf32, #tpu.memory_space<vmem>>, vector<1x8x128xf32>
    %70 = vector.shape_cast %69 : vector<1x8x128xf32> to vector<8x128xf32>
    %cst_21 = arith.constant 0.000000e+00 : f32
    %cst_22 = arith.constant 1.000000e+00 : f32
    %71 = vector.broadcast %cst_21 : f32 to vector<8x128xf32>
    %72 = arith.maximumf %71, %70 : vector<8x128xf32>
    %73 = vector.broadcast %cst_22 : f32 to vector<8x128xf32>
    %74 = arith.minimumf %73, %72 : vector<8x128xf32>
    %cst_23 = arith.constant 0.318309873 : f32
    %75 = vector.broadcast %cst_23 : f32 to vector<8x128xf32>
    %76 = arith.mulf %74, %75 : vector<8x128xf32>
    %c5 = arith.constant 5 : index
    %77 = arith.index_cast %3 : i32 to index
    %c0_24 = arith.constant 0 : index
    %78 = vector.load %arg2[%c5, %77, %c0_24] : memref<12x8x128xf32, #tpu.memory_space<vmem>>, vector<1x8x128xf32>
    %79 = vector.shape_cast %78 : vector<1x8x128xf32> to vector<8x128xf32>
    %cst_25 = arith.constant 0.000000e+00 : f32
    %cst_26 = arith.constant 1.000000e+00 : f32
    %80 = vector.broadcast %cst_25 : f32 to vector<8x128xf32>
    %81 = arith.maximumf %80, %79 : vector<8x128xf32>
    %82 = vector.broadcast %cst_26 : f32 to vector<8x128xf32>
    %83 = arith.minimumf %82, %81 : vector<8x128xf32>
    %cst_27 = arith.constant 0.318309873 : f32
    %84 = vector.broadcast %cst_27 : f32 to vector<8x128xf32>
    %85 = arith.mulf %83, %84 : vector<8x128xf32>
    %c6 = arith.constant 6 : index
    %86 = arith.index_cast %3 : i32 to index
    %c0_28 = arith.constant 0 : index
    %87 = vector.load %arg2[%c6, %86, %c0_28] : memref<12x8x128xf32, #tpu.memory_space<vmem>>, vector<1x8x128xf32>
    %88 = vector.shape_cast %87 : vector<1x8x128xf32> to vector<8x128xf32>
    %cst_29 = arith.constant 5.000000e-02 : f32
    %cst_30 = arith.constant 1.000000e+00 : f32
    %89 = vector.broadcast %cst_29 : f32 to vector<8x128xf32>
    %90 = arith.maximumf %89, %88 : vector<8x128xf32>
    %91 = vector.broadcast %cst_30 : f32 to vector<8x128xf32>
    %92 = arith.minimumf %91, %90 : vector<8x128xf32>
    %93 = arith.mulf %92, %92 : vector<8x128xf32>
    %94 = arith.mulf %93, %93 : vector<8x128xf32>
    %cst_31 = arith.constant 5.000000e-01 : f32
    %95 = vector.broadcast %cst_31 : f32 to vector<8x128xf32>
    %96 = arith.mulf %93, %95 : vector<8x128xf32>
    %c9 = arith.constant 9 : index
    %97 = arith.index_cast %3 : i32 to index
    %c0_32 = arith.constant 0 : index
    %98 = vector.load %arg2[%c9, %97, %c0_32] : memref<12x8x128xf32, #tpu.memory_space<vmem>>, vector<1x8x128xf32>
    %99 = vector.shape_cast %98 : vector<1x8x128xf32> to vector<8x128xf32>
    %cst_33 = arith.constant 0.000000e+00 : f32
    %cst_34 = arith.constant 1.000000e+00 : f32
    %100 = vector.broadcast %cst_33 : f32 to vector<8x128xf32>
    %101 = arith.maximumf %100, %99 : vector<8x128xf32>
    %102 = vector.broadcast %cst_34 : f32 to vector<8x128xf32>
    %103 = arith.minimumf %102, %101 : vector<8x128xf32>
    %c10 = arith.constant 10 : index
    %104 = arith.index_cast %3 : i32 to index
    %c0_35 = arith.constant 0 : index
    %105 = vector.load %arg2[%c10, %104, %c0_35] : memref<12x8x128xf32, #tpu.memory_space<vmem>>, vector<1x8x128xf32>
    %106 = vector.shape_cast %105 : vector<1x8x128xf32> to vector<8x128xf32>
    %cst_36 = arith.constant 0.000000e+00 : f32
    %cst_37 = arith.constant 1.000000e+00 : f32
    %107 = vector.broadcast %cst_36 : f32 to vector<8x128xf32>
    %108 = arith.maximumf %107, %106 : vector<8x128xf32>
    %109 = vector.broadcast %cst_37 : f32 to vector<8x128xf32>
    %110 = arith.minimumf %109, %108 : vector<8x128xf32>
    %c11 = arith.constant 11 : index
    %111 = arith.index_cast %3 : i32 to index
    %c0_38 = arith.constant 0 : index
    %112 = vector.load %arg2[%c11, %111, %c0_38] : memref<12x8x128xf32, #tpu.memory_space<vmem>>, vector<1x8x128xf32>
    %113 = vector.shape_cast %112 : vector<1x8x128xf32> to vector<8x128xf32>
    %cst_39 = arith.constant 0.000000e+00 : f32
    %cst_40 = arith.constant 1.000000e+00 : f32
    %114 = vector.broadcast %cst_39 : f32 to vector<8x128xf32>
    %115 = arith.maximumf %114, %113 : vector<8x128xf32>
    %116 = vector.broadcast %cst_40 : f32 to vector<8x128xf32>
    %117 = arith.minimumf %116, %115 : vector<8x128xf32>
    %c0_41 = arith.constant 0 : index
    %118 = arith.index_cast %3 : i32 to index
    %c0_42 = arith.constant 0 : index
    %119 = vector.load %arg3[%c0_41, %118, %c0_42] : memref<12x8x128xf32, #tpu.memory_space<vmem>>, vector<1x8x128xf32>
    %120 = vector.shape_cast %119 : vector<1x8x128xf32> to vector<8x128xf32>
    %c1_43 = arith.constant 1 : index
    %121 = arith.index_cast %3 : i32 to index
    %c0_44 = arith.constant 0 : index
    %122 = vector.load %arg3[%c1_43, %121, %c0_44] : memref<12x8x128xf32, #tpu.memory_space<vmem>>, vector<1x8x128xf32>
    %123 = vector.shape_cast %122 : vector<1x8x128xf32> to vector<8x128xf32>
    %c2_45 = arith.constant 2 : index
    %124 = arith.index_cast %3 : i32 to index
    %c0_46 = arith.constant 0 : index
    %125 = vector.load %arg3[%c2_45, %124, %c0_46] : memref<12x8x128xf32, #tpu.memory_space<vmem>>, vector<1x8x128xf32>
    %126 = vector.shape_cast %125 : vector<1x8x128xf32> to vector<8x128xf32>
    %127 = arith.mulf %120, %120 : vector<8x128xf32>
    %128 = arith.mulf %123, %123 : vector<8x128xf32>
    %129 = arith.addf %127, %128 : vector<8x128xf32>
    %130 = arith.mulf %126, %126 : vector<8x128xf32>
    %131 = arith.addf %129, %130 : vector<8x128xf32>
    %cst_47 = arith.constant 9.99999996E-13 : f32
    %132 = vector.broadcast %cst_47 : f32 to vector<8x128xf32>
    %133 = arith.addf %131, %132 : vector<8x128xf32>
    %134 = math.rsqrt %133 : vector<8x128xf32>
    %135 = arith.mulf %120, %134 : vector<8x128xf32>
    %136 = arith.mulf %123, %134 : vector<8x128xf32>
    %137 = arith.mulf %126, %134 : vector<8x128xf32>
    %c3_48 = arith.constant 3 : index
    %138 = arith.index_cast %3 : i32 to index
    %c0_49 = arith.constant 0 : index
    %139 = vector.load %arg3[%c3_48, %138, %c0_49] : memref<12x8x128xf32, #tpu.memory_space<vmem>>, vector<1x8x128xf32>
    %140 = vector.shape_cast %139 : vector<1x8x128xf32> to vector<8x128xf32>
    %cst_50 = arith.constant 0.000000e+00 : f32
    %cst_51 = arith.constant 1.000000e+00 : f32
    %141 = vector.broadcast %cst_50 : f32 to vector<8x128xf32>
    %142 = arith.maximumf %141, %140 : vector<8x128xf32>
    %143 = vector.broadcast %cst_51 : f32 to vector<8x128xf32>
    %144 = arith.minimumf %143, %142 : vector<8x128xf32>
    %cst_52 = arith.constant 0.318309873 : f32
    %145 = vector.broadcast %cst_52 : f32 to vector<8x128xf32>
    %146 = arith.mulf %144, %145 : vector<8x128xf32>
    %c4_53 = arith.constant 4 : index
    %147 = arith.index_cast %3 : i32 to index
    %c0_54 = arith.constant 0 : index
    %148 = vector.load %arg3[%c4_53, %147, %c0_54] : memref<12x8x128xf32, #tpu.memory_space<vmem>>, vector<1x8x128xf32>
    %149 = vector.shape_cast %148 : vector<1x8x128xf32> to vector<8x128xf32>
    %cst_55 = arith.constant 0.000000e+00 : f32
    %cst_56 = arith.constant 1.000000e+00 : f32
    %150 = vector.broadcast %cst_55 : f32 to vector<8x128xf32>
    %151 = arith.maximumf %150, %149 : vector<8x128xf32>
    %152 = vector.broadcast %cst_56 : f32 to vector<8x128xf32>
    %153 = arith.minimumf %152, %151 : vector<8x128xf32>
    %cst_57 = arith.constant 0.318309873 : f32
    %154 = vector.broadcast %cst_57 : f32 to vector<8x128xf32>
    %155 = arith.mulf %153, %154 : vector<8x128xf32>
    %c5_58 = arith.constant 5 : index
    %156 = arith.index_cast %3 : i32 to index
    %c0_59 = arith.constant 0 : index
    %157 = vector.load %arg3[%c5_58, %156, %c0_59] : memref<12x8x128xf32, #tpu.memory_space<vmem>>, vector<1x8x128xf32>
    %158 = vector.shape_cast %157 : vector<1x8x128xf32> to vector<8x128xf32>
    %cst_60 = arith.constant 0.000000e+00 : f32
    %cst_61 = arith.constant 1.000000e+00 : f32
    %159 = vector.broadcast %cst_60 : f32 to vector<8x128xf32>
    %160 = arith.maximumf %159, %158 : vector<8x128xf32>
    %161 = vector.broadcast %cst_61 : f32 to vector<8x128xf32>
    %162 = arith.minimumf %161, %160 : vector<8x128xf32>
    %cst_62 = arith.constant 0.318309873 : f32
    %163 = vector.broadcast %cst_62 : f32 to vector<8x128xf32>
    %164 = arith.mulf %162, %163 : vector<8x128xf32>
    %c6_63 = arith.constant 6 : index
    %165 = arith.index_cast %3 : i32 to index
    %c0_64 = arith.constant 0 : index
    %166 = vector.load %arg3[%c6_63, %165, %c0_64] : memref<12x8x128xf32, #tpu.memory_space<vmem>>, vector<1x8x128xf32>
    %167 = vector.shape_cast %166 : vector<1x8x128xf32> to vector<8x128xf32>
    %cst_65 = arith.constant 5.000000e-02 : f32
    %cst_66 = arith.constant 1.000000e+00 : f32
    %168 = vector.broadcast %cst_65 : f32 to vector<8x128xf32>
    %169 = arith.maximumf %168, %167 : vector<8x128xf32>
    %170 = vector.broadcast %cst_66 : f32 to vector<8x128xf32>
    %171 = arith.minimumf %170, %169 : vector<8x128xf32>
    %172 = arith.mulf %171, %171 : vector<8x128xf32>
    %173 = arith.mulf %172, %172 : vector<8x128xf32>
    %cst_67 = arith.constant 5.000000e-01 : f32
    %174 = vector.broadcast %cst_67 : f32 to vector<8x128xf32>
    %175 = arith.mulf %172, %174 : vector<8x128xf32>
    %c9_68 = arith.constant 9 : index
    %176 = arith.index_cast %3 : i32 to index
    %c0_69 = arith.constant 0 : index
    %177 = vector.load %arg3[%c9_68, %176, %c0_69] : memref<12x8x128xf32, #tpu.memory_space<vmem>>, vector<1x8x128xf32>
    %178 = vector.shape_cast %177 : vector<1x8x128xf32> to vector<8x128xf32>
    %cst_70 = arith.constant 0.000000e+00 : f32
    %cst_71 = arith.constant 1.000000e+00 : f32
    %179 = vector.broadcast %cst_70 : f32 to vector<8x128xf32>
    %180 = arith.maximumf %179, %178 : vector<8x128xf32>
    %181 = vector.broadcast %cst_71 : f32 to vector<8x128xf32>
    %182 = arith.minimumf %181, %180 : vector<8x128xf32>
    %c10_72 = arith.constant 10 : index
    %183 = arith.index_cast %3 : i32 to index
    %c0_73 = arith.constant 0 : index
    %184 = vector.load %arg3[%c10_72, %183, %c0_73] : memref<12x8x128xf32, #tpu.memory_space<vmem>>, vector<1x8x128xf32>
    %185 = vector.shape_cast %184 : vector<1x8x128xf32> to vector<8x128xf32>
    %cst_74 = arith.constant 0.000000e+00 : f32
    %cst_75 = arith.constant 1.000000e+00 : f32
    %186 = vector.broadcast %cst_74 : f32 to vector<8x128xf32>
    %187 = arith.maximumf %186, %185 : vector<8x128xf32>
    %188 = vector.broadcast %cst_75 : f32 to vector<8x128xf32>
    %189 = arith.minimumf %188, %187 : vector<8x128xf32>
    %c11_76 = arith.constant 11 : index
    %190 = arith.index_cast %3 : i32 to index
    %c0_77 = arith.constant 0 : index
    %191 = vector.load %arg3[%c11_76, %190, %c0_77] : memref<12x8x128xf32, #tpu.memory_space<vmem>>, vector<1x8x128xf32>
    %192 = vector.shape_cast %191 : vector<1x8x128xf32> to vector<8x128xf32>
    %cst_78 = arith.constant 0.000000e+00 : f32
    %cst_79 = arith.constant 1.000000e+00 : f32
    %193 = vector.broadcast %cst_78 : f32 to vector<8x128xf32>
    %194 = arith.maximumf %193, %192 : vector<8x128xf32>
    %195 = vector.broadcast %cst_79 : f32 to vector<8x128xf32>
    %196 = arith.minimumf %195, %194 : vector<8x128xf32>
    %c0_80 = arith.constant 0 : index
    %197 = memref.load %arg1[%c0_80] : memref<81xf32, #tpu.memory_space<smem>>
    %c1_81 = arith.constant 1 : index
    %198 = memref.load %arg1[%c1_81] : memref<81xf32, #tpu.memory_space<smem>>
    %c2_82 = arith.constant 2 : index
    %199 = memref.load %arg1[%c2_82] : memref<81xf32, #tpu.memory_space<smem>>
    %c3_83 = arith.constant 3 : index
    %200 = memref.load %arg1[%c3_83] : memref<81xf32, #tpu.memory_space<smem>>
    %c4_84 = arith.constant 4 : index
    %201 = memref.load %arg1[%c4_84] : memref<81xf32, #tpu.memory_space<smem>>
    %c5_85 = arith.constant 5 : index
    %202 = memref.load %arg1[%c5_85] : memref<81xf32, #tpu.memory_space<smem>>
    %c6_86 = arith.constant 6 : index
    %203 = memref.load %arg1[%c6_86] : memref<81xf32, #tpu.memory_space<smem>>
    %c7 = arith.constant 7 : index
    %204 = memref.load %arg1[%c7] : memref<81xf32, #tpu.memory_space<smem>>
    %c8 = arith.constant 8 : index
    %205 = memref.load %arg1[%c8] : memref<81xf32, #tpu.memory_space<smem>>
    %206 = vector.broadcast %200 : f32 to vector<8x128xf32>
    %207 = arith.subf %206, %34 : vector<8x128xf32>
    %208 = vector.broadcast %201 : f32 to vector<8x128xf32>
    %209 = arith.subf %208, %38 : vector<8x128xf32>
    %210 = arith.mulf %207, %207 : vector<8x128xf32>
    %211 = arith.mulf %209, %209 : vector<8x128xf32>
    %212 = arith.addf %210, %211 : vector<8x128xf32>
    %213 = arith.mulf %202, %202 : f32
    %214 = vector.broadcast %213 : f32 to vector<8x128xf32>
    %215 = arith.addf %212, %214 : vector<8x128xf32>
    %cst_87 = arith.constant 9.99999996E-13 : f32
    %216 = vector.broadcast %cst_87 : f32 to vector<8x128xf32>
    %217 = arith.addf %215, %216 : vector<8x128xf32>
    %218 = math.rsqrt %217 : vector<8x128xf32>
    %219 = arith.mulf %207, %218 : vector<8x128xf32>
    %220 = arith.mulf %209, %218 : vector<8x128xf32>
    %221 = vector.broadcast %202 : f32 to vector<8x128xf32>
    %222 = arith.mulf %221, %218 : vector<8x128xf32>
    %223 = vector.broadcast %197 : f32 to vector<8x128xf32>
    %224 = arith.subf %223, %34 : vector<8x128xf32>
    %225 = vector.broadcast %198 : f32 to vector<8x128xf32>
    %226 = arith.subf %225, %38 : vector<8x128xf32>
    %227 = arith.mulf %224, %224 : vector<8x128xf32>
    %228 = arith.mulf %226, %226 : vector<8x128xf32>
    %229 = arith.addf %227, %228 : vector<8x128xf32>
    %230 = arith.mulf %199, %199 : f32
    %231 = vector.broadcast %230 : f32 to vector<8x128xf32>
    %232 = arith.addf %229, %231 : vector<8x128xf32>
    %cst_88 = arith.constant 9.99999996E-13 : f32
    %233 = vector.broadcast %cst_88 : f32 to vector<8x128xf32>
    %234 = arith.addf %232, %233 : vector<8x128xf32>
    %235 = math.rsqrt %234 : vector<8x128xf32>
    %236 = arith.mulf %224, %235 : vector<8x128xf32>
    %237 = arith.mulf %226, %235 : vector<8x128xf32>
    %238 = vector.broadcast %199 : f32 to vector<8x128xf32>
    %239 = arith.mulf %238, %235 : vector<8x128xf32>
    %240 = arith.addf %219, %236 : vector<8x128xf32>
    %241 = arith.addf %220, %237 : vector<8x128xf32>
    %242 = arith.addf %222, %239 : vector<8x128xf32>
    %243 = arith.mulf %240, %240 : vector<8x128xf32>
    %244 = arith.mulf %241, %241 : vector<8x128xf32>
    %245 = arith.addf %243, %244 : vector<8x128xf32>
    %246 = arith.mulf %242, %242 : vector<8x128xf32>
    %247 = arith.addf %245, %246 : vector<8x128xf32>
    %cst_89 = arith.constant 9.99999996E-13 : f32
    %248 = vector.broadcast %cst_89 : f32 to vector<8x128xf32>
    %249 = arith.addf %247, %248 : vector<8x128xf32>
    %250 = math.rsqrt %249 : vector<8x128xf32>
    %251 = arith.mulf %240, %250 : vector<8x128xf32>
    %252 = arith.mulf %241, %250 : vector<8x128xf32>
    %253 = arith.mulf %242, %250 : vector<8x128xf32>
    %254 = arith.mulf %236, %251 : vector<8x128xf32>
    %255 = arith.mulf %237, %252 : vector<8x128xf32>
    %256 = arith.addf %254, %255 : vector<8x128xf32>
    %257 = arith.mulf %239, %253 : vector<8x128xf32>
    %258 = arith.addf %256, %257 : vector<8x128xf32>
    %cst_90 = arith.constant 9.99999974E-5 : f32
    %259 = vector.broadcast %cst_90 : f32 to vector<8x128xf32>
    %260 = arith.maximumf %258, %259 : vector<8x128xf32>
    %cst_91 = arith.constant -5.554730e+00 : f32
    %261 = vector.broadcast %cst_91 : f32 to vector<8x128xf32>
    %262 = arith.mulf %261, %260 : vector<8x128xf32>
    %cst_92 = arith.constant 6.983160e+00 : f32
    %263 = vector.broadcast %cst_92 : f32 to vector<8x128xf32>
    %264 = arith.subf %262, %263 : vector<8x128xf32>
    %265 = arith.mulf %264, %260 : vector<8x128xf32>
    %cst_93 = arith.constant 0.693147182 : f32
    %266 = vector.broadcast %cst_93 : f32 to vector<8x128xf32>
    %267 = arith.mulf %265, %266 : vector<8x128xf32>
    %268 = math.exp %267 : vector<8x128xf32>
    %269 = arith.mulf %56, %219 : vector<8x128xf32>
    %270 = arith.mulf %57, %220 : vector<8x128xf32>
    %271 = arith.addf %269, %270 : vector<8x128xf32>
    %272 = arith.mulf %58, %222 : vector<8x128xf32>
    %273 = arith.addf %271, %272 : vector<8x128xf32>
    %cst_94 = arith.constant 9.99999974E-5 : f32
    %274 = vector.broadcast %cst_94 : f32 to vector<8x128xf32>
    %275 = arith.maximumf %273, %274 : vector<8x128xf32>
    %276 = arith.mulf %56, %236 : vector<8x128xf32>
    %277 = arith.mulf %57, %237 : vector<8x128xf32>
    %278 = arith.addf %276, %277 : vector<8x128xf32>
    %279 = arith.mulf %58, %239 : vector<8x128xf32>
    %280 = arith.addf %278, %279 : vector<8x128xf32>
    %cst_95 = arith.constant 9.99999974E-5 : f32
    %281 = vector.broadcast %cst_95 : f32 to vector<8x128xf32>
    %282 = arith.maximumf %280, %281 : vector<8x128xf32>
    %283 = arith.mulf %56, %251 : vector<8x128xf32>
    %284 = arith.mulf %57, %252 : vector<8x128xf32>
    %285 = arith.addf %283, %284 : vector<8x128xf32>
    %286 = arith.mulf %58, %253 : vector<8x128xf32>
    %287 = arith.addf %285, %286 : vector<8x128xf32>
    %cst_96 = arith.constant 9.99999974E-5 : f32
    %288 = vector.broadcast %cst_96 : f32 to vector<8x128xf32>
    %289 = arith.maximumf %287, %288 : vector<8x128xf32>
    %290 = arith.mulf %289, %289 : vector<8x128xf32>
    %cst_97 = arith.constant 1.000000e+00 : f32
    %291 = vector.broadcast %cst_97 : f32 to vector<8x128xf32>
    %292 = arith.subf %94, %291 : vector<8x128xf32>
    %293 = arith.mulf %290, %292 : vector<8x128xf32>
    %cst_98 = arith.constant 1.000000e+00 : f32
    %294 = vector.broadcast %cst_98 : f32 to vector<8x128xf32>
    %295 = arith.addf %293, %294 : vector<8x128xf32>
    %cst_99 = arith.constant 1.000000e+00 : f32
    %296 = vector.broadcast %cst_99 : f32 to vector<8x128xf32>
    %297 = arith.subf %296, %96 : vector<8x128xf32>
    %298 = arith.mulf %275, %297 : vector<8x128xf32>
    %299 = arith.addf %298, %96 : vector<8x128xf32>
    %300 = arith.mulf %282, %297 : vector<8x128xf32>
    %301 = arith.addf %300, %96 : vector<8x128xf32>
    %cst_100 = arith.constant 12.566371 : f32
    %302 = vector.broadcast %cst_100 : f32 to vector<8x128xf32>
    %303 = arith.mulf %302, %295 : vector<8x128xf32>
    %304 = arith.mulf %303, %295 : vector<8x128xf32>
    %305 = arith.mulf %304, %299 : vector<8x128xf32>
    %306 = arith.mulf %305, %301 : vector<8x128xf32>
    %307 = tpu.reciprocal %306 {approx = true} : vector<8x128xf32> -> vector<8x128xf32>
    %308 = arith.mulf %94, %307 : vector<8x128xf32>
    %cst_101 = arith.constant 1.000000e+00 : f32
    %309 = vector.broadcast %cst_101 : f32 to vector<8x128xf32>
    %310 = arith.subf %309, %103 : vector<8x128xf32>
    %311 = arith.mulf %310, %268 : vector<8x128xf32>
    %312 = arith.addf %103, %311 : vector<8x128xf32>
    %cst_102 = arith.constant 1.000000e+00 : f32
    %313 = vector.broadcast %cst_102 : f32 to vector<8x128xf32>
    %314 = arith.subf %313, %110 : vector<8x128xf32>
    %315 = arith.mulf %314, %268 : vector<8x128xf32>
    %316 = arith.addf %110, %315 : vector<8x128xf32>
    %cst_103 = arith.constant 1.000000e+00 : f32
    %317 = vector.broadcast %cst_103 : f32 to vector<8x128xf32>
    %318 = arith.subf %317, %117 : vector<8x128xf32>
    %319 = arith.mulf %318, %268 : vector<8x128xf32>
    %320 = arith.addf %117, %319 : vector<8x128xf32>
    %321 = arith.mulf %312, %308 : vector<8x128xf32>
    %322 = arith.addf %67, %321 : vector<8x128xf32>
    %323 = arith.mulf %322, %275 : vector<8x128xf32>
    %324 = vector.broadcast %203 : f32 to vector<8x128xf32>
    %325 = arith.mulf %323, %324 : vector<8x128xf32>
    %326 = arith.mulf %316, %308 : vector<8x128xf32>
    %327 = arith.addf %76, %326 : vector<8x128xf32>
    %328 = arith.mulf %327, %275 : vector<8x128xf32>
    %329 = vector.broadcast %204 : f32 to vector<8x128xf32>
    %330 = arith.mulf %328, %329 : vector<8x128xf32>
    %331 = arith.mulf %320, %308 : vector<8x128xf32>
    %332 = arith.addf %85, %331 : vector<8x128xf32>
    %333 = arith.mulf %332, %275 : vector<8x128xf32>
    %334 = vector.broadcast %205 : f32 to vector<8x128xf32>
    %335 = arith.mulf %333, %334 : vector<8x128xf32>
    %cst_104 = arith.constant 0.000000e+00 : f32
    %336 = vector.broadcast %cst_104 : f32 to vector<8x128xf32>
    %337 = arith.maximumf %325, %336 : vector<8x128xf32>
    %cst_105 = arith.constant 0.000000e+00 : f32
    %338 = vector.broadcast %cst_105 : f32 to vector<8x128xf32>
    %339 = arith.maximumf %330, %338 : vector<8x128xf32>
    %cst_106 = arith.constant 0.000000e+00 : f32
    %340 = vector.broadcast %cst_106 : f32 to vector<8x128xf32>
    %341 = arith.maximumf %335, %340 : vector<8x128xf32>
    %342 = arith.mulf %135, %219 : vector<8x128xf32>
    %343 = arith.mulf %136, %220 : vector<8x128xf32>
    %344 = arith.addf %342, %343 : vector<8x128xf32>
    %345 = arith.mulf %137, %222 : vector<8x128xf32>
    %346 = arith.addf %344, %345 : vector<8x128xf32>
    %cst_107 = arith.constant 9.99999974E-5 : f32
    %347 = vector.broadcast %cst_107 : f32 to vector<8x128xf32>
    %348 = arith.maximumf %346, %347 : vector<8x128xf32>
    %349 = arith.mulf %135, %236 : vector<8x128xf32>
    %350 = arith.mulf %136, %237 : vector<8x128xf32>
    %351 = arith.addf %349, %350 : vector<8x128xf32>
    %352 = arith.mulf %137, %239 : vector<8x128xf32>
    %353 = arith.addf %351, %352 : vector<8x128xf32>
    %cst_108 = arith.constant 9.99999974E-5 : f32
    %354 = vector.broadcast %cst_108 : f32 to vector<8x128xf32>
    %355 = arith.maximumf %353, %354 : vector<8x128xf32>
    %356 = arith.mulf %135, %251 : vector<8x128xf32>
    %357 = arith.mulf %136, %252 : vector<8x128xf32>
    %358 = arith.addf %356, %357 : vector<8x128xf32>
    %359 = arith.mulf %137, %253 : vector<8x128xf32>
    %360 = arith.addf %358, %359 : vector<8x128xf32>
    %cst_109 = arith.constant 9.99999974E-5 : f32
    %361 = vector.broadcast %cst_109 : f32 to vector<8x128xf32>
    %362 = arith.maximumf %360, %361 : vector<8x128xf32>
    %363 = arith.mulf %362, %362 : vector<8x128xf32>
    %cst_110 = arith.constant 1.000000e+00 : f32
    %364 = vector.broadcast %cst_110 : f32 to vector<8x128xf32>
    %365 = arith.subf %173, %364 : vector<8x128xf32>
    %366 = arith.mulf %363, %365 : vector<8x128xf32>
    %cst_111 = arith.constant 1.000000e+00 : f32
    %367 = vector.broadcast %cst_111 : f32 to vector<8x128xf32>
    %368 = arith.addf %366, %367 : vector<8x128xf32>
    %cst_112 = arith.constant 1.000000e+00 : f32
    %369 = vector.broadcast %cst_112 : f32 to vector<8x128xf32>
    %370 = arith.subf %369, %175 : vector<8x128xf32>
    %371 = arith.mulf %348, %370 : vector<8x128xf32>
    %372 = arith.addf %371, %175 : vector<8x128xf32>
    %373 = arith.mulf %355, %370 : vector<8x128xf32>
    %374 = arith.addf %373, %175 : vector<8x128xf32>
    %cst_113 = arith.constant 12.566371 : f32
    %375 = vector.broadcast %cst_113 : f32 to vector<8x128xf32>
    %376 = arith.mulf %375, %368 : vector<8x128xf32>
    %377 = arith.mulf %376, %368 : vector<8x128xf32>
    %378 = arith.mulf %377, %372 : vector<8x128xf32>
    %379 = arith.mulf %378, %374 : vector<8x128xf32>
    %380 = tpu.reciprocal %379 {approx = true} : vector<8x128xf32> -> vector<8x128xf32>
    %381 = arith.mulf %173, %380 : vector<8x128xf32>
    %cst_114 = arith.constant 1.000000e+00 : f32
    %382 = vector.broadcast %cst_114 : f32 to vector<8x128xf32>
    %383 = arith.subf %382, %182 : vector<8x128xf32>
    %384 = arith.mulf %383, %268 : vector<8x128xf32>
    %385 = arith.addf %182, %384 : vector<8x128xf32>
    %cst_115 = arith.constant 1.000000e+00 : f32
    %386 = vector.broadcast %cst_115 : f32 to vector<8x128xf32>
    %387 = arith.subf %386, %189 : vector<8x128xf32>
    %388 = arith.mulf %387, %268 : vector<8x128xf32>
    %389 = arith.addf %189, %388 : vector<8x128xf32>
    %cst_116 = arith.constant 1.000000e+00 : f32
    %390 = vector.broadcast %cst_116 : f32 to vector<8x128xf32>
    %391 = arith.subf %390, %196 : vector<8x128xf32>
    %392 = arith.mulf %391, %268 : vector<8x128xf32>
    %393 = arith.addf %196, %392 : vector<8x128xf32>
    %394 = arith.mulf %385, %381 : vector<8x128xf32>
    %395 = arith.addf %146, %394 : vector<8x128xf32>
    %396 = arith.mulf %395, %348 : vector<8x128xf32>
    %397 = vector.broadcast %203 : f32 to vector<8x128xf32>
    %398 = arith.mulf %396, %397 : vector<8x128xf32>
    %399 = arith.mulf %389, %381 : vector<8x128xf32>
    %400 = arith.addf %155, %399 : vector<8x128xf32>
    %401 = arith.mulf %400, %348 : vector<8x128xf32>
    %402 = vector.broadcast %204 : f32 to vector<8x128xf32>
    %403 = arith.mulf %401, %402 : vector<8x128xf32>
    %404 = arith.mulf %393, %381 : vector<8x128xf32>
    %405 = arith.addf %164, %404 : vector<8x128xf32>
    %406 = arith.mulf %405, %348 : vector<8x128xf32>
    %407 = vector.broadcast %205 : f32 to vector<8x128xf32>
    %408 = arith.mulf %406, %407 : vector<8x128xf32>
    %cst_117 = arith.constant 0.000000e+00 : f32
    %409 = vector.broadcast %cst_117 : f32 to vector<8x128xf32>
    %410 = arith.maximumf %398, %409 : vector<8x128xf32>
    %cst_118 = arith.constant 0.000000e+00 : f32
    %411 = vector.broadcast %cst_118 : f32 to vector<8x128xf32>
    %412 = arith.maximumf %403, %411 : vector<8x128xf32>
    %cst_119 = arith.constant 0.000000e+00 : f32
    %413 = vector.broadcast %cst_119 : f32 to vector<8x128xf32>
    %414 = arith.maximumf %408, %413 : vector<8x128xf32>
    %cst_120 = arith.constant 9.99999974E-6 : f32
    %415 = vector.broadcast %cst_120 : f32 to vector<8x128xf32>
    %416 = arith.addf %337, %415 : vector<8x128xf32>
    %417 = math.log %416 : vector<8x128xf32>
    %cst_121 = arith.constant 9.99999974E-6 : f32
    %418 = vector.broadcast %cst_121 : f32 to vector<8x128xf32>
    %419 = arith.addf %410, %418 : vector<8x128xf32>
    %420 = math.log %419 : vector<8x128xf32>
    %421 = arith.subf %417, %420 : vector<8x128xf32>
    %422 = math.absf %421 : vector<8x128xf32>
    %cst_122 = arith.constant 9.99999974E-6 : f32
    %423 = vector.broadcast %cst_122 : f32 to vector<8x128xf32>
    %424 = arith.addf %339, %423 : vector<8x128xf32>
    %425 = math.log %424 : vector<8x128xf32>
    %cst_123 = arith.constant 9.99999974E-6 : f32
    %426 = vector.broadcast %cst_123 : f32 to vector<8x128xf32>
    %427 = arith.addf %412, %426 : vector<8x128xf32>
    %428 = math.log %427 : vector<8x128xf32>
    %429 = arith.subf %425, %428 : vector<8x128xf32>
    %430 = math.absf %429 : vector<8x128xf32>
    %431 = arith.addf %422, %430 : vector<8x128xf32>
    %cst_124 = arith.constant 9.99999974E-6 : f32
    %432 = vector.broadcast %cst_124 : f32 to vector<8x128xf32>
    %433 = arith.addf %341, %432 : vector<8x128xf32>
    %434 = math.log %433 : vector<8x128xf32>
    %cst_125 = arith.constant 9.99999974E-6 : f32
    %435 = vector.broadcast %cst_125 : f32 to vector<8x128xf32>
    %436 = arith.addf %414, %435 : vector<8x128xf32>
    %437 = math.log %436 : vector<8x128xf32>
    %438 = arith.subf %434, %437 : vector<8x128xf32>
    %439 = math.absf %438 : vector<8x128xf32>
    %440 = arith.addf %431, %439 : vector<8x128xf32>
    %c9_126 = arith.constant 9 : index
    %441 = memref.load %arg1[%c9_126] : memref<81xf32, #tpu.memory_space<smem>>
    %c10_127 = arith.constant 10 : index
    %442 = memref.load %arg1[%c10_127] : memref<81xf32, #tpu.memory_space<smem>>
    %c11_128 = arith.constant 11 : index
    %443 = memref.load %arg1[%c11_128] : memref<81xf32, #tpu.memory_space<smem>>
    %c12 = arith.constant 12 : index
    %444 = memref.load %arg1[%c12] : memref<81xf32, #tpu.memory_space<smem>>
    %c13 = arith.constant 13 : index
    %445 = memref.load %arg1[%c13] : memref<81xf32, #tpu.memory_space<smem>>
    %c14 = arith.constant 14 : index
    %446 = memref.load %arg1[%c14] : memref<81xf32, #tpu.memory_space<smem>>
    %c15 = arith.constant 15 : index
    %447 = memref.load %arg1[%c15] : memref<81xf32, #tpu.memory_space<smem>>
    %c16 = arith.constant 16 : index
    %448 = memref.load %arg1[%c16] : memref<81xf32, #tpu.memory_space<smem>>
    %c17 = arith.constant 17 : index
    %449 = memref.load %arg1[%c17] : memref<81xf32, #tpu.memory_space<smem>>
    %450 = vector.broadcast %444 : f32 to vector<8x128xf32>
    %451 = arith.subf %450, %34 : vector<8x128xf32>
    %452 = vector.broadcast %445 : f32 to vector<8x128xf32>
    %453 = arith.subf %452, %38 : vector<8x128xf32>
    %454 = arith.mulf %451, %451 : vector<8x128xf32>
    %455 = arith.mulf %453, %453 : vector<8x128xf32>
    %456 = arith.addf %454, %455 : vector<8x128xf32>
    %457 = arith.mulf %446, %446 : f32
    %458 = vector.broadcast %457 : f32 to vector<8x128xf32>
    %459 = arith.addf %456, %458 : vector<8x128xf32>
    %cst_129 = arith.constant 9.99999996E-13 : f32
    %460 = vector.broadcast %cst_129 : f32 to vector<8x128xf32>
    %461 = arith.addf %459, %460 : vector<8x128xf32>
    %462 = math.rsqrt %461 : vector<8x128xf32>
    %463 = arith.mulf %451, %462 : vector<8x128xf32>
    %464 = arith.mulf %453, %462 : vector<8x128xf32>
    %465 = vector.broadcast %446 : f32 to vector<8x128xf32>
    %466 = arith.mulf %465, %462 : vector<8x128xf32>
    %467 = vector.broadcast %441 : f32 to vector<8x128xf32>
    %468 = arith.subf %467, %34 : vector<8x128xf32>
    %469 = vector.broadcast %442 : f32 to vector<8x128xf32>
    %470 = arith.subf %469, %38 : vector<8x128xf32>
    %471 = arith.mulf %468, %468 : vector<8x128xf32>
    %472 = arith.mulf %470, %470 : vector<8x128xf32>
    %473 = arith.addf %471, %472 : vector<8x128xf32>
    %474 = arith.mulf %443, %443 : f32
    %475 = vector.broadcast %474 : f32 to vector<8x128xf32>
    %476 = arith.addf %473, %475 : vector<8x128xf32>
    %cst_130 = arith.constant 9.99999996E-13 : f32
    %477 = vector.broadcast %cst_130 : f32 to vector<8x128xf32>
    %478 = arith.addf %476, %477 : vector<8x128xf32>
    %479 = math.rsqrt %478 : vector<8x128xf32>
    %480 = arith.mulf %468, %479 : vector<8x128xf32>
    %481 = arith.mulf %470, %479 : vector<8x128xf32>
    %482 = vector.broadcast %443 : f32 to vector<8x128xf32>
    %483 = arith.mulf %482, %479 : vector<8x128xf32>
    %484 = arith.addf %463, %480 : vector<8x128xf32>
    %485 = arith.addf %464, %481 : vector<8x128xf32>
    %486 = arith.addf %466, %483 : vector<8x128xf32>
    %487 = arith.mulf %484, %484 : vector<8x128xf32>
    %488 = arith.mulf %485, %485 : vector<8x128xf32>
    %489 = arith.addf %487, %488 : vector<8x128xf32>
    %490 = arith.mulf %486, %486 : vector<8x128xf32>
    %491 = arith.addf %489, %490 : vector<8x128xf32>
    %cst_131 = arith.constant 9.99999996E-13 : f32
    %492 = vector.broadcast %cst_131 : f32 to vector<8x128xf32>
    %493 = arith.addf %491, %492 : vector<8x128xf32>
    %494 = math.rsqrt %493 : vector<8x128xf32>
    %495 = arith.mulf %484, %494 : vector<8x128xf32>
    %496 = arith.mulf %485, %494 : vector<8x128xf32>
    %497 = arith.mulf %486, %494 : vector<8x128xf32>
    %498 = arith.mulf %480, %495 : vector<8x128xf32>
    %499 = arith.mulf %481, %496 : vector<8x128xf32>
    %500 = arith.addf %498, %499 : vector<8x128xf32>
    %501 = arith.mulf %483, %497 : vector<8x128xf32>
    %502 = arith.addf %500, %501 : vector<8x128xf32>
    %cst_132 = arith.constant 9.99999974E-5 : f32
    %503 = vector.broadcast %cst_132 : f32 to vector<8x128xf32>
    %504 = arith.maximumf %502, %503 : vector<8x128xf32>
    %cst_133 = arith.constant -5.554730e+00 : f32
    %505 = vector.broadcast %cst_133 : f32 to vector<8x128xf32>
    %506 = arith.mulf %505, %504 : vector<8x128xf32>
    %cst_134 = arith.constant 6.983160e+00 : f32
    %507 = vector.broadcast %cst_134 : f32 to vector<8x128xf32>
    %508 = arith.subf %506, %507 : vector<8x128xf32>
    %509 = arith.mulf %508, %504 : vector<8x128xf32>
    %cst_135 = arith.constant 0.693147182 : f32
    %510 = vector.broadcast %cst_135 : f32 to vector<8x128xf32>
    %511 = arith.mulf %509, %510 : vector<8x128xf32>
    %512 = math.exp %511 : vector<8x128xf32>
    %513 = arith.mulf %56, %463 : vector<8x128xf32>
    %514 = arith.mulf %57, %464 : vector<8x128xf32>
    %515 = arith.addf %513, %514 : vector<8x128xf32>
    %516 = arith.mulf %58, %466 : vector<8x128xf32>
    %517 = arith.addf %515, %516 : vector<8x128xf32>
    %cst_136 = arith.constant 9.99999974E-5 : f32
    %518 = vector.broadcast %cst_136 : f32 to vector<8x128xf32>
    %519 = arith.maximumf %517, %518 : vector<8x128xf32>
    %520 = arith.mulf %56, %480 : vector<8x128xf32>
    %521 = arith.mulf %57, %481 : vector<8x128xf32>
    %522 = arith.addf %520, %521 : vector<8x128xf32>
    %523 = arith.mulf %58, %483 : vector<8x128xf32>
    %524 = arith.addf %522, %523 : vector<8x128xf32>
    %cst_137 = arith.constant 9.99999974E-5 : f32
    %525 = vector.broadcast %cst_137 : f32 to vector<8x128xf32>
    %526 = arith.maximumf %524, %525 : vector<8x128xf32>
    %527 = arith.mulf %56, %495 : vector<8x128xf32>
    %528 = arith.mulf %57, %496 : vector<8x128xf32>
    %529 = arith.addf %527, %528 : vector<8x128xf32>
    %530 = arith.mulf %58, %497 : vector<8x128xf32>
    %531 = arith.addf %529, %530 : vector<8x128xf32>
    %cst_138 = arith.constant 9.99999974E-5 : f32
    %532 = vector.broadcast %cst_138 : f32 to vector<8x128xf32>
    %533 = arith.maximumf %531, %532 : vector<8x128xf32>
    %534 = arith.mulf %533, %533 : vector<8x128xf32>
    %cst_139 = arith.constant 1.000000e+00 : f32
    %535 = vector.broadcast %cst_139 : f32 to vector<8x128xf32>
    %536 = arith.subf %94, %535 : vector<8x128xf32>
    %537 = arith.mulf %534, %536 : vector<8x128xf32>
    %cst_140 = arith.constant 1.000000e+00 : f32
    %538 = vector.broadcast %cst_140 : f32 to vector<8x128xf32>
    %539 = arith.addf %537, %538 : vector<8x128xf32>
    %cst_141 = arith.constant 1.000000e+00 : f32
    %540 = vector.broadcast %cst_141 : f32 to vector<8x128xf32>
    %541 = arith.subf %540, %96 : vector<8x128xf32>
    %542 = arith.mulf %519, %541 : vector<8x128xf32>
    %543 = arith.addf %542, %96 : vector<8x128xf32>
    %544 = arith.mulf %526, %541 : vector<8x128xf32>
    %545 = arith.addf %544, %96 : vector<8x128xf32>
    %cst_142 = arith.constant 12.566371 : f32
    %546 = vector.broadcast %cst_142 : f32 to vector<8x128xf32>
    %547 = arith.mulf %546, %539 : vector<8x128xf32>
    %548 = arith.mulf %547, %539 : vector<8x128xf32>
    %549 = arith.mulf %548, %543 : vector<8x128xf32>
    %550 = arith.mulf %549, %545 : vector<8x128xf32>
    %551 = tpu.reciprocal %550 {approx = true} : vector<8x128xf32> -> vector<8x128xf32>
    %552 = arith.mulf %94, %551 : vector<8x128xf32>
    %cst_143 = arith.constant 1.000000e+00 : f32
    %553 = vector.broadcast %cst_143 : f32 to vector<8x128xf32>
    %554 = arith.subf %553, %103 : vector<8x128xf32>
    %555 = arith.mulf %554, %512 : vector<8x128xf32>
    %556 = arith.addf %103, %555 : vector<8x128xf32>
    %cst_144 = arith.constant 1.000000e+00 : f32
    %557 = vector.broadcast %cst_144 : f32 to vector<8x128xf32>
    %558 = arith.subf %557, %110 : vector<8x128xf32>
    %559 = arith.mulf %558, %512 : vector<8x128xf32>
    %560 = arith.addf %110, %559 : vector<8x128xf32>
    %cst_145 = arith.constant 1.000000e+00 : f32
    %561 = vector.broadcast %cst_145 : f32 to vector<8x128xf32>
    %562 = arith.subf %561, %117 : vector<8x128xf32>
    %563 = arith.mulf %562, %512 : vector<8x128xf32>
    %564 = arith.addf %117, %563 : vector<8x128xf32>
    %565 = arith.mulf %556, %552 : vector<8x128xf32>
    %566 = arith.addf %67, %565 : vector<8x128xf32>
    %567 = arith.mulf %566, %519 : vector<8x128xf32>
    %568 = vector.broadcast %447 : f32 to vector<8x128xf32>
    %569 = arith.mulf %567, %568 : vector<8x128xf32>
    %570 = arith.mulf %560, %552 : vector<8x128xf32>
    %571 = arith.addf %76, %570 : vector<8x128xf32>
    %572 = arith.mulf %571, %519 : vector<8x128xf32>
    %573 = vector.broadcast %448 : f32 to vector<8x128xf32>
    %574 = arith.mulf %572, %573 : vector<8x128xf32>
    %575 = arith.mulf %564, %552 : vector<8x128xf32>
    %576 = arith.addf %85, %575 : vector<8x128xf32>
    %577 = arith.mulf %576, %519 : vector<8x128xf32>
    %578 = vector.broadcast %449 : f32 to vector<8x128xf32>
    %579 = arith.mulf %577, %578 : vector<8x128xf32>
    %cst_146 = arith.constant 0.000000e+00 : f32
    %580 = vector.broadcast %cst_146 : f32 to vector<8x128xf32>
    %581 = arith.maximumf %569, %580 : vector<8x128xf32>
    %cst_147 = arith.constant 0.000000e+00 : f32
    %582 = vector.broadcast %cst_147 : f32 to vector<8x128xf32>
    %583 = arith.maximumf %574, %582 : vector<8x128xf32>
    %cst_148 = arith.constant 0.000000e+00 : f32
    %584 = vector.broadcast %cst_148 : f32 to vector<8x128xf32>
    %585 = arith.maximumf %579, %584 : vector<8x128xf32>
    %586 = arith.mulf %135, %463 : vector<8x128xf32>
    %587 = arith.mulf %136, %464 : vector<8x128xf32>
    %588 = arith.addf %586, %587 : vector<8x128xf32>
    %589 = arith.mulf %137, %466 : vector<8x128xf32>
    %590 = arith.addf %588, %589 : vector<8x128xf32>
    %cst_149 = arith.constant 9.99999974E-5 : f32
    %591 = vector.broadcast %cst_149 : f32 to vector<8x128xf32>
    %592 = arith.maximumf %590, %591 : vector<8x128xf32>
    %593 = arith.mulf %135, %480 : vector<8x128xf32>
    %594 = arith.mulf %136, %481 : vector<8x128xf32>
    %595 = arith.addf %593, %594 : vector<8x128xf32>
    %596 = arith.mulf %137, %483 : vector<8x128xf32>
    %597 = arith.addf %595, %596 : vector<8x128xf32>
    %cst_150 = arith.constant 9.99999974E-5 : f32
    %598 = vector.broadcast %cst_150 : f32 to vector<8x128xf32>
    %599 = arith.maximumf %597, %598 : vector<8x128xf32>
    %600 = arith.mulf %135, %495 : vector<8x128xf32>
    %601 = arith.mulf %136, %496 : vector<8x128xf32>
    %602 = arith.addf %600, %601 : vector<8x128xf32>
    %603 = arith.mulf %137, %497 : vector<8x128xf32>
    %604 = arith.addf %602, %603 : vector<8x128xf32>
    %cst_151 = arith.constant 9.99999974E-5 : f32
    %605 = vector.broadcast %cst_151 : f32 to vector<8x128xf32>
    %606 = arith.maximumf %604, %605 : vector<8x128xf32>
    %607 = arith.mulf %606, %606 : vector<8x128xf32>
    %cst_152 = arith.constant 1.000000e+00 : f32
    %608 = vector.broadcast %cst_152 : f32 to vector<8x128xf32>
    %609 = arith.subf %173, %608 : vector<8x128xf32>
    %610 = arith.mulf %607, %609 : vector<8x128xf32>
    %cst_153 = arith.constant 1.000000e+00 : f32
    %611 = vector.broadcast %cst_153 : f32 to vector<8x128xf32>
    %612 = arith.addf %610, %611 : vector<8x128xf32>
    %cst_154 = arith.constant 1.000000e+00 : f32
    %613 = vector.broadcast %cst_154 : f32 to vector<8x128xf32>
    %614 = arith.subf %613, %175 : vector<8x128xf32>
    %615 = arith.mulf %592, %614 : vector<8x128xf32>
    %616 = arith.addf %615, %175 : vector<8x128xf32>
    %617 = arith.mulf %599, %614 : vector<8x128xf32>
    %618 = arith.addf %617, %175 : vector<8x128xf32>
    %cst_155 = arith.constant 12.566371 : f32
    %619 = vector.broadcast %cst_155 : f32 to vector<8x128xf32>
    %620 = arith.mulf %619, %612 : vector<8x128xf32>
    %621 = arith.mulf %620, %612 : vector<8x128xf32>
    %622 = arith.mulf %621, %616 : vector<8x128xf32>
    %623 = arith.mulf %622, %618 : vector<8x128xf32>
    %624 = tpu.reciprocal %623 {approx = true} : vector<8x128xf32> -> vector<8x128xf32>
    %625 = arith.mulf %173, %624 : vector<8x128xf32>
    %cst_156 = arith.constant 1.000000e+00 : f32
    %626 = vector.broadcast %cst_156 : f32 to vector<8x128xf32>
    %627 = arith.subf %626, %182 : vector<8x128xf32>
    %628 = arith.mulf %627, %512 : vector<8x128xf32>
    %629 = arith.addf %182, %628 : vector<8x128xf32>
    %cst_157 = arith.constant 1.000000e+00 : f32
    %630 = vector.broadcast %cst_157 : f32 to vector<8x128xf32>
    %631 = arith.subf %630, %189 : vector<8x128xf32>
    %632 = arith.mulf %631, %512 : vector<8x128xf32>
    %633 = arith.addf %189, %632 : vector<8x128xf32>
    %cst_158 = arith.constant 1.000000e+00 : f32
    %634 = vector.broadcast %cst_158 : f32 to vector<8x128xf32>
    %635 = arith.subf %634, %196 : vector<8x128xf32>
    %636 = arith.mulf %635, %512 : vector<8x128xf32>
    %637 = arith.addf %196, %636 : vector<8x128xf32>
    %638 = arith.mulf %629, %625 : vector<8x128xf32>
    %639 = arith.addf %146, %638 : vector<8x128xf32>
    %640 = arith.mulf %639, %592 : vector<8x128xf32>
    %641 = vector.broadcast %447 : f32 to vector<8x128xf32>
    %642 = arith.mulf %640, %641 : vector<8x128xf32>
    %643 = arith.mulf %633, %625 : vector<8x128xf32>
    %644 = arith.addf %155, %643 : vector<8x128xf32>
    %645 = arith.mulf %644, %592 : vector<8x128xf32>
    %646 = vector.broadcast %448 : f32 to vector<8x128xf32>
    %647 = arith.mulf %645, %646 : vector<8x128xf32>
    %648 = arith.mulf %637, %625 : vector<8x128xf32>
    %649 = arith.addf %164, %648 : vector<8x128xf32>
    %650 = arith.mulf %649, %592 : vector<8x128xf32>
    %651 = vector.broadcast %449 : f32 to vector<8x128xf32>
    %652 = arith.mulf %650, %651 : vector<8x128xf32>
    %cst_159 = arith.constant 0.000000e+00 : f32
    %653 = vector.broadcast %cst_159 : f32 to vector<8x128xf32>
    %654 = arith.maximumf %642, %653 : vector<8x128xf32>
    %cst_160 = arith.constant 0.000000e+00 : f32
    %655 = vector.broadcast %cst_160 : f32 to vector<8x128xf32>
    %656 = arith.maximumf %647, %655 : vector<8x128xf32>
    %cst_161 = arith.constant 0.000000e+00 : f32
    %657 = vector.broadcast %cst_161 : f32 to vector<8x128xf32>
    %658 = arith.maximumf %652, %657 : vector<8x128xf32>
    %cst_162 = arith.constant 9.99999974E-6 : f32
    %659 = vector.broadcast %cst_162 : f32 to vector<8x128xf32>
    %660 = arith.addf %581, %659 : vector<8x128xf32>
    %661 = math.log %660 : vector<8x128xf32>
    %cst_163 = arith.constant 9.99999974E-6 : f32
    %662 = vector.broadcast %cst_163 : f32 to vector<8x128xf32>
    %663 = arith.addf %654, %662 : vector<8x128xf32>
    %664 = math.log %663 : vector<8x128xf32>
    %665 = arith.subf %661, %664 : vector<8x128xf32>
    %666 = math.absf %665 : vector<8x128xf32>
    %667 = arith.addf %440, %666 : vector<8x128xf32>
    %cst_164 = arith.constant 9.99999974E-6 : f32
    %668 = vector.broadcast %cst_164 : f32 to vector<8x128xf32>
    %669 = arith.addf %583, %668 : vector<8x128xf32>
    %670 = math.log %669 : vector<8x128xf32>
    %cst_165 = arith.constant 9.99999974E-6 : f32
    %671 = vector.broadcast %cst_165 : f32 to vector<8x128xf32>
    %672 = arith.addf %656, %671 : vector<8x128xf32>
    %673 = math.log %672 : vector<8x128xf32>
    %674 = arith.subf %670, %673 : vector<8x128xf32>
    %675 = math.absf %674 : vector<8x128xf32>
    %676 = arith.addf %667, %675 : vector<8x128xf32>
    %cst_166 = arith.constant 9.99999974E-6 : f32
    %677 = vector.broadcast %cst_166 : f32 to vector<8x128xf32>
    %678 = arith.addf %585, %677 : vector<8x128xf32>
    %679 = math.log %678 : vector<8x128xf32>
    %cst_167 = arith.constant 9.99999974E-6 : f32
    %680 = vector.broadcast %cst_167 : f32 to vector<8x128xf32>
    %681 = arith.addf %658, %680 : vector<8x128xf32>
    %682 = math.log %681 : vector<8x128xf32>
    %683 = arith.subf %679, %682 : vector<8x128xf32>
    %684 = math.absf %683 : vector<8x128xf32>
    %685 = arith.addf %676, %684 : vector<8x128xf32>
    %c18 = arith.constant 18 : index
    %686 = memref.load %arg1[%c18] : memref<81xf32, #tpu.memory_space<smem>>
    %c19 = arith.constant 19 : index
    %687 = memref.load %arg1[%c19] : memref<81xf32, #tpu.memory_space<smem>>
    %c20 = arith.constant 20 : index
    %688 = memref.load %arg1[%c20] : memref<81xf32, #tpu.memory_space<smem>>
    %c21 = arith.constant 21 : index
    %689 = memref.load %arg1[%c21] : memref<81xf32, #tpu.memory_space<smem>>
    %c22 = arith.constant 22 : index
    %690 = memref.load %arg1[%c22] : memref<81xf32, #tpu.memory_space<smem>>
    %c23 = arith.constant 23 : index
    %691 = memref.load %arg1[%c23] : memref<81xf32, #tpu.memory_space<smem>>
    %c24 = arith.constant 24 : index
    %692 = memref.load %arg1[%c24] : memref<81xf32, #tpu.memory_space<smem>>
    %c25 = arith.constant 25 : index
    %693 = memref.load %arg1[%c25] : memref<81xf32, #tpu.memory_space<smem>>
    %c26 = arith.constant 26 : index
    %694 = memref.load %arg1[%c26] : memref<81xf32, #tpu.memory_space<smem>>
    %695 = vector.broadcast %689 : f32 to vector<8x128xf32>
    %696 = arith.subf %695, %34 : vector<8x128xf32>
    %697 = vector.broadcast %690 : f32 to vector<8x128xf32>
    %698 = arith.subf %697, %38 : vector<8x128xf32>
    %699 = arith.mulf %696, %696 : vector<8x128xf32>
    %700 = arith.mulf %698, %698 : vector<8x128xf32>
    %701 = arith.addf %699, %700 : vector<8x128xf32>
    %702 = arith.mulf %691, %691 : f32
    %703 = vector.broadcast %702 : f32 to vector<8x128xf32>
    %704 = arith.addf %701, %703 : vector<8x128xf32>
    %cst_168 = arith.constant 9.99999996E-13 : f32
    %705 = vector.broadcast %cst_168 : f32 to vector<8x128xf32>
    %706 = arith.addf %704, %705 : vector<8x128xf32>
    %707 = math.rsqrt %706 : vector<8x128xf32>
    %708 = arith.mulf %696, %707 : vector<8x128xf32>
    %709 = arith.mulf %698, %707 : vector<8x128xf32>
    %710 = vector.broadcast %691 : f32 to vector<8x128xf32>
    %711 = arith.mulf %710, %707 : vector<8x128xf32>
    %712 = vector.broadcast %686 : f32 to vector<8x128xf32>
    %713 = arith.subf %712, %34 : vector<8x128xf32>
    %714 = vector.broadcast %687 : f32 to vector<8x128xf32>
    %715 = arith.subf %714, %38 : vector<8x128xf32>
    %716 = arith.mulf %713, %713 : vector<8x128xf32>
    %717 = arith.mulf %715, %715 : vector<8x128xf32>
    %718 = arith.addf %716, %717 : vector<8x128xf32>
    %719 = arith.mulf %688, %688 : f32
    %720 = vector.broadcast %719 : f32 to vector<8x128xf32>
    %721 = arith.addf %718, %720 : vector<8x128xf32>
    %cst_169 = arith.constant 9.99999996E-13 : f32
    %722 = vector.broadcast %cst_169 : f32 to vector<8x128xf32>
    %723 = arith.addf %721, %722 : vector<8x128xf32>
    %724 = math.rsqrt %723 : vector<8x128xf32>
    %725 = arith.mulf %713, %724 : vector<8x128xf32>
    %726 = arith.mulf %715, %724 : vector<8x128xf32>
    %727 = vector.broadcast %688 : f32 to vector<8x128xf32>
    %728 = arith.mulf %727, %724 : vector<8x128xf32>
    %729 = arith.addf %708, %725 : vector<8x128xf32>
    %730 = arith.addf %709, %726 : vector<8x128xf32>
    %731 = arith.addf %711, %728 : vector<8x128xf32>
    %732 = arith.mulf %729, %729 : vector<8x128xf32>
    %733 = arith.mulf %730, %730 : vector<8x128xf32>
    %734 = arith.addf %732, %733 : vector<8x128xf32>
    %735 = arith.mulf %731, %731 : vector<8x128xf32>
    %736 = arith.addf %734, %735 : vector<8x128xf32>
    %cst_170 = arith.constant 9.99999996E-13 : f32
    %737 = vector.broadcast %cst_170 : f32 to vector<8x128xf32>
    %738 = arith.addf %736, %737 : vector<8x128xf32>
    %739 = math.rsqrt %738 : vector<8x128xf32>
    %740 = arith.mulf %729, %739 : vector<8x128xf32>
    %741 = arith.mulf %730, %739 : vector<8x128xf32>
    %742 = arith.mulf %731, %739 : vector<8x128xf32>
    %743 = arith.mulf %725, %740 : vector<8x128xf32>
    %744 = arith.mulf %726, %741 : vector<8x128xf32>
    %745 = arith.addf %743, %744 : vector<8x128xf32>
    %746 = arith.mulf %728, %742 : vector<8x128xf32>
    %747 = arith.addf %745, %746 : vector<8x128xf32>
    %cst_171 = arith.constant 9.99999974E-5 : f32
    %748 = vector.broadcast %cst_171 : f32 to vector<8x128xf32>
    %749 = arith.maximumf %747, %748 : vector<8x128xf32>
    %cst_172 = arith.constant -5.554730e+00 : f32
    %750 = vector.broadcast %cst_172 : f32 to vector<8x128xf32>
    %751 = arith.mulf %750, %749 : vector<8x128xf32>
    %cst_173 = arith.constant 6.983160e+00 : f32
    %752 = vector.broadcast %cst_173 : f32 to vector<8x128xf32>
    %753 = arith.subf %751, %752 : vector<8x128xf32>
    %754 = arith.mulf %753, %749 : vector<8x128xf32>
    %cst_174 = arith.constant 0.693147182 : f32
    %755 = vector.broadcast %cst_174 : f32 to vector<8x128xf32>
    %756 = arith.mulf %754, %755 : vector<8x128xf32>
    %757 = math.exp %756 : vector<8x128xf32>
    %758 = arith.mulf %56, %708 : vector<8x128xf32>
    %759 = arith.mulf %57, %709 : vector<8x128xf32>
    %760 = arith.addf %758, %759 : vector<8x128xf32>
    %761 = arith.mulf %58, %711 : vector<8x128xf32>
    %762 = arith.addf %760, %761 : vector<8x128xf32>
    %cst_175 = arith.constant 9.99999974E-5 : f32
    %763 = vector.broadcast %cst_175 : f32 to vector<8x128xf32>
    %764 = arith.maximumf %762, %763 : vector<8x128xf32>
    %765 = arith.mulf %56, %725 : vector<8x128xf32>
    %766 = arith.mulf %57, %726 : vector<8x128xf32>
    %767 = arith.addf %765, %766 : vector<8x128xf32>
    %768 = arith.mulf %58, %728 : vector<8x128xf32>
    %769 = arith.addf %767, %768 : vector<8x128xf32>
    %cst_176 = arith.constant 9.99999974E-5 : f32
    %770 = vector.broadcast %cst_176 : f32 to vector<8x128xf32>
    %771 = arith.maximumf %769, %770 : vector<8x128xf32>
    %772 = arith.mulf %56, %740 : vector<8x128xf32>
    %773 = arith.mulf %57, %741 : vector<8x128xf32>
    %774 = arith.addf %772, %773 : vector<8x128xf32>
    %775 = arith.mulf %58, %742 : vector<8x128xf32>
    %776 = arith.addf %774, %775 : vector<8x128xf32>
    %cst_177 = arith.constant 9.99999974E-5 : f32
    %777 = vector.broadcast %cst_177 : f32 to vector<8x128xf32>
    %778 = arith.maximumf %776, %777 : vector<8x128xf32>
    %779 = arith.mulf %778, %778 : vector<8x128xf32>
    %cst_178 = arith.constant 1.000000e+00 : f32
    %780 = vector.broadcast %cst_178 : f32 to vector<8x128xf32>
    %781 = arith.subf %94, %780 : vector<8x128xf32>
    %782 = arith.mulf %779, %781 : vector<8x128xf32>
    %cst_179 = arith.constant 1.000000e+00 : f32
    %783 = vector.broadcast %cst_179 : f32 to vector<8x128xf32>
    %784 = arith.addf %782, %783 : vector<8x128xf32>
    %cst_180 = arith.constant 1.000000e+00 : f32
    %785 = vector.broadcast %cst_180 : f32 to vector<8x128xf32>
    %786 = arith.subf %785, %96 : vector<8x128xf32>
    %787 = arith.mulf %764, %786 : vector<8x128xf32>
    %788 = arith.addf %787, %96 : vector<8x128xf32>
    %789 = arith.mulf %771, %786 : vector<8x128xf32>
    %790 = arith.addf %789, %96 : vector<8x128xf32>
    %cst_181 = arith.constant 12.566371 : f32
    %791 = vector.broadcast %cst_181 : f32 to vector<8x128xf32>
    %792 = arith.mulf %791, %784 : vector<8x128xf32>
    %793 = arith.mulf %792, %784 : vector<8x128xf32>
    %794 = arith.mulf %793, %788 : vector<8x128xf32>
    %795 = arith.mulf %794, %790 : vector<8x128xf32>
    %796 = tpu.reciprocal %795 {approx = true} : vector<8x128xf32> -> vector<8x128xf32>
    %797 = arith.mulf %94, %796 : vector<8x128xf32>
    %cst_182 = arith.constant 1.000000e+00 : f32
    %798 = vector.broadcast %cst_182 : f32 to vector<8x128xf32>
    %799 = arith.subf %798, %103 : vector<8x128xf32>
    %800 = arith.mulf %799, %757 : vector<8x128xf32>
    %801 = arith.addf %103, %800 : vector<8x128xf32>
    %cst_183 = arith.constant 1.000000e+00 : f32
    %802 = vector.broadcast %cst_183 : f32 to vector<8x128xf32>
    %803 = arith.subf %802, %110 : vector<8x128xf32>
    %804 = arith.mulf %803, %757 : vector<8x128xf32>
    %805 = arith.addf %110, %804 : vector<8x128xf32>
    %cst_184 = arith.constant 1.000000e+00 : f32
    %806 = vector.broadcast %cst_184 : f32 to vector<8x128xf32>
    %807 = arith.subf %806, %117 : vector<8x128xf32>
    %808 = arith.mulf %807, %757 : vector<8x128xf32>
    %809 = arith.addf %117, %808 : vector<8x128xf32>
    %810 = arith.mulf %801, %797 : vector<8x128xf32>
    %811 = arith.addf %67, %810 : vector<8x128xf32>
    %812 = arith.mulf %811, %764 : vector<8x128xf32>
    %813 = vector.broadcast %692 : f32 to vector<8x128xf32>
    %814 = arith.mulf %812, %813 : vector<8x128xf32>
    %815 = arith.mulf %805, %797 : vector<8x128xf32>
    %816 = arith.addf %76, %815 : vector<8x128xf32>
    %817 = arith.mulf %816, %764 : vector<8x128xf32>
    %818 = vector.broadcast %693 : f32 to vector<8x128xf32>
    %819 = arith.mulf %817, %818 : vector<8x128xf32>
    %820 = arith.mulf %809, %797 : vector<8x128xf32>
    %821 = arith.addf %85, %820 : vector<8x128xf32>
    %822 = arith.mulf %821, %764 : vector<8x128xf32>
    %823 = vector.broadcast %694 : f32 to vector<8x128xf32>
    %824 = arith.mulf %822, %823 : vector<8x128xf32>
    %cst_185 = arith.constant 0.000000e+00 : f32
    %825 = vector.broadcast %cst_185 : f32 to vector<8x128xf32>
    %826 = arith.maximumf %814, %825 : vector<8x128xf32>
    %cst_186 = arith.constant 0.000000e+00 : f32
    %827 = vector.broadcast %cst_186 : f32 to vector<8x128xf32>
    %828 = arith.maximumf %819, %827 : vector<8x128xf32>
    %cst_187 = arith.constant 0.000000e+00 : f32
    %829 = vector.broadcast %cst_187 : f32 to vector<8x128xf32>
    %830 = arith.maximumf %824, %829 : vector<8x128xf32>
    %831 = arith.mulf %135, %708 : vector<8x128xf32>
    %832 = arith.mulf %136, %709 : vector<8x128xf32>
    %833 = arith.addf %831, %832 : vector<8x128xf32>
    %834 = arith.mulf %137, %711 : vector<8x128xf32>
    %835 = arith.addf %833, %834 : vector<8x128xf32>
    %cst_188 = arith.constant 9.99999974E-5 : f32
    %836 = vector.broadcast %cst_188 : f32 to vector<8x128xf32>
    %837 = arith.maximumf %835, %836 : vector<8x128xf32>
    %838 = arith.mulf %135, %725 : vector<8x128xf32>
    %839 = arith.mulf %136, %726 : vector<8x128xf32>
    %840 = arith.addf %838, %839 : vector<8x128xf32>
    %841 = arith.mulf %137, %728 : vector<8x128xf32>
    %842 = arith.addf %840, %841 : vector<8x128xf32>
    %cst_189 = arith.constant 9.99999974E-5 : f32
    %843 = vector.broadcast %cst_189 : f32 to vector<8x128xf32>
    %844 = arith.maximumf %842, %843 : vector<8x128xf32>
    %845 = arith.mulf %135, %740 : vector<8x128xf32>
    %846 = arith.mulf %136, %741 : vector<8x128xf32>
    %847 = arith.addf %845, %846 : vector<8x128xf32>
    %848 = arith.mulf %137, %742 : vector<8x128xf32>
    %849 = arith.addf %847, %848 : vector<8x128xf32>
    %cst_190 = arith.constant 9.99999974E-5 : f32
    %850 = vector.broadcast %cst_190 : f32 to vector<8x128xf32>
    %851 = arith.maximumf %849, %850 : vector<8x128xf32>
    %852 = arith.mulf %851, %851 : vector<8x128xf32>
    %cst_191 = arith.constant 1.000000e+00 : f32
    %853 = vector.broadcast %cst_191 : f32 to vector<8x128xf32>
    %854 = arith.subf %173, %853 : vector<8x128xf32>
    %855 = arith.mulf %852, %854 : vector<8x128xf32>
    %cst_192 = arith.constant 1.000000e+00 : f32
    %856 = vector.broadcast %cst_192 : f32 to vector<8x128xf32>
    %857 = arith.addf %855, %856 : vector<8x128xf32>
    %cst_193 = arith.constant 1.000000e+00 : f32
    %858 = vector.broadcast %cst_193 : f32 to vector<8x128xf32>
    %859 = arith.subf %858, %175 : vector<8x128xf32>
    %860 = arith.mulf %837, %859 : vector<8x128xf32>
    %861 = arith.addf %860, %175 : vector<8x128xf32>
    %862 = arith.mulf %844, %859 : vector<8x128xf32>
    %863 = arith.addf %862, %175 : vector<8x128xf32>
    %cst_194 = arith.constant 12.566371 : f32
    %864 = vector.broadcast %cst_194 : f32 to vector<8x128xf32>
    %865 = arith.mulf %864, %857 : vector<8x128xf32>
    %866 = arith.mulf %865, %857 : vector<8x128xf32>
    %867 = arith.mulf %866, %861 : vector<8x128xf32>
    %868 = arith.mulf %867, %863 : vector<8x128xf32>
    %869 = tpu.reciprocal %868 {approx = true} : vector<8x128xf32> -> vector<8x128xf32>
    %870 = arith.mulf %173, %869 : vector<8x128xf32>
    %cst_195 = arith.constant 1.000000e+00 : f32
    %871 = vector.broadcast %cst_195 : f32 to vector<8x128xf32>
    %872 = arith.subf %871, %182 : vector<8x128xf32>
    %873 = arith.mulf %872, %757 : vector<8x128xf32>
    %874 = arith.addf %182, %873 : vector<8x128xf32>
    %cst_196 = arith.constant 1.000000e+00 : f32
    %875 = vector.broadcast %cst_196 : f32 to vector<8x128xf32>
    %876 = arith.subf %875, %189 : vector<8x128xf32>
    %877 = arith.mulf %876, %757 : vector<8x128xf32>
    %878 = arith.addf %189, %877 : vector<8x128xf32>
    %cst_197 = arith.constant 1.000000e+00 : f32
    %879 = vector.broadcast %cst_197 : f32 to vector<8x128xf32>
    %880 = arith.subf %879, %196 : vector<8x128xf32>
    %881 = arith.mulf %880, %757 : vector<8x128xf32>
    %882 = arith.addf %196, %881 : vector<8x128xf32>
    %883 = arith.mulf %874, %870 : vector<8x128xf32>
    %884 = arith.addf %146, %883 : vector<8x128xf32>
    %885 = arith.mulf %884, %837 : vector<8x128xf32>
    %886 = vector.broadcast %692 : f32 to vector<8x128xf32>
    %887 = arith.mulf %885, %886 : vector<8x128xf32>
    %888 = arith.mulf %878, %870 : vector<8x128xf32>
    %889 = arith.addf %155, %888 : vector<8x128xf32>
    %890 = arith.mulf %889, %837 : vector<8x128xf32>
    %891 = vector.broadcast %693 : f32 to vector<8x128xf32>
    %892 = arith.mulf %890, %891 : vector<8x128xf32>
    %893 = arith.mulf %882, %870 : vector<8x128xf32>
    %894 = arith.addf %164, %893 : vector<8x128xf32>
    %895 = arith.mulf %894, %837 : vector<8x128xf32>
    %896 = vector.broadcast %694 : f32 to vector<8x128xf32>
    %897 = arith.mulf %895, %896 : vector<8x128xf32>
    %cst_198 = arith.constant 0.000000e+00 : f32
    %898 = vector.broadcast %cst_198 : f32 to vector<8x128xf32>
    %899 = arith.maximumf %887, %898 : vector<8x128xf32>
    %cst_199 = arith.constant 0.000000e+00 : f32
    %900 = vector.broadcast %cst_199 : f32 to vector<8x128xf32>
    %901 = arith.maximumf %892, %900 : vector<8x128xf32>
    %cst_200 = arith.constant 0.000000e+00 : f32
    %902 = vector.broadcast %cst_200 : f32 to vector<8x128xf32>
    %903 = arith.maximumf %897, %902 : vector<8x128xf32>
    %cst_201 = arith.constant 9.99999974E-6 : f32
    %904 = vector.broadcast %cst_201 : f32 to vector<8x128xf32>
    %905 = arith.addf %826, %904 : vector<8x128xf32>
    %906 = math.log %905 : vector<8x128xf32>
    %cst_202 = arith.constant 9.99999974E-6 : f32
    %907 = vector.broadcast %cst_202 : f32 to vector<8x128xf32>
    %908 = arith.addf %899, %907 : vector<8x128xf32>
    %909 = math.log %908 : vector<8x128xf32>
    %910 = arith.subf %906, %909 : vector<8x128xf32>
    %911 = math.absf %910 : vector<8x128xf32>
    %912 = arith.addf %685, %911 : vector<8x128xf32>
    %cst_203 = arith.constant 9.99999974E-6 : f32
    %913 = vector.broadcast %cst_203 : f32 to vector<8x128xf32>
    %914 = arith.addf %828, %913 : vector<8x128xf32>
    %915 = math.log %914 : vector<8x128xf32>
    %cst_204 = arith.constant 9.99999974E-6 : f32
    %916 = vector.broadcast %cst_204 : f32 to vector<8x128xf32>
    %917 = arith.addf %901, %916 : vector<8x128xf32>
    %918 = math.log %917 : vector<8x128xf32>
    %919 = arith.subf %915, %918 : vector<8x128xf32>
    %920 = math.absf %919 : vector<8x128xf32>
    %921 = arith.addf %912, %920 : vector<8x128xf32>
    %cst_205 = arith.constant 9.99999974E-6 : f32
    %922 = vector.broadcast %cst_205 : f32 to vector<8x128xf32>
    %923 = arith.addf %830, %922 : vector<8x128xf32>
    %924 = math.log %923 : vector<8x128xf32>
    %cst_206 = arith.constant 9.99999974E-6 : f32
    %925 = vector.broadcast %cst_206 : f32 to vector<8x128xf32>
    %926 = arith.addf %903, %925 : vector<8x128xf32>
    %927 = math.log %926 : vector<8x128xf32>
    %928 = arith.subf %924, %927 : vector<8x128xf32>
    %929 = math.absf %928 : vector<8x128xf32>
    %930 = arith.addf %921, %929 : vector<8x128xf32>
    %c27 = arith.constant 27 : index
    %931 = memref.load %arg1[%c27] : memref<81xf32, #tpu.memory_space<smem>>
    %c28 = arith.constant 28 : index
    %932 = memref.load %arg1[%c28] : memref<81xf32, #tpu.memory_space<smem>>
    %c29 = arith.constant 29 : index
    %933 = memref.load %arg1[%c29] : memref<81xf32, #tpu.memory_space<smem>>
    %c30 = arith.constant 30 : index
    %934 = memref.load %arg1[%c30] : memref<81xf32, #tpu.memory_space<smem>>
    %c31 = arith.constant 31 : index
    %935 = memref.load %arg1[%c31] : memref<81xf32, #tpu.memory_space<smem>>
    %c32 = arith.constant 32 : index
    %936 = memref.load %arg1[%c32] : memref<81xf32, #tpu.memory_space<smem>>
    %c33 = arith.constant 33 : index
    %937 = memref.load %arg1[%c33] : memref<81xf32, #tpu.memory_space<smem>>
    %c34 = arith.constant 34 : index
    %938 = memref.load %arg1[%c34] : memref<81xf32, #tpu.memory_space<smem>>
    %c35 = arith.constant 35 : index
    %939 = memref.load %arg1[%c35] : memref<81xf32, #tpu.memory_space<smem>>
    %940 = vector.broadcast %934 : f32 to vector<8x128xf32>
    %941 = arith.subf %940, %34 : vector<8x128xf32>
    %942 = vector.broadcast %935 : f32 to vector<8x128xf32>
    %943 = arith.subf %942, %38 : vector<8x128xf32>
    %944 = arith.mulf %941, %941 : vector<8x128xf32>
    %945 = arith.mulf %943, %943 : vector<8x128xf32>
    %946 = arith.addf %944, %945 : vector<8x128xf32>
    %947 = arith.mulf %936, %936 : f32
    %948 = vector.broadcast %947 : f32 to vector<8x128xf32>
    %949 = arith.addf %946, %948 : vector<8x128xf32>
    %cst_207 = arith.constant 9.99999996E-13 : f32
    %950 = vector.broadcast %cst_207 : f32 to vector<8x128xf32>
    %951 = arith.addf %949, %950 : vector<8x128xf32>
    %952 = math.rsqrt %951 : vector<8x128xf32>
    %953 = arith.mulf %941, %952 : vector<8x128xf32>
    %954 = arith.mulf %943, %952 : vector<8x128xf32>
    %955 = vector.broadcast %936 : f32 to vector<8x128xf32>
    %956 = arith.mulf %955, %952 : vector<8x128xf32>
    %957 = vector.broadcast %931 : f32 to vector<8x128xf32>
    %958 = arith.subf %957, %34 : vector<8x128xf32>
    %959 = vector.broadcast %932 : f32 to vector<8x128xf32>
    %960 = arith.subf %959, %38 : vector<8x128xf32>
    %961 = arith.mulf %958, %958 : vector<8x128xf32>
    %962 = arith.mulf %960, %960 : vector<8x128xf32>
    %963 = arith.addf %961, %962 : vector<8x128xf32>
    %964 = arith.mulf %933, %933 : f32
    %965 = vector.broadcast %964 : f32 to vector<8x128xf32>
    %966 = arith.addf %963, %965 : vector<8x128xf32>
    %cst_208 = arith.constant 9.99999996E-13 : f32
    %967 = vector.broadcast %cst_208 : f32 to vector<8x128xf32>
    %968 = arith.addf %966, %967 : vector<8x128xf32>
    %969 = math.rsqrt %968 : vector<8x128xf32>
    %970 = arith.mulf %958, %969 : vector<8x128xf32>
    %971 = arith.mulf %960, %969 : vector<8x128xf32>
    %972 = vector.broadcast %933 : f32 to vector<8x128xf32>
    %973 = arith.mulf %972, %969 : vector<8x128xf32>
    %974 = arith.addf %953, %970 : vector<8x128xf32>
    %975 = arith.addf %954, %971 : vector<8x128xf32>
    %976 = arith.addf %956, %973 : vector<8x128xf32>
    %977 = arith.mulf %974, %974 : vector<8x128xf32>
    %978 = arith.mulf %975, %975 : vector<8x128xf32>
    %979 = arith.addf %977, %978 : vector<8x128xf32>
    %980 = arith.mulf %976, %976 : vector<8x128xf32>
    %981 = arith.addf %979, %980 : vector<8x128xf32>
    %cst_209 = arith.constant 9.99999996E-13 : f32
    %982 = vector.broadcast %cst_209 : f32 to vector<8x128xf32>
    %983 = arith.addf %981, %982 : vector<8x128xf32>
    %984 = math.rsqrt %983 : vector<8x128xf32>
    %985 = arith.mulf %974, %984 : vector<8x128xf32>
    %986 = arith.mulf %975, %984 : vector<8x128xf32>
    %987 = arith.mulf %976, %984 : vector<8x128xf32>
    %988 = arith.mulf %970, %985 : vector<8x128xf32>
    %989 = arith.mulf %971, %986 : vector<8x128xf32>
    %990 = arith.addf %988, %989 : vector<8x128xf32>
    %991 = arith.mulf %973, %987 : vector<8x128xf32>
    %992 = arith.addf %990, %991 : vector<8x128xf32>
    %cst_210 = arith.constant 9.99999974E-5 : f32
    %993 = vector.broadcast %cst_210 : f32 to vector<8x128xf32>
    %994 = arith.maximumf %992, %993 : vector<8x128xf32>
    %cst_211 = arith.constant -5.554730e+00 : f32
    %995 = vector.broadcast %cst_211 : f32 to vector<8x128xf32>
    %996 = arith.mulf %995, %994 : vector<8x128xf32>
    %cst_212 = arith.constant 6.983160e+00 : f32
    %997 = vector.broadcast %cst_212 : f32 to vector<8x128xf32>
    %998 = arith.subf %996, %997 : vector<8x128xf32>
    %999 = arith.mulf %998, %994 : vector<8x128xf32>
    %cst_213 = arith.constant 0.693147182 : f32
    %1000 = vector.broadcast %cst_213 : f32 to vector<8x128xf32>
    %1001 = arith.mulf %999, %1000 : vector<8x128xf32>
    %1002 = math.exp %1001 : vector<8x128xf32>
    %1003 = arith.mulf %56, %953 : vector<8x128xf32>
    %1004 = arith.mulf %57, %954 : vector<8x128xf32>
    %1005 = arith.addf %1003, %1004 : vector<8x128xf32>
    %1006 = arith.mulf %58, %956 : vector<8x128xf32>
    %1007 = arith.addf %1005, %1006 : vector<8x128xf32>
    %cst_214 = arith.constant 9.99999974E-5 : f32
    %1008 = vector.broadcast %cst_214 : f32 to vector<8x128xf32>
    %1009 = arith.maximumf %1007, %1008 : vector<8x128xf32>
    %1010 = arith.mulf %56, %970 : vector<8x128xf32>
    %1011 = arith.mulf %57, %971 : vector<8x128xf32>
    %1012 = arith.addf %1010, %1011 : vector<8x128xf32>
    %1013 = arith.mulf %58, %973 : vector<8x128xf32>
    %1014 = arith.addf %1012, %1013 : vector<8x128xf32>
    %cst_215 = arith.constant 9.99999974E-5 : f32
    %1015 = vector.broadcast %cst_215 : f32 to vector<8x128xf32>
    %1016 = arith.maximumf %1014, %1015 : vector<8x128xf32>
    %1017 = arith.mulf %56, %985 : vector<8x128xf32>
    %1018 = arith.mulf %57, %986 : vector<8x128xf32>
    %1019 = arith.addf %1017, %1018 : vector<8x128xf32>
    %1020 = arith.mulf %58, %987 : vector<8x128xf32>
    %1021 = arith.addf %1019, %1020 : vector<8x128xf32>
    %cst_216 = arith.constant 9.99999974E-5 : f32
    %1022 = vector.broadcast %cst_216 : f32 to vector<8x128xf32>
    %1023 = arith.maximumf %1021, %1022 : vector<8x128xf32>
    %1024 = arith.mulf %1023, %1023 : vector<8x128xf32>
    %cst_217 = arith.constant 1.000000e+00 : f32
    %1025 = vector.broadcast %cst_217 : f32 to vector<8x128xf32>
    %1026 = arith.subf %94, %1025 : vector<8x128xf32>
    %1027 = arith.mulf %1024, %1026 : vector<8x128xf32>
    %cst_218 = arith.constant 1.000000e+00 : f32
    %1028 = vector.broadcast %cst_218 : f32 to vector<8x128xf32>
    %1029 = arith.addf %1027, %1028 : vector<8x128xf32>
    %cst_219 = arith.constant 1.000000e+00 : f32
    %1030 = vector.broadcast %cst_219 : f32 to vector<8x128xf32>
    %1031 = arith.subf %1030, %96 : vector<8x128xf32>
    %1032 = arith.mulf %1009, %1031 : vector<8x128xf32>
    %1033 = arith.addf %1032, %96 : vector<8x128xf32>
    %1034 = arith.mulf %1016, %1031 : vector<8x128xf32>
    %1035 = arith.addf %1034, %96 : vector<8x128xf32>
    %cst_220 = arith.constant 12.566371 : f32
    %1036 = vector.broadcast %cst_220 : f32 to vector<8x128xf32>
    %1037 = arith.mulf %1036, %1029 : vector<8x128xf32>
    %1038 = arith.mulf %1037, %1029 : vector<8x128xf32>
    %1039 = arith.mulf %1038, %1033 : vector<8x128xf32>
    %1040 = arith.mulf %1039, %1035 : vector<8x128xf32>
    %1041 = tpu.reciprocal %1040 {approx = true} : vector<8x128xf32> -> vector<8x128xf32>
    %1042 = arith.mulf %94, %1041 : vector<8x128xf32>
    %cst_221 = arith.constant 1.000000e+00 : f32
    %1043 = vector.broadcast %cst_221 : f32 to vector<8x128xf32>
    %1044 = arith.subf %1043, %103 : vector<8x128xf32>
    %1045 = arith.mulf %1044, %1002 : vector<8x128xf32>
    %1046 = arith.addf %103, %1045 : vector<8x128xf32>
    %cst_222 = arith.constant 1.000000e+00 : f32
    %1047 = vector.broadcast %cst_222 : f32 to vector<8x128xf32>
    %1048 = arith.subf %1047, %110 : vector<8x128xf32>
    %1049 = arith.mulf %1048, %1002 : vector<8x128xf32>
    %1050 = arith.addf %110, %1049 : vector<8x128xf32>
    %cst_223 = arith.constant 1.000000e+00 : f32
    %1051 = vector.broadcast %cst_223 : f32 to vector<8x128xf32>
    %1052 = arith.subf %1051, %117 : vector<8x128xf32>
    %1053 = arith.mulf %1052, %1002 : vector<8x128xf32>
    %1054 = arith.addf %117, %1053 : vector<8x128xf32>
    %1055 = arith.mulf %1046, %1042 : vector<8x128xf32>
    %1056 = arith.addf %67, %1055 : vector<8x128xf32>
    %1057 = arith.mulf %1056, %1009 : vector<8x128xf32>
    %1058 = vector.broadcast %937 : f32 to vector<8x128xf32>
    %1059 = arith.mulf %1057, %1058 : vector<8x128xf32>
    %1060 = arith.mulf %1050, %1042 : vector<8x128xf32>
    %1061 = arith.addf %76, %1060 : vector<8x128xf32>
    %1062 = arith.mulf %1061, %1009 : vector<8x128xf32>
    %1063 = vector.broadcast %938 : f32 to vector<8x128xf32>
    %1064 = arith.mulf %1062, %1063 : vector<8x128xf32>
    %1065 = arith.mulf %1054, %1042 : vector<8x128xf32>
    %1066 = arith.addf %85, %1065 : vector<8x128xf32>
    %1067 = arith.mulf %1066, %1009 : vector<8x128xf32>
    %1068 = vector.broadcast %939 : f32 to vector<8x128xf32>
    %1069 = arith.mulf %1067, %1068 : vector<8x128xf32>
    %cst_224 = arith.constant 0.000000e+00 : f32
    %1070 = vector.broadcast %cst_224 : f32 to vector<8x128xf32>
    %1071 = arith.maximumf %1059, %1070 : vector<8x128xf32>
    %cst_225 = arith.constant 0.000000e+00 : f32
    %1072 = vector.broadcast %cst_225 : f32 to vector<8x128xf32>
    %1073 = arith.maximumf %1064, %1072 : vector<8x128xf32>
    %cst_226 = arith.constant 0.000000e+00 : f32
    %1074 = vector.broadcast %cst_226 : f32 to vector<8x128xf32>
    %1075 = arith.maximumf %1069, %1074 : vector<8x128xf32>
    %1076 = arith.mulf %135, %953 : vector<8x128xf32>
    %1077 = arith.mulf %136, %954 : vector<8x128xf32>
    %1078 = arith.addf %1076, %1077 : vector<8x128xf32>
    %1079 = arith.mulf %137, %956 : vector<8x128xf32>
    %1080 = arith.addf %1078, %1079 : vector<8x128xf32>
    %cst_227 = arith.constant 9.99999974E-5 : f32
    %1081 = vector.broadcast %cst_227 : f32 to vector<8x128xf32>
    %1082 = arith.maximumf %1080, %1081 : vector<8x128xf32>
    %1083 = arith.mulf %135, %970 : vector<8x128xf32>
    %1084 = arith.mulf %136, %971 : vector<8x128xf32>
    %1085 = arith.addf %1083, %1084 : vector<8x128xf32>
    %1086 = arith.mulf %137, %973 : vector<8x128xf32>
    %1087 = arith.addf %1085, %1086 : vector<8x128xf32>
    %cst_228 = arith.constant 9.99999974E-5 : f32
    %1088 = vector.broadcast %cst_228 : f32 to vector<8x128xf32>
    %1089 = arith.maximumf %1087, %1088 : vector<8x128xf32>
    %1090 = arith.mulf %135, %985 : vector<8x128xf32>
    %1091 = arith.mulf %136, %986 : vector<8x128xf32>
    %1092 = arith.addf %1090, %1091 : vector<8x128xf32>
    %1093 = arith.mulf %137, %987 : vector<8x128xf32>
    %1094 = arith.addf %1092, %1093 : vector<8x128xf32>
    %cst_229 = arith.constant 9.99999974E-5 : f32
    %1095 = vector.broadcast %cst_229 : f32 to vector<8x128xf32>
    %1096 = arith.maximumf %1094, %1095 : vector<8x128xf32>
    %1097 = arith.mulf %1096, %1096 : vector<8x128xf32>
    %cst_230 = arith.constant 1.000000e+00 : f32
    %1098 = vector.broadcast %cst_230 : f32 to vector<8x128xf32>
    %1099 = arith.subf %173, %1098 : vector<8x128xf32>
    %1100 = arith.mulf %1097, %1099 : vector<8x128xf32>
    %cst_231 = arith.constant 1.000000e+00 : f32
    %1101 = vector.broadcast %cst_231 : f32 to vector<8x128xf32>
    %1102 = arith.addf %1100, %1101 : vector<8x128xf32>
    %cst_232 = arith.constant 1.000000e+00 : f32
    %1103 = vector.broadcast %cst_232 : f32 to vector<8x128xf32>
    %1104 = arith.subf %1103, %175 : vector<8x128xf32>
    %1105 = arith.mulf %1082, %1104 : vector<8x128xf32>
    %1106 = arith.addf %1105, %175 : vector<8x128xf32>
    %1107 = arith.mulf %1089, %1104 : vector<8x128xf32>
    %1108 = arith.addf %1107, %175 : vector<8x128xf32>
    %cst_233 = arith.constant 12.566371 : f32
    %1109 = vector.broadcast %cst_233 : f32 to vector<8x128xf32>
    %1110 = arith.mulf %1109, %1102 : vector<8x128xf32>
    %1111 = arith.mulf %1110, %1102 : vector<8x128xf32>
    %1112 = arith.mulf %1111, %1106 : vector<8x128xf32>
    %1113 = arith.mulf %1112, %1108 : vector<8x128xf32>
    %1114 = tpu.reciprocal %1113 {approx = true} : vector<8x128xf32> -> vector<8x128xf32>
    %1115 = arith.mulf %173, %1114 : vector<8x128xf32>
    %cst_234 = arith.constant 1.000000e+00 : f32
    %1116 = vector.broadcast %cst_234 : f32 to vector<8x128xf32>
    %1117 = arith.subf %1116, %182 : vector<8x128xf32>
    %1118 = arith.mulf %1117, %1002 : vector<8x128xf32>
    %1119 = arith.addf %182, %1118 : vector<8x128xf32>
    %cst_235 = arith.constant 1.000000e+00 : f32
    %1120 = vector.broadcast %cst_235 : f32 to vector<8x128xf32>
    %1121 = arith.subf %1120, %189 : vector<8x128xf32>
    %1122 = arith.mulf %1121, %1002 : vector<8x128xf32>
    %1123 = arith.addf %189, %1122 : vector<8x128xf32>
    %cst_236 = arith.constant 1.000000e+00 : f32
    %1124 = vector.broadcast %cst_236 : f32 to vector<8x128xf32>
    %1125 = arith.subf %1124, %196 : vector<8x128xf32>
    %1126 = arith.mulf %1125, %1002 : vector<8x128xf32>
    %1127 = arith.addf %196, %1126 : vector<8x128xf32>
    %1128 = arith.mulf %1119, %1115 : vector<8x128xf32>
    %1129 = arith.addf %146, %1128 : vector<8x128xf32>
    %1130 = arith.mulf %1129, %1082 : vector<8x128xf32>
    %1131 = vector.broadcast %937 : f32 to vector<8x128xf32>
    %1132 = arith.mulf %1130, %1131 : vector<8x128xf32>
    %1133 = arith.mulf %1123, %1115 : vector<8x128xf32>
    %1134 = arith.addf %155, %1133 : vector<8x128xf32>
    %1135 = arith.mulf %1134, %1082 : vector<8x128xf32>
    %1136 = vector.broadcast %938 : f32 to vector<8x128xf32>
    %1137 = arith.mulf %1135, %1136 : vector<8x128xf32>
    %1138 = arith.mulf %1127, %1115 : vector<8x128xf32>
    %1139 = arith.addf %164, %1138 : vector<8x128xf32>
    %1140 = arith.mulf %1139, %1082 : vector<8x128xf32>
    %1141 = vector.broadcast %939 : f32 to vector<8x128xf32>
    %1142 = arith.mulf %1140, %1141 : vector<8x128xf32>
    %cst_237 = arith.constant 0.000000e+00 : f32
    %1143 = vector.broadcast %cst_237 : f32 to vector<8x128xf32>
    %1144 = arith.maximumf %1132, %1143 : vector<8x128xf32>
    %cst_238 = arith.constant 0.000000e+00 : f32
    %1145 = vector.broadcast %cst_238 : f32 to vector<8x128xf32>
    %1146 = arith.maximumf %1137, %1145 : vector<8x128xf32>
    %cst_239 = arith.constant 0.000000e+00 : f32
    %1147 = vector.broadcast %cst_239 : f32 to vector<8x128xf32>
    %1148 = arith.maximumf %1142, %1147 : vector<8x128xf32>
    %cst_240 = arith.constant 9.99999974E-6 : f32
    %1149 = vector.broadcast %cst_240 : f32 to vector<8x128xf32>
    %1150 = arith.addf %1071, %1149 : vector<8x128xf32>
    %1151 = math.log %1150 : vector<8x128xf32>
    %cst_241 = arith.constant 9.99999974E-6 : f32
    %1152 = vector.broadcast %cst_241 : f32 to vector<8x128xf32>
    %1153 = arith.addf %1144, %1152 : vector<8x128xf32>
    %1154 = math.log %1153 : vector<8x128xf32>
    %1155 = arith.subf %1151, %1154 : vector<8x128xf32>
    %1156 = math.absf %1155 : vector<8x128xf32>
    %1157 = arith.addf %930, %1156 : vector<8x128xf32>
    %cst_242 = arith.constant 9.99999974E-6 : f32
    %1158 = vector.broadcast %cst_242 : f32 to vector<8x128xf32>
    %1159 = arith.addf %1073, %1158 : vector<8x128xf32>
    %1160 = math.log %1159 : vector<8x128xf32>
    %cst_243 = arith.constant 9.99999974E-6 : f32
    %1161 = vector.broadcast %cst_243 : f32 to vector<8x128xf32>
    %1162 = arith.addf %1146, %1161 : vector<8x128xf32>
    %1163 = math.log %1162 : vector<8x128xf32>
    %1164 = arith.subf %1160, %1163 : vector<8x128xf32>
    %1165 = math.absf %1164 : vector<8x128xf32>
    %1166 = arith.addf %1157, %1165 : vector<8x128xf32>
    %cst_244 = arith.constant 9.99999974E-6 : f32
    %1167 = vector.broadcast %cst_244 : f32 to vector<8x128xf32>
    %1168 = arith.addf %1075, %1167 : vector<8x128xf32>
    %1169 = math.log %1168 : vector<8x128xf32>
    %cst_245 = arith.constant 9.99999974E-6 : f32
    %1170 = vector.broadcast %cst_245 : f32 to vector<8x128xf32>
    %1171 = arith.addf %1148, %1170 : vector<8x128xf32>
    %1172 = math.log %1171 : vector<8x128xf32>
    %1173 = arith.subf %1169, %1172 : vector<8x128xf32>
    %1174 = math.absf %1173 : vector<8x128xf32>
    %1175 = arith.addf %1166, %1174 : vector<8x128xf32>
    %c36 = arith.constant 36 : index
    %1176 = memref.load %arg1[%c36] : memref<81xf32, #tpu.memory_space<smem>>
    %c37 = arith.constant 37 : index
    %1177 = memref.load %arg1[%c37] : memref<81xf32, #tpu.memory_space<smem>>
    %c38 = arith.constant 38 : index
    %1178 = memref.load %arg1[%c38] : memref<81xf32, #tpu.memory_space<smem>>
    %c39 = arith.constant 39 : index
    %1179 = memref.load %arg1[%c39] : memref<81xf32, #tpu.memory_space<smem>>
    %c40 = arith.constant 40 : index
    %1180 = memref.load %arg1[%c40] : memref<81xf32, #tpu.memory_space<smem>>
    %c41 = arith.constant 41 : index
    %1181 = memref.load %arg1[%c41] : memref<81xf32, #tpu.memory_space<smem>>
    %c42 = arith.constant 42 : index
    %1182 = memref.load %arg1[%c42] : memref<81xf32, #tpu.memory_space<smem>>
    %c43 = arith.constant 43 : index
    %1183 = memref.load %arg1[%c43] : memref<81xf32, #tpu.memory_space<smem>>
    %c44 = arith.constant 44 : index
    %1184 = memref.load %arg1[%c44] : memref<81xf32, #tpu.memory_space<smem>>
    %1185 = vector.broadcast %1179 : f32 to vector<8x128xf32>
    %1186 = arith.subf %1185, %34 : vector<8x128xf32>
    %1187 = vector.broadcast %1180 : f32 to vector<8x128xf32>
    %1188 = arith.subf %1187, %38 : vector<8x128xf32>
    %1189 = arith.mulf %1186, %1186 : vector<8x128xf32>
    %1190 = arith.mulf %1188, %1188 : vector<8x128xf32>
    %1191 = arith.addf %1189, %1190 : vector<8x128xf32>
    %1192 = arith.mulf %1181, %1181 : f32
    %1193 = vector.broadcast %1192 : f32 to vector<8x128xf32>
    %1194 = arith.addf %1191, %1193 : vector<8x128xf32>
    %cst_246 = arith.constant 9.99999996E-13 : f32
    %1195 = vector.broadcast %cst_246 : f32 to vector<8x128xf32>
    %1196 = arith.addf %1194, %1195 : vector<8x128xf32>
    %1197 = math.rsqrt %1196 : vector<8x128xf32>
    %1198 = arith.mulf %1186, %1197 : vector<8x128xf32>
    %1199 = arith.mulf %1188, %1197 : vector<8x128xf32>
    %1200 = vector.broadcast %1181 : f32 to vector<8x128xf32>
    %1201 = arith.mulf %1200, %1197 : vector<8x128xf32>
    %1202 = vector.broadcast %1176 : f32 to vector<8x128xf32>
    %1203 = arith.subf %1202, %34 : vector<8x128xf32>
    %1204 = vector.broadcast %1177 : f32 to vector<8x128xf32>
    %1205 = arith.subf %1204, %38 : vector<8x128xf32>
    %1206 = arith.mulf %1203, %1203 : vector<8x128xf32>
    %1207 = arith.mulf %1205, %1205 : vector<8x128xf32>
    %1208 = arith.addf %1206, %1207 : vector<8x128xf32>
    %1209 = arith.mulf %1178, %1178 : f32
    %1210 = vector.broadcast %1209 : f32 to vector<8x128xf32>
    %1211 = arith.addf %1208, %1210 : vector<8x128xf32>
    %cst_247 = arith.constant 9.99999996E-13 : f32
    %1212 = vector.broadcast %cst_247 : f32 to vector<8x128xf32>
    %1213 = arith.addf %1211, %1212 : vector<8x128xf32>
    %1214 = math.rsqrt %1213 : vector<8x128xf32>
    %1215 = arith.mulf %1203, %1214 : vector<8x128xf32>
    %1216 = arith.mulf %1205, %1214 : vector<8x128xf32>
    %1217 = vector.broadcast %1178 : f32 to vector<8x128xf32>
    %1218 = arith.mulf %1217, %1214 : vector<8x128xf32>
    %1219 = arith.addf %1198, %1215 : vector<8x128xf32>
    %1220 = arith.addf %1199, %1216 : vector<8x128xf32>
    %1221 = arith.addf %1201, %1218 : vector<8x128xf32>
    %1222 = arith.mulf %1219, %1219 : vector<8x128xf32>
    %1223 = arith.mulf %1220, %1220 : vector<8x128xf32>
    %1224 = arith.addf %1222, %1223 : vector<8x128xf32>
    %1225 = arith.mulf %1221, %1221 : vector<8x128xf32>
    %1226 = arith.addf %1224, %1225 : vector<8x128xf32>
    %cst_248 = arith.constant 9.99999996E-13 : f32
    %1227 = vector.broadcast %cst_248 : f32 to vector<8x128xf32>
    %1228 = arith.addf %1226, %1227 : vector<8x128xf32>
    %1229 = math.rsqrt %1228 : vector<8x128xf32>
    %1230 = arith.mulf %1219, %1229 : vector<8x128xf32>
    %1231 = arith.mulf %1220, %1229 : vector<8x128xf32>
    %1232 = arith.mulf %1221, %1229 : vector<8x128xf32>
    %1233 = arith.mulf %1215, %1230 : vector<8x128xf32>
    %1234 = arith.mulf %1216, %1231 : vector<8x128xf32>
    %1235 = arith.addf %1233, %1234 : vector<8x128xf32>
    %1236 = arith.mulf %1218, %1232 : vector<8x128xf32>
    %1237 = arith.addf %1235, %1236 : vector<8x128xf32>
    %cst_249 = arith.constant 9.99999974E-5 : f32
    %1238 = vector.broadcast %cst_249 : f32 to vector<8x128xf32>
    %1239 = arith.maximumf %1237, %1238 : vector<8x128xf32>
    %cst_250 = arith.constant -5.554730e+00 : f32
    %1240 = vector.broadcast %cst_250 : f32 to vector<8x128xf32>
    %1241 = arith.mulf %1240, %1239 : vector<8x128xf32>
    %cst_251 = arith.constant 6.983160e+00 : f32
    %1242 = vector.broadcast %cst_251 : f32 to vector<8x128xf32>
    %1243 = arith.subf %1241, %1242 : vector<8x128xf32>
    %1244 = arith.mulf %1243, %1239 : vector<8x128xf32>
    %cst_252 = arith.constant 0.693147182 : f32
    %1245 = vector.broadcast %cst_252 : f32 to vector<8x128xf32>
    %1246 = arith.mulf %1244, %1245 : vector<8x128xf32>
    %1247 = math.exp %1246 : vector<8x128xf32>
    %1248 = arith.mulf %56, %1198 : vector<8x128xf32>
    %1249 = arith.mulf %57, %1199 : vector<8x128xf32>
    %1250 = arith.addf %1248, %1249 : vector<8x128xf32>
    %1251 = arith.mulf %58, %1201 : vector<8x128xf32>
    %1252 = arith.addf %1250, %1251 : vector<8x128xf32>
    %cst_253 = arith.constant 9.99999974E-5 : f32
    %1253 = vector.broadcast %cst_253 : f32 to vector<8x128xf32>
    %1254 = arith.maximumf %1252, %1253 : vector<8x128xf32>
    %1255 = arith.mulf %56, %1215 : vector<8x128xf32>
    %1256 = arith.mulf %57, %1216 : vector<8x128xf32>
    %1257 = arith.addf %1255, %1256 : vector<8x128xf32>
    %1258 = arith.mulf %58, %1218 : vector<8x128xf32>
    %1259 = arith.addf %1257, %1258 : vector<8x128xf32>
    %cst_254 = arith.constant 9.99999974E-5 : f32
    %1260 = vector.broadcast %cst_254 : f32 to vector<8x128xf32>
    %1261 = arith.maximumf %1259, %1260 : vector<8x128xf32>
    %1262 = arith.mulf %56, %1230 : vector<8x128xf32>
    %1263 = arith.mulf %57, %1231 : vector<8x128xf32>
    %1264 = arith.addf %1262, %1263 : vector<8x128xf32>
    %1265 = arith.mulf %58, %1232 : vector<8x128xf32>
    %1266 = arith.addf %1264, %1265 : vector<8x128xf32>
    %cst_255 = arith.constant 9.99999974E-5 : f32
    %1267 = vector.broadcast %cst_255 : f32 to vector<8x128xf32>
    %1268 = arith.maximumf %1266, %1267 : vector<8x128xf32>
    %1269 = arith.mulf %1268, %1268 : vector<8x128xf32>
    %cst_256 = arith.constant 1.000000e+00 : f32
    %1270 = vector.broadcast %cst_256 : f32 to vector<8x128xf32>
    %1271 = arith.subf %94, %1270 : vector<8x128xf32>
    %1272 = arith.mulf %1269, %1271 : vector<8x128xf32>
    %cst_257 = arith.constant 1.000000e+00 : f32
    %1273 = vector.broadcast %cst_257 : f32 to vector<8x128xf32>
    %1274 = arith.addf %1272, %1273 : vector<8x128xf32>
    %cst_258 = arith.constant 1.000000e+00 : f32
    %1275 = vector.broadcast %cst_258 : f32 to vector<8x128xf32>
    %1276 = arith.subf %1275, %96 : vector<8x128xf32>
    %1277 = arith.mulf %1254, %1276 : vector<8x128xf32>
    %1278 = arith.addf %1277, %96 : vector<8x128xf32>
    %1279 = arith.mulf %1261, %1276 : vector<8x128xf32>
    %1280 = arith.addf %1279, %96 : vector<8x128xf32>
    %cst_259 = arith.constant 12.566371 : f32
    %1281 = vector.broadcast %cst_259 : f32 to vector<8x128xf32>
    %1282 = arith.mulf %1281, %1274 : vector<8x128xf32>
    %1283 = arith.mulf %1282, %1274 : vector<8x128xf32>
    %1284 = arith.mulf %1283, %1278 : vector<8x128xf32>
    %1285 = arith.mulf %1284, %1280 : vector<8x128xf32>
    %1286 = tpu.reciprocal %1285 {approx = true} : vector<8x128xf32> -> vector<8x128xf32>
    %1287 = arith.mulf %94, %1286 : vector<8x128xf32>
    %cst_260 = arith.constant 1.000000e+00 : f32
    %1288 = vector.broadcast %cst_260 : f32 to vector<8x128xf32>
    %1289 = arith.subf %1288, %103 : vector<8x128xf32>
    %1290 = arith.mulf %1289, %1247 : vector<8x128xf32>
    %1291 = arith.addf %103, %1290 : vector<8x128xf32>
    %cst_261 = arith.constant 1.000000e+00 : f32
    %1292 = vector.broadcast %cst_261 : f32 to vector<8x128xf32>
    %1293 = arith.subf %1292, %110 : vector<8x128xf32>
    %1294 = arith.mulf %1293, %1247 : vector<8x128xf32>
    %1295 = arith.addf %110, %1294 : vector<8x128xf32>
    %cst_262 = arith.constant 1.000000e+00 : f32
    %1296 = vector.broadcast %cst_262 : f32 to vector<8x128xf32>
    %1297 = arith.subf %1296, %117 : vector<8x128xf32>
    %1298 = arith.mulf %1297, %1247 : vector<8x128xf32>
    %1299 = arith.addf %117, %1298 : vector<8x128xf32>
    %1300 = arith.mulf %1291, %1287 : vector<8x128xf32>
    %1301 = arith.addf %67, %1300 : vector<8x128xf32>
    %1302 = arith.mulf %1301, %1254 : vector<8x128xf32>
    %1303 = vector.broadcast %1182 : f32 to vector<8x128xf32>
    %1304 = arith.mulf %1302, %1303 : vector<8x128xf32>
    %1305 = arith.mulf %1295, %1287 : vector<8x128xf32>
    %1306 = arith.addf %76, %1305 : vector<8x128xf32>
    %1307 = arith.mulf %1306, %1254 : vector<8x128xf32>
    %1308 = vector.broadcast %1183 : f32 to vector<8x128xf32>
    %1309 = arith.mulf %1307, %1308 : vector<8x128xf32>
    %1310 = arith.mulf %1299, %1287 : vector<8x128xf32>
    %1311 = arith.addf %85, %1310 : vector<8x128xf32>
    %1312 = arith.mulf %1311, %1254 : vector<8x128xf32>
    %1313 = vector.broadcast %1184 : f32 to vector<8x128xf32>
    %1314 = arith.mulf %1312, %1313 : vector<8x128xf32>
    %cst_263 = arith.constant 0.000000e+00 : f32
    %1315 = vector.broadcast %cst_263 : f32 to vector<8x128xf32>
    %1316 = arith.maximumf %1304, %1315 : vector<8x128xf32>
    %cst_264 = arith.constant 0.000000e+00 : f32
    %1317 = vector.broadcast %cst_264 : f32 to vector<8x128xf32>
    %1318 = arith.maximumf %1309, %1317 : vector<8x128xf32>
    %cst_265 = arith.constant 0.000000e+00 : f32
    %1319 = vector.broadcast %cst_265 : f32 to vector<8x128xf32>
    %1320 = arith.maximumf %1314, %1319 : vector<8x128xf32>
    %1321 = arith.mulf %135, %1198 : vector<8x128xf32>
    %1322 = arith.mulf %136, %1199 : vector<8x128xf32>
    %1323 = arith.addf %1321, %1322 : vector<8x128xf32>
    %1324 = arith.mulf %137, %1201 : vector<8x128xf32>
    %1325 = arith.addf %1323, %1324 : vector<8x128xf32>
    %cst_266 = arith.constant 9.99999974E-5 : f32
    %1326 = vector.broadcast %cst_266 : f32 to vector<8x128xf32>
    %1327 = arith.maximumf %1325, %1326 : vector<8x128xf32>
    %1328 = arith.mulf %135, %1215 : vector<8x128xf32>
    %1329 = arith.mulf %136, %1216 : vector<8x128xf32>
    %1330 = arith.addf %1328, %1329 : vector<8x128xf32>
    %1331 = arith.mulf %137, %1218 : vector<8x128xf32>
    %1332 = arith.addf %1330, %1331 : vector<8x128xf32>
    %cst_267 = arith.constant 9.99999974E-5 : f32
    %1333 = vector.broadcast %cst_267 : f32 to vector<8x128xf32>
    %1334 = arith.maximumf %1332, %1333 : vector<8x128xf32>
    %1335 = arith.mulf %135, %1230 : vector<8x128xf32>
    %1336 = arith.mulf %136, %1231 : vector<8x128xf32>
    %1337 = arith.addf %1335, %1336 : vector<8x128xf32>
    %1338 = arith.mulf %137, %1232 : vector<8x128xf32>
    %1339 = arith.addf %1337, %1338 : vector<8x128xf32>
    %cst_268 = arith.constant 9.99999974E-5 : f32
    %1340 = vector.broadcast %cst_268 : f32 to vector<8x128xf32>
    %1341 = arith.maximumf %1339, %1340 : vector<8x128xf32>
    %1342 = arith.mulf %1341, %1341 : vector<8x128xf32>
    %cst_269 = arith.constant 1.000000e+00 : f32
    %1343 = vector.broadcast %cst_269 : f32 to vector<8x128xf32>
    %1344 = arith.subf %173, %1343 : vector<8x128xf32>
    %1345 = arith.mulf %1342, %1344 : vector<8x128xf32>
    %cst_270 = arith.constant 1.000000e+00 : f32
    %1346 = vector.broadcast %cst_270 : f32 to vector<8x128xf32>
    %1347 = arith.addf %1345, %1346 : vector<8x128xf32>
    %cst_271 = arith.constant 1.000000e+00 : f32
    %1348 = vector.broadcast %cst_271 : f32 to vector<8x128xf32>
    %1349 = arith.subf %1348, %175 : vector<8x128xf32>
    %1350 = arith.mulf %1327, %1349 : vector<8x128xf32>
    %1351 = arith.addf %1350, %175 : vector<8x128xf32>
    %1352 = arith.mulf %1334, %1349 : vector<8x128xf32>
    %1353 = arith.addf %1352, %175 : vector<8x128xf32>
    %cst_272 = arith.constant 12.566371 : f32
    %1354 = vector.broadcast %cst_272 : f32 to vector<8x128xf32>
    %1355 = arith.mulf %1354, %1347 : vector<8x128xf32>
    %1356 = arith.mulf %1355, %1347 : vector<8x128xf32>
    %1357 = arith.mulf %1356, %1351 : vector<8x128xf32>
    %1358 = arith.mulf %1357, %1353 : vector<8x128xf32>
    %1359 = tpu.reciprocal %1358 {approx = true} : vector<8x128xf32> -> vector<8x128xf32>
    %1360 = arith.mulf %173, %1359 : vector<8x128xf32>
    %cst_273 = arith.constant 1.000000e+00 : f32
    %1361 = vector.broadcast %cst_273 : f32 to vector<8x128xf32>
    %1362 = arith.subf %1361, %182 : vector<8x128xf32>
    %1363 = arith.mulf %1362, %1247 : vector<8x128xf32>
    %1364 = arith.addf %182, %1363 : vector<8x128xf32>
    %cst_274 = arith.constant 1.000000e+00 : f32
    %1365 = vector.broadcast %cst_274 : f32 to vector<8x128xf32>
    %1366 = arith.subf %1365, %189 : vector<8x128xf32>
    %1367 = arith.mulf %1366, %1247 : vector<8x128xf32>
    %1368 = arith.addf %189, %1367 : vector<8x128xf32>
    %cst_275 = arith.constant 1.000000e+00 : f32
    %1369 = vector.broadcast %cst_275 : f32 to vector<8x128xf32>
    %1370 = arith.subf %1369, %196 : vector<8x128xf32>
    %1371 = arith.mulf %1370, %1247 : vector<8x128xf32>
    %1372 = arith.addf %196, %1371 : vector<8x128xf32>
    %1373 = arith.mulf %1364, %1360 : vector<8x128xf32>
    %1374 = arith.addf %146, %1373 : vector<8x128xf32>
    %1375 = arith.mulf %1374, %1327 : vector<8x128xf32>
    %1376 = vector.broadcast %1182 : f32 to vector<8x128xf32>
    %1377 = arith.mulf %1375, %1376 : vector<8x128xf32>
    %1378 = arith.mulf %1368, %1360 : vector<8x128xf32>
    %1379 = arith.addf %155, %1378 : vector<8x128xf32>
    %1380 = arith.mulf %1379, %1327 : vector<8x128xf32>
    %1381 = vector.broadcast %1183 : f32 to vector<8x128xf32>
    %1382 = arith.mulf %1380, %1381 : vector<8x128xf32>
    %1383 = arith.mulf %1372, %1360 : vector<8x128xf32>
    %1384 = arith.addf %164, %1383 : vector<8x128xf32>
    %1385 = arith.mulf %1384, %1327 : vector<8x128xf32>
    %1386 = vector.broadcast %1184 : f32 to vector<8x128xf32>
    %1387 = arith.mulf %1385, %1386 : vector<8x128xf32>
    %cst_276 = arith.constant 0.000000e+00 : f32
    %1388 = vector.broadcast %cst_276 : f32 to vector<8x128xf32>
    %1389 = arith.maximumf %1377, %1388 : vector<8x128xf32>
    %cst_277 = arith.constant 0.000000e+00 : f32
    %1390 = vector.broadcast %cst_277 : f32 to vector<8x128xf32>
    %1391 = arith.maximumf %1382, %1390 : vector<8x128xf32>
    %cst_278 = arith.constant 0.000000e+00 : f32
    %1392 = vector.broadcast %cst_278 : f32 to vector<8x128xf32>
    %1393 = arith.maximumf %1387, %1392 : vector<8x128xf32>
    %cst_279 = arith.constant 9.99999974E-6 : f32
    %1394 = vector.broadcast %cst_279 : f32 to vector<8x128xf32>
    %1395 = arith.addf %1316, %1394 : vector<8x128xf32>
    %1396 = math.log %1395 : vector<8x128xf32>
    %cst_280 = arith.constant 9.99999974E-6 : f32
    %1397 = vector.broadcast %cst_280 : f32 to vector<8x128xf32>
    %1398 = arith.addf %1389, %1397 : vector<8x128xf32>
    %1399 = math.log %1398 : vector<8x128xf32>
    %1400 = arith.subf %1396, %1399 : vector<8x128xf32>
    %1401 = math.absf %1400 : vector<8x128xf32>
    %1402 = arith.addf %1175, %1401 : vector<8x128xf32>
    %cst_281 = arith.constant 9.99999974E-6 : f32
    %1403 = vector.broadcast %cst_281 : f32 to vector<8x128xf32>
    %1404 = arith.addf %1318, %1403 : vector<8x128xf32>
    %1405 = math.log %1404 : vector<8x128xf32>
    %cst_282 = arith.constant 9.99999974E-6 : f32
    %1406 = vector.broadcast %cst_282 : f32 to vector<8x128xf32>
    %1407 = arith.addf %1391, %1406 : vector<8x128xf32>
    %1408 = math.log %1407 : vector<8x128xf32>
    %1409 = arith.subf %1405, %1408 : vector<8x128xf32>
    %1410 = math.absf %1409 : vector<8x128xf32>
    %1411 = arith.addf %1402, %1410 : vector<8x128xf32>
    %cst_283 = arith.constant 9.99999974E-6 : f32
    %1412 = vector.broadcast %cst_283 : f32 to vector<8x128xf32>
    %1413 = arith.addf %1320, %1412 : vector<8x128xf32>
    %1414 = math.log %1413 : vector<8x128xf32>
    %cst_284 = arith.constant 9.99999974E-6 : f32
    %1415 = vector.broadcast %cst_284 : f32 to vector<8x128xf32>
    %1416 = arith.addf %1393, %1415 : vector<8x128xf32>
    %1417 = math.log %1416 : vector<8x128xf32>
    %1418 = arith.subf %1414, %1417 : vector<8x128xf32>
    %1419 = math.absf %1418 : vector<8x128xf32>
    %1420 = arith.addf %1411, %1419 : vector<8x128xf32>
    %c45 = arith.constant 45 : index
    %1421 = memref.load %arg1[%c45] : memref<81xf32, #tpu.memory_space<smem>>
    %c46 = arith.constant 46 : index
    %1422 = memref.load %arg1[%c46] : memref<81xf32, #tpu.memory_space<smem>>
    %c47 = arith.constant 47 : index
    %1423 = memref.load %arg1[%c47] : memref<81xf32, #tpu.memory_space<smem>>
    %c48 = arith.constant 48 : index
    %1424 = memref.load %arg1[%c48] : memref<81xf32, #tpu.memory_space<smem>>
    %c49 = arith.constant 49 : index
    %1425 = memref.load %arg1[%c49] : memref<81xf32, #tpu.memory_space<smem>>
    %c50 = arith.constant 50 : index
    %1426 = memref.load %arg1[%c50] : memref<81xf32, #tpu.memory_space<smem>>
    %c51 = arith.constant 51 : index
    %1427 = memref.load %arg1[%c51] : memref<81xf32, #tpu.memory_space<smem>>
    %c52 = arith.constant 52 : index
    %1428 = memref.load %arg1[%c52] : memref<81xf32, #tpu.memory_space<smem>>
    %c53 = arith.constant 53 : index
    %1429 = memref.load %arg1[%c53] : memref<81xf32, #tpu.memory_space<smem>>
    %1430 = vector.broadcast %1424 : f32 to vector<8x128xf32>
    %1431 = arith.subf %1430, %34 : vector<8x128xf32>
    %1432 = vector.broadcast %1425 : f32 to vector<8x128xf32>
    %1433 = arith.subf %1432, %38 : vector<8x128xf32>
    %1434 = arith.mulf %1431, %1431 : vector<8x128xf32>
    %1435 = arith.mulf %1433, %1433 : vector<8x128xf32>
    %1436 = arith.addf %1434, %1435 : vector<8x128xf32>
    %1437 = arith.mulf %1426, %1426 : f32
    %1438 = vector.broadcast %1437 : f32 to vector<8x128xf32>
    %1439 = arith.addf %1436, %1438 : vector<8x128xf32>
    %cst_285 = arith.constant 9.99999996E-13 : f32
    %1440 = vector.broadcast %cst_285 : f32 to vector<8x128xf32>
    %1441 = arith.addf %1439, %1440 : vector<8x128xf32>
    %1442 = math.rsqrt %1441 : vector<8x128xf32>
    %1443 = arith.mulf %1431, %1442 : vector<8x128xf32>
    %1444 = arith.mulf %1433, %1442 : vector<8x128xf32>
    %1445 = vector.broadcast %1426 : f32 to vector<8x128xf32>
    %1446 = arith.mulf %1445, %1442 : vector<8x128xf32>
    %1447 = vector.broadcast %1421 : f32 to vector<8x128xf32>
    %1448 = arith.subf %1447, %34 : vector<8x128xf32>
    %1449 = vector.broadcast %1422 : f32 to vector<8x128xf32>
    %1450 = arith.subf %1449, %38 : vector<8x128xf32>
    %1451 = arith.mulf %1448, %1448 : vector<8x128xf32>
    %1452 = arith.mulf %1450, %1450 : vector<8x128xf32>
    %1453 = arith.addf %1451, %1452 : vector<8x128xf32>
    %1454 = arith.mulf %1423, %1423 : f32
    %1455 = vector.broadcast %1454 : f32 to vector<8x128xf32>
    %1456 = arith.addf %1453, %1455 : vector<8x128xf32>
    %cst_286 = arith.constant 9.99999996E-13 : f32
    %1457 = vector.broadcast %cst_286 : f32 to vector<8x128xf32>
    %1458 = arith.addf %1456, %1457 : vector<8x128xf32>
    %1459 = math.rsqrt %1458 : vector<8x128xf32>
    %1460 = arith.mulf %1448, %1459 : vector<8x128xf32>
    %1461 = arith.mulf %1450, %1459 : vector<8x128xf32>
    %1462 = vector.broadcast %1423 : f32 to vector<8x128xf32>
    %1463 = arith.mulf %1462, %1459 : vector<8x128xf32>
    %1464 = arith.addf %1443, %1460 : vector<8x128xf32>
    %1465 = arith.addf %1444, %1461 : vector<8x128xf32>
    %1466 = arith.addf %1446, %1463 : vector<8x128xf32>
    %1467 = arith.mulf %1464, %1464 : vector<8x128xf32>
    %1468 = arith.mulf %1465, %1465 : vector<8x128xf32>
    %1469 = arith.addf %1467, %1468 : vector<8x128xf32>
    %1470 = arith.mulf %1466, %1466 : vector<8x128xf32>
    %1471 = arith.addf %1469, %1470 : vector<8x128xf32>
    %cst_287 = arith.constant 9.99999996E-13 : f32
    %1472 = vector.broadcast %cst_287 : f32 to vector<8x128xf32>
    %1473 = arith.addf %1471, %1472 : vector<8x128xf32>
    %1474 = math.rsqrt %1473 : vector<8x128xf32>
    %1475 = arith.mulf %1464, %1474 : vector<8x128xf32>
    %1476 = arith.mulf %1465, %1474 : vector<8x128xf32>
    %1477 = arith.mulf %1466, %1474 : vector<8x128xf32>
    %1478 = arith.mulf %1460, %1475 : vector<8x128xf32>
    %1479 = arith.mulf %1461, %1476 : vector<8x128xf32>
    %1480 = arith.addf %1478, %1479 : vector<8x128xf32>
    %1481 = arith.mulf %1463, %1477 : vector<8x128xf32>
    %1482 = arith.addf %1480, %1481 : vector<8x128xf32>
    %cst_288 = arith.constant 9.99999974E-5 : f32
    %1483 = vector.broadcast %cst_288 : f32 to vector<8x128xf32>
    %1484 = arith.maximumf %1482, %1483 : vector<8x128xf32>
    %cst_289 = arith.constant -5.554730e+00 : f32
    %1485 = vector.broadcast %cst_289 : f32 to vector<8x128xf32>
    %1486 = arith.mulf %1485, %1484 : vector<8x128xf32>
    %cst_290 = arith.constant 6.983160e+00 : f32
    %1487 = vector.broadcast %cst_290 : f32 to vector<8x128xf32>
    %1488 = arith.subf %1486, %1487 : vector<8x128xf32>
    %1489 = arith.mulf %1488, %1484 : vector<8x128xf32>
    %cst_291 = arith.constant 0.693147182 : f32
    %1490 = vector.broadcast %cst_291 : f32 to vector<8x128xf32>
    %1491 = arith.mulf %1489, %1490 : vector<8x128xf32>
    %1492 = math.exp %1491 : vector<8x128xf32>
    %1493 = arith.mulf %56, %1443 : vector<8x128xf32>
    %1494 = arith.mulf %57, %1444 : vector<8x128xf32>
    %1495 = arith.addf %1493, %1494 : vector<8x128xf32>
    %1496 = arith.mulf %58, %1446 : vector<8x128xf32>
    %1497 = arith.addf %1495, %1496 : vector<8x128xf32>
    %cst_292 = arith.constant 9.99999974E-5 : f32
    %1498 = vector.broadcast %cst_292 : f32 to vector<8x128xf32>
    %1499 = arith.maximumf %1497, %1498 : vector<8x128xf32>
    %1500 = arith.mulf %56, %1460 : vector<8x128xf32>
    %1501 = arith.mulf %57, %1461 : vector<8x128xf32>
    %1502 = arith.addf %1500, %1501 : vector<8x128xf32>
    %1503 = arith.mulf %58, %1463 : vector<8x128xf32>
    %1504 = arith.addf %1502, %1503 : vector<8x128xf32>
    %cst_293 = arith.constant 9.99999974E-5 : f32
    %1505 = vector.broadcast %cst_293 : f32 to vector<8x128xf32>
    %1506 = arith.maximumf %1504, %1505 : vector<8x128xf32>
    %1507 = arith.mulf %56, %1475 : vector<8x128xf32>
    %1508 = arith.mulf %57, %1476 : vector<8x128xf32>
    %1509 = arith.addf %1507, %1508 : vector<8x128xf32>
    %1510 = arith.mulf %58, %1477 : vector<8x128xf32>
    %1511 = arith.addf %1509, %1510 : vector<8x128xf32>
    %cst_294 = arith.constant 9.99999974E-5 : f32
    %1512 = vector.broadcast %cst_294 : f32 to vector<8x128xf32>
    %1513 = arith.maximumf %1511, %1512 : vector<8x128xf32>
    %1514 = arith.mulf %1513, %1513 : vector<8x128xf32>
    %cst_295 = arith.constant 1.000000e+00 : f32
    %1515 = vector.broadcast %cst_295 : f32 to vector<8x128xf32>
    %1516 = arith.subf %94, %1515 : vector<8x128xf32>
    %1517 = arith.mulf %1514, %1516 : vector<8x128xf32>
    %cst_296 = arith.constant 1.000000e+00 : f32
    %1518 = vector.broadcast %cst_296 : f32 to vector<8x128xf32>
    %1519 = arith.addf %1517, %1518 : vector<8x128xf32>
    %cst_297 = arith.constant 1.000000e+00 : f32
    %1520 = vector.broadcast %cst_297 : f32 to vector<8x128xf32>
    %1521 = arith.subf %1520, %96 : vector<8x128xf32>
    %1522 = arith.mulf %1499, %1521 : vector<8x128xf32>
    %1523 = arith.addf %1522, %96 : vector<8x128xf32>
    %1524 = arith.mulf %1506, %1521 : vector<8x128xf32>
    %1525 = arith.addf %1524, %96 : vector<8x128xf32>
    %cst_298 = arith.constant 12.566371 : f32
    %1526 = vector.broadcast %cst_298 : f32 to vector<8x128xf32>
    %1527 = arith.mulf %1526, %1519 : vector<8x128xf32>
    %1528 = arith.mulf %1527, %1519 : vector<8x128xf32>
    %1529 = arith.mulf %1528, %1523 : vector<8x128xf32>
    %1530 = arith.mulf %1529, %1525 : vector<8x128xf32>
    %1531 = tpu.reciprocal %1530 {approx = true} : vector<8x128xf32> -> vector<8x128xf32>
    %1532 = arith.mulf %94, %1531 : vector<8x128xf32>
    %cst_299 = arith.constant 1.000000e+00 : f32
    %1533 = vector.broadcast %cst_299 : f32 to vector<8x128xf32>
    %1534 = arith.subf %1533, %103 : vector<8x128xf32>
    %1535 = arith.mulf %1534, %1492 : vector<8x128xf32>
    %1536 = arith.addf %103, %1535 : vector<8x128xf32>
    %cst_300 = arith.constant 1.000000e+00 : f32
    %1537 = vector.broadcast %cst_300 : f32 to vector<8x128xf32>
    %1538 = arith.subf %1537, %110 : vector<8x128xf32>
    %1539 = arith.mulf %1538, %1492 : vector<8x128xf32>
    %1540 = arith.addf %110, %1539 : vector<8x128xf32>
    %cst_301 = arith.constant 1.000000e+00 : f32
    %1541 = vector.broadcast %cst_301 : f32 to vector<8x128xf32>
    %1542 = arith.subf %1541, %117 : vector<8x128xf32>
    %1543 = arith.mulf %1542, %1492 : vector<8x128xf32>
    %1544 = arith.addf %117, %1543 : vector<8x128xf32>
    %1545 = arith.mulf %1536, %1532 : vector<8x128xf32>
    %1546 = arith.addf %67, %1545 : vector<8x128xf32>
    %1547 = arith.mulf %1546, %1499 : vector<8x128xf32>
    %1548 = vector.broadcast %1427 : f32 to vector<8x128xf32>
    %1549 = arith.mulf %1547, %1548 : vector<8x128xf32>
    %1550 = arith.mulf %1540, %1532 : vector<8x128xf32>
    %1551 = arith.addf %76, %1550 : vector<8x128xf32>
    %1552 = arith.mulf %1551, %1499 : vector<8x128xf32>
    %1553 = vector.broadcast %1428 : f32 to vector<8x128xf32>
    %1554 = arith.mulf %1552, %1553 : vector<8x128xf32>
    %1555 = arith.mulf %1544, %1532 : vector<8x128xf32>
    %1556 = arith.addf %85, %1555 : vector<8x128xf32>
    %1557 = arith.mulf %1556, %1499 : vector<8x128xf32>
    %1558 = vector.broadcast %1429 : f32 to vector<8x128xf32>
    %1559 = arith.mulf %1557, %1558 : vector<8x128xf32>
    %cst_302 = arith.constant 0.000000e+00 : f32
    %1560 = vector.broadcast %cst_302 : f32 to vector<8x128xf32>
    %1561 = arith.maximumf %1549, %1560 : vector<8x128xf32>
    %cst_303 = arith.constant 0.000000e+00 : f32
    %1562 = vector.broadcast %cst_303 : f32 to vector<8x128xf32>
    %1563 = arith.maximumf %1554, %1562 : vector<8x128xf32>
    %cst_304 = arith.constant 0.000000e+00 : f32
    %1564 = vector.broadcast %cst_304 : f32 to vector<8x128xf32>
    %1565 = arith.maximumf %1559, %1564 : vector<8x128xf32>
    %1566 = arith.mulf %135, %1443 : vector<8x128xf32>
    %1567 = arith.mulf %136, %1444 : vector<8x128xf32>
    %1568 = arith.addf %1566, %1567 : vector<8x128xf32>
    %1569 = arith.mulf %137, %1446 : vector<8x128xf32>
    %1570 = arith.addf %1568, %1569 : vector<8x128xf32>
    %cst_305 = arith.constant 9.99999974E-5 : f32
    %1571 = vector.broadcast %cst_305 : f32 to vector<8x128xf32>
    %1572 = arith.maximumf %1570, %1571 : vector<8x128xf32>
    %1573 = arith.mulf %135, %1460 : vector<8x128xf32>
    %1574 = arith.mulf %136, %1461 : vector<8x128xf32>
    %1575 = arith.addf %1573, %1574 : vector<8x128xf32>
    %1576 = arith.mulf %137, %1463 : vector<8x128xf32>
    %1577 = arith.addf %1575, %1576 : vector<8x128xf32>
    %cst_306 = arith.constant 9.99999974E-5 : f32
    %1578 = vector.broadcast %cst_306 : f32 to vector<8x128xf32>
    %1579 = arith.maximumf %1577, %1578 : vector<8x128xf32>
    %1580 = arith.mulf %135, %1475 : vector<8x128xf32>
    %1581 = arith.mulf %136, %1476 : vector<8x128xf32>
    %1582 = arith.addf %1580, %1581 : vector<8x128xf32>
    %1583 = arith.mulf %137, %1477 : vector<8x128xf32>
    %1584 = arith.addf %1582, %1583 : vector<8x128xf32>
    %cst_307 = arith.constant 9.99999974E-5 : f32
    %1585 = vector.broadcast %cst_307 : f32 to vector<8x128xf32>
    %1586 = arith.maximumf %1584, %1585 : vector<8x128xf32>
    %1587 = arith.mulf %1586, %1586 : vector<8x128xf32>
    %cst_308 = arith.constant 1.000000e+00 : f32
    %1588 = vector.broadcast %cst_308 : f32 to vector<8x128xf32>
    %1589 = arith.subf %173, %1588 : vector<8x128xf32>
    %1590 = arith.mulf %1587, %1589 : vector<8x128xf32>
    %cst_309 = arith.constant 1.000000e+00 : f32
    %1591 = vector.broadcast %cst_309 : f32 to vector<8x128xf32>
    %1592 = arith.addf %1590, %1591 : vector<8x128xf32>
    %cst_310 = arith.constant 1.000000e+00 : f32
    %1593 = vector.broadcast %cst_310 : f32 to vector<8x128xf32>
    %1594 = arith.subf %1593, %175 : vector<8x128xf32>
    %1595 = arith.mulf %1572, %1594 : vector<8x128xf32>
    %1596 = arith.addf %1595, %175 : vector<8x128xf32>
    %1597 = arith.mulf %1579, %1594 : vector<8x128xf32>
    %1598 = arith.addf %1597, %175 : vector<8x128xf32>
    %cst_311 = arith.constant 12.566371 : f32
    %1599 = vector.broadcast %cst_311 : f32 to vector<8x128xf32>
    %1600 = arith.mulf %1599, %1592 : vector<8x128xf32>
    %1601 = arith.mulf %1600, %1592 : vector<8x128xf32>
    %1602 = arith.mulf %1601, %1596 : vector<8x128xf32>
    %1603 = arith.mulf %1602, %1598 : vector<8x128xf32>
    %1604 = tpu.reciprocal %1603 {approx = true} : vector<8x128xf32> -> vector<8x128xf32>
    %1605 = arith.mulf %173, %1604 : vector<8x128xf32>
    %cst_312 = arith.constant 1.000000e+00 : f32
    %1606 = vector.broadcast %cst_312 : f32 to vector<8x128xf32>
    %1607 = arith.subf %1606, %182 : vector<8x128xf32>
    %1608 = arith.mulf %1607, %1492 : vector<8x128xf32>
    %1609 = arith.addf %182, %1608 : vector<8x128xf32>
    %cst_313 = arith.constant 1.000000e+00 : f32
    %1610 = vector.broadcast %cst_313 : f32 to vector<8x128xf32>
    %1611 = arith.subf %1610, %189 : vector<8x128xf32>
    %1612 = arith.mulf %1611, %1492 : vector<8x128xf32>
    %1613 = arith.addf %189, %1612 : vector<8x128xf32>
    %cst_314 = arith.constant 1.000000e+00 : f32
    %1614 = vector.broadcast %cst_314 : f32 to vector<8x128xf32>
    %1615 = arith.subf %1614, %196 : vector<8x128xf32>
    %1616 = arith.mulf %1615, %1492 : vector<8x128xf32>
    %1617 = arith.addf %196, %1616 : vector<8x128xf32>
    %1618 = arith.mulf %1609, %1605 : vector<8x128xf32>
    %1619 = arith.addf %146, %1618 : vector<8x128xf32>
    %1620 = arith.mulf %1619, %1572 : vector<8x128xf32>
    %1621 = vector.broadcast %1427 : f32 to vector<8x128xf32>
    %1622 = arith.mulf %1620, %1621 : vector<8x128xf32>
    %1623 = arith.mulf %1613, %1605 : vector<8x128xf32>
    %1624 = arith.addf %155, %1623 : vector<8x128xf32>
    %1625 = arith.mulf %1624, %1572 : vector<8x128xf32>
    %1626 = vector.broadcast %1428 : f32 to vector<8x128xf32>
    %1627 = arith.mulf %1625, %1626 : vector<8x128xf32>
    %1628 = arith.mulf %1617, %1605 : vector<8x128xf32>
    %1629 = arith.addf %164, %1628 : vector<8x128xf32>
    %1630 = arith.mulf %1629, %1572 : vector<8x128xf32>
    %1631 = vector.broadcast %1429 : f32 to vector<8x128xf32>
    %1632 = arith.mulf %1630, %1631 : vector<8x128xf32>
    %cst_315 = arith.constant 0.000000e+00 : f32
    %1633 = vector.broadcast %cst_315 : f32 to vector<8x128xf32>
    %1634 = arith.maximumf %1622, %1633 : vector<8x128xf32>
    %cst_316 = arith.constant 0.000000e+00 : f32
    %1635 = vector.broadcast %cst_316 : f32 to vector<8x128xf32>
    %1636 = arith.maximumf %1627, %1635 : vector<8x128xf32>
    %cst_317 = arith.constant 0.000000e+00 : f32
    %1637 = vector.broadcast %cst_317 : f32 to vector<8x128xf32>
    %1638 = arith.maximumf %1632, %1637 : vector<8x128xf32>
    %cst_318 = arith.constant 9.99999974E-6 : f32
    %1639 = vector.broadcast %cst_318 : f32 to vector<8x128xf32>
    %1640 = arith.addf %1561, %1639 : vector<8x128xf32>
    %1641 = math.log %1640 : vector<8x128xf32>
    %cst_319 = arith.constant 9.99999974E-6 : f32
    %1642 = vector.broadcast %cst_319 : f32 to vector<8x128xf32>
    %1643 = arith.addf %1634, %1642 : vector<8x128xf32>
    %1644 = math.log %1643 : vector<8x128xf32>
    %1645 = arith.subf %1641, %1644 : vector<8x128xf32>
    %1646 = math.absf %1645 : vector<8x128xf32>
    %1647 = arith.addf %1420, %1646 : vector<8x128xf32>
    %cst_320 = arith.constant 9.99999974E-6 : f32
    %1648 = vector.broadcast %cst_320 : f32 to vector<8x128xf32>
    %1649 = arith.addf %1563, %1648 : vector<8x128xf32>
    %1650 = math.log %1649 : vector<8x128xf32>
    %cst_321 = arith.constant 9.99999974E-6 : f32
    %1651 = vector.broadcast %cst_321 : f32 to vector<8x128xf32>
    %1652 = arith.addf %1636, %1651 : vector<8x128xf32>
    %1653 = math.log %1652 : vector<8x128xf32>
    %1654 = arith.subf %1650, %1653 : vector<8x128xf32>
    %1655 = math.absf %1654 : vector<8x128xf32>
    %1656 = arith.addf %1647, %1655 : vector<8x128xf32>
    %cst_322 = arith.constant 9.99999974E-6 : f32
    %1657 = vector.broadcast %cst_322 : f32 to vector<8x128xf32>
    %1658 = arith.addf %1565, %1657 : vector<8x128xf32>
    %1659 = math.log %1658 : vector<8x128xf32>
    %cst_323 = arith.constant 9.99999974E-6 : f32
    %1660 = vector.broadcast %cst_323 : f32 to vector<8x128xf32>
    %1661 = arith.addf %1638, %1660 : vector<8x128xf32>
    %1662 = math.log %1661 : vector<8x128xf32>
    %1663 = arith.subf %1659, %1662 : vector<8x128xf32>
    %1664 = math.absf %1663 : vector<8x128xf32>
    %1665 = arith.addf %1656, %1664 : vector<8x128xf32>
    %c54 = arith.constant 54 : index
    %1666 = memref.load %arg1[%c54] : memref<81xf32, #tpu.memory_space<smem>>
    %c55 = arith.constant 55 : index
    %1667 = memref.load %arg1[%c55] : memref<81xf32, #tpu.memory_space<smem>>
    %c56 = arith.constant 56 : index
    %1668 = memref.load %arg1[%c56] : memref<81xf32, #tpu.memory_space<smem>>
    %c57 = arith.constant 57 : index
    %1669 = memref.load %arg1[%c57] : memref<81xf32, #tpu.memory_space<smem>>
    %c58 = arith.constant 58 : index
    %1670 = memref.load %arg1[%c58] : memref<81xf32, #tpu.memory_space<smem>>
    %c59 = arith.constant 59 : index
    %1671 = memref.load %arg1[%c59] : memref<81xf32, #tpu.memory_space<smem>>
    %c60 = arith.constant 60 : index
    %1672 = memref.load %arg1[%c60] : memref<81xf32, #tpu.memory_space<smem>>
    %c61 = arith.constant 61 : index
    %1673 = memref.load %arg1[%c61] : memref<81xf32, #tpu.memory_space<smem>>
    %c62 = arith.constant 62 : index
    %1674 = memref.load %arg1[%c62] : memref<81xf32, #tpu.memory_space<smem>>
    %1675 = vector.broadcast %1669 : f32 to vector<8x128xf32>
    %1676 = arith.subf %1675, %34 : vector<8x128xf32>
    %1677 = vector.broadcast %1670 : f32 to vector<8x128xf32>
    %1678 = arith.subf %1677, %38 : vector<8x128xf32>
    %1679 = arith.mulf %1676, %1676 : vector<8x128xf32>
    %1680 = arith.mulf %1678, %1678 : vector<8x128xf32>
    %1681 = arith.addf %1679, %1680 : vector<8x128xf32>
    %1682 = arith.mulf %1671, %1671 : f32
    %1683 = vector.broadcast %1682 : f32 to vector<8x128xf32>
    %1684 = arith.addf %1681, %1683 : vector<8x128xf32>
    %cst_324 = arith.constant 9.99999996E-13 : f32
    %1685 = vector.broadcast %cst_324 : f32 to vector<8x128xf32>
    %1686 = arith.addf %1684, %1685 : vector<8x128xf32>
    %1687 = math.rsqrt %1686 : vector<8x128xf32>
    %1688 = arith.mulf %1676, %1687 : vector<8x128xf32>
    %1689 = arith.mulf %1678, %1687 : vector<8x128xf32>
    %1690 = vector.broadcast %1671 : f32 to vector<8x128xf32>
    %1691 = arith.mulf %1690, %1687 : vector<8x128xf32>
    %1692 = vector.broadcast %1666 : f32 to vector<8x128xf32>
    %1693 = arith.subf %1692, %34 : vector<8x128xf32>
    %1694 = vector.broadcast %1667 : f32 to vector<8x128xf32>
    %1695 = arith.subf %1694, %38 : vector<8x128xf32>
    %1696 = arith.mulf %1693, %1693 : vector<8x128xf32>
    %1697 = arith.mulf %1695, %1695 : vector<8x128xf32>
    %1698 = arith.addf %1696, %1697 : vector<8x128xf32>
    %1699 = arith.mulf %1668, %1668 : f32
    %1700 = vector.broadcast %1699 : f32 to vector<8x128xf32>
    %1701 = arith.addf %1698, %1700 : vector<8x128xf32>
    %cst_325 = arith.constant 9.99999996E-13 : f32
    %1702 = vector.broadcast %cst_325 : f32 to vector<8x128xf32>
    %1703 = arith.addf %1701, %1702 : vector<8x128xf32>
    %1704 = math.rsqrt %1703 : vector<8x128xf32>
    %1705 = arith.mulf %1693, %1704 : vector<8x128xf32>
    %1706 = arith.mulf %1695, %1704 : vector<8x128xf32>
    %1707 = vector.broadcast %1668 : f32 to vector<8x128xf32>
    %1708 = arith.mulf %1707, %1704 : vector<8x128xf32>
    %1709 = arith.addf %1688, %1705 : vector<8x128xf32>
    %1710 = arith.addf %1689, %1706 : vector<8x128xf32>
    %1711 = arith.addf %1691, %1708 : vector<8x128xf32>
    %1712 = arith.mulf %1709, %1709 : vector<8x128xf32>
    %1713 = arith.mulf %1710, %1710 : vector<8x128xf32>
    %1714 = arith.addf %1712, %1713 : vector<8x128xf32>
    %1715 = arith.mulf %1711, %1711 : vector<8x128xf32>
    %1716 = arith.addf %1714, %1715 : vector<8x128xf32>
    %cst_326 = arith.constant 9.99999996E-13 : f32
    %1717 = vector.broadcast %cst_326 : f32 to vector<8x128xf32>
    %1718 = arith.addf %1716, %1717 : vector<8x128xf32>
    %1719 = math.rsqrt %1718 : vector<8x128xf32>
    %1720 = arith.mulf %1709, %1719 : vector<8x128xf32>
    %1721 = arith.mulf %1710, %1719 : vector<8x128xf32>
    %1722 = arith.mulf %1711, %1719 : vector<8x128xf32>
    %1723 = arith.mulf %1705, %1720 : vector<8x128xf32>
    %1724 = arith.mulf %1706, %1721 : vector<8x128xf32>
    %1725 = arith.addf %1723, %1724 : vector<8x128xf32>
    %1726 = arith.mulf %1708, %1722 : vector<8x128xf32>
    %1727 = arith.addf %1725, %1726 : vector<8x128xf32>
    %cst_327 = arith.constant 9.99999974E-5 : f32
    %1728 = vector.broadcast %cst_327 : f32 to vector<8x128xf32>
    %1729 = arith.maximumf %1727, %1728 : vector<8x128xf32>
    %cst_328 = arith.constant -5.554730e+00 : f32
    %1730 = vector.broadcast %cst_328 : f32 to vector<8x128xf32>
    %1731 = arith.mulf %1730, %1729 : vector<8x128xf32>
    %cst_329 = arith.constant 6.983160e+00 : f32
    %1732 = vector.broadcast %cst_329 : f32 to vector<8x128xf32>
    %1733 = arith.subf %1731, %1732 : vector<8x128xf32>
    %1734 = arith.mulf %1733, %1729 : vector<8x128xf32>
    %cst_330 = arith.constant 0.693147182 : f32
    %1735 = vector.broadcast %cst_330 : f32 to vector<8x128xf32>
    %1736 = arith.mulf %1734, %1735 : vector<8x128xf32>
    %1737 = math.exp %1736 : vector<8x128xf32>
    %1738 = arith.mulf %56, %1688 : vector<8x128xf32>
    %1739 = arith.mulf %57, %1689 : vector<8x128xf32>
    %1740 = arith.addf %1738, %1739 : vector<8x128xf32>
    %1741 = arith.mulf %58, %1691 : vector<8x128xf32>
    %1742 = arith.addf %1740, %1741 : vector<8x128xf32>
    %cst_331 = arith.constant 9.99999974E-5 : f32
    %1743 = vector.broadcast %cst_331 : f32 to vector<8x128xf32>
    %1744 = arith.maximumf %1742, %1743 : vector<8x128xf32>
    %1745 = arith.mulf %56, %1705 : vector<8x128xf32>
    %1746 = arith.mulf %57, %1706 : vector<8x128xf32>
    %1747 = arith.addf %1745, %1746 : vector<8x128xf32>
    %1748 = arith.mulf %58, %1708 : vector<8x128xf32>
    %1749 = arith.addf %1747, %1748 : vector<8x128xf32>
    %cst_332 = arith.constant 9.99999974E-5 : f32
    %1750 = vector.broadcast %cst_332 : f32 to vector<8x128xf32>
    %1751 = arith.maximumf %1749, %1750 : vector<8x128xf32>
    %1752 = arith.mulf %56, %1720 : vector<8x128xf32>
    %1753 = arith.mulf %57, %1721 : vector<8x128xf32>
    %1754 = arith.addf %1752, %1753 : vector<8x128xf32>
    %1755 = arith.mulf %58, %1722 : vector<8x128xf32>
    %1756 = arith.addf %1754, %1755 : vector<8x128xf32>
    %cst_333 = arith.constant 9.99999974E-5 : f32
    %1757 = vector.broadcast %cst_333 : f32 to vector<8x128xf32>
    %1758 = arith.maximumf %1756, %1757 : vector<8x128xf32>
    %1759 = arith.mulf %1758, %1758 : vector<8x128xf32>
    %cst_334 = arith.constant 1.000000e+00 : f32
    %1760 = vector.broadcast %cst_334 : f32 to vector<8x128xf32>
    %1761 = arith.subf %94, %1760 : vector<8x128xf32>
    %1762 = arith.mulf %1759, %1761 : vector<8x128xf32>
    %cst_335 = arith.constant 1.000000e+00 : f32
    %1763 = vector.broadcast %cst_335 : f32 to vector<8x128xf32>
    %1764 = arith.addf %1762, %1763 : vector<8x128xf32>
    %cst_336 = arith.constant 1.000000e+00 : f32
    %1765 = vector.broadcast %cst_336 : f32 to vector<8x128xf32>
    %1766 = arith.subf %1765, %96 : vector<8x128xf32>
    %1767 = arith.mulf %1744, %1766 : vector<8x128xf32>
    %1768 = arith.addf %1767, %96 : vector<8x128xf32>
    %1769 = arith.mulf %1751, %1766 : vector<8x128xf32>
    %1770 = arith.addf %1769, %96 : vector<8x128xf32>
    %cst_337 = arith.constant 12.566371 : f32
    %1771 = vector.broadcast %cst_337 : f32 to vector<8x128xf32>
    %1772 = arith.mulf %1771, %1764 : vector<8x128xf32>
    %1773 = arith.mulf %1772, %1764 : vector<8x128xf32>
    %1774 = arith.mulf %1773, %1768 : vector<8x128xf32>
    %1775 = arith.mulf %1774, %1770 : vector<8x128xf32>
    %1776 = tpu.reciprocal %1775 {approx = true} : vector<8x128xf32> -> vector<8x128xf32>
    %1777 = arith.mulf %94, %1776 : vector<8x128xf32>
    %cst_338 = arith.constant 1.000000e+00 : f32
    %1778 = vector.broadcast %cst_338 : f32 to vector<8x128xf32>
    %1779 = arith.subf %1778, %103 : vector<8x128xf32>
    %1780 = arith.mulf %1779, %1737 : vector<8x128xf32>
    %1781 = arith.addf %103, %1780 : vector<8x128xf32>
    %cst_339 = arith.constant 1.000000e+00 : f32
    %1782 = vector.broadcast %cst_339 : f32 to vector<8x128xf32>
    %1783 = arith.subf %1782, %110 : vector<8x128xf32>
    %1784 = arith.mulf %1783, %1737 : vector<8x128xf32>
    %1785 = arith.addf %110, %1784 : vector<8x128xf32>
    %cst_340 = arith.constant 1.000000e+00 : f32
    %1786 = vector.broadcast %cst_340 : f32 to vector<8x128xf32>
    %1787 = arith.subf %1786, %117 : vector<8x128xf32>
    %1788 = arith.mulf %1787, %1737 : vector<8x128xf32>
    %1789 = arith.addf %117, %1788 : vector<8x128xf32>
    %1790 = arith.mulf %1781, %1777 : vector<8x128xf32>
    %1791 = arith.addf %67, %1790 : vector<8x128xf32>
    %1792 = arith.mulf %1791, %1744 : vector<8x128xf32>
    %1793 = vector.broadcast %1672 : f32 to vector<8x128xf32>
    %1794 = arith.mulf %1792, %1793 : vector<8x128xf32>
    %1795 = arith.mulf %1785, %1777 : vector<8x128xf32>
    %1796 = arith.addf %76, %1795 : vector<8x128xf32>
    %1797 = arith.mulf %1796, %1744 : vector<8x128xf32>
    %1798 = vector.broadcast %1673 : f32 to vector<8x128xf32>
    %1799 = arith.mulf %1797, %1798 : vector<8x128xf32>
    %1800 = arith.mulf %1789, %1777 : vector<8x128xf32>
    %1801 = arith.addf %85, %1800 : vector<8x128xf32>
    %1802 = arith.mulf %1801, %1744 : vector<8x128xf32>
    %1803 = vector.broadcast %1674 : f32 to vector<8x128xf32>
    %1804 = arith.mulf %1802, %1803 : vector<8x128xf32>
    %cst_341 = arith.constant 0.000000e+00 : f32
    %1805 = vector.broadcast %cst_341 : f32 to vector<8x128xf32>
    %1806 = arith.maximumf %1794, %1805 : vector<8x128xf32>
    %cst_342 = arith.constant 0.000000e+00 : f32
    %1807 = vector.broadcast %cst_342 : f32 to vector<8x128xf32>
    %1808 = arith.maximumf %1799, %1807 : vector<8x128xf32>
    %cst_343 = arith.constant 0.000000e+00 : f32
    %1809 = vector.broadcast %cst_343 : f32 to vector<8x128xf32>
    %1810 = arith.maximumf %1804, %1809 : vector<8x128xf32>
    %1811 = arith.mulf %135, %1688 : vector<8x128xf32>
    %1812 = arith.mulf %136, %1689 : vector<8x128xf32>
    %1813 = arith.addf %1811, %1812 : vector<8x128xf32>
    %1814 = arith.mulf %137, %1691 : vector<8x128xf32>
    %1815 = arith.addf %1813, %1814 : vector<8x128xf32>
    %cst_344 = arith.constant 9.99999974E-5 : f32
    %1816 = vector.broadcast %cst_344 : f32 to vector<8x128xf32>
    %1817 = arith.maximumf %1815, %1816 : vector<8x128xf32>
    %1818 = arith.mulf %135, %1705 : vector<8x128xf32>
    %1819 = arith.mulf %136, %1706 : vector<8x128xf32>
    %1820 = arith.addf %1818, %1819 : vector<8x128xf32>
    %1821 = arith.mulf %137, %1708 : vector<8x128xf32>
    %1822 = arith.addf %1820, %1821 : vector<8x128xf32>
    %cst_345 = arith.constant 9.99999974E-5 : f32
    %1823 = vector.broadcast %cst_345 : f32 to vector<8x128xf32>
    %1824 = arith.maximumf %1822, %1823 : vector<8x128xf32>
    %1825 = arith.mulf %135, %1720 : vector<8x128xf32>
    %1826 = arith.mulf %136, %1721 : vector<8x128xf32>
    %1827 = arith.addf %1825, %1826 : vector<8x128xf32>
    %1828 = arith.mulf %137, %1722 : vector<8x128xf32>
    %1829 = arith.addf %1827, %1828 : vector<8x128xf32>
    %cst_346 = arith.constant 9.99999974E-5 : f32
    %1830 = vector.broadcast %cst_346 : f32 to vector<8x128xf32>
    %1831 = arith.maximumf %1829, %1830 : vector<8x128xf32>
    %1832 = arith.mulf %1831, %1831 : vector<8x128xf32>
    %cst_347 = arith.constant 1.000000e+00 : f32
    %1833 = vector.broadcast %cst_347 : f32 to vector<8x128xf32>
    %1834 = arith.subf %173, %1833 : vector<8x128xf32>
    %1835 = arith.mulf %1832, %1834 : vector<8x128xf32>
    %cst_348 = arith.constant 1.000000e+00 : f32
    %1836 = vector.broadcast %cst_348 : f32 to vector<8x128xf32>
    %1837 = arith.addf %1835, %1836 : vector<8x128xf32>
    %cst_349 = arith.constant 1.000000e+00 : f32
    %1838 = vector.broadcast %cst_349 : f32 to vector<8x128xf32>
    %1839 = arith.subf %1838, %175 : vector<8x128xf32>
    %1840 = arith.mulf %1817, %1839 : vector<8x128xf32>
    %1841 = arith.addf %1840, %175 : vector<8x128xf32>
    %1842 = arith.mulf %1824, %1839 : vector<8x128xf32>
    %1843 = arith.addf %1842, %175 : vector<8x128xf32>
    %cst_350 = arith.constant 12.566371 : f32
    %1844 = vector.broadcast %cst_350 : f32 to vector<8x128xf32>
    %1845 = arith.mulf %1844, %1837 : vector<8x128xf32>
    %1846 = arith.mulf %1845, %1837 : vector<8x128xf32>
    %1847 = arith.mulf %1846, %1841 : vector<8x128xf32>
    %1848 = arith.mulf %1847, %1843 : vector<8x128xf32>
    %1849 = tpu.reciprocal %1848 {approx = true} : vector<8x128xf32> -> vector<8x128xf32>
    %1850 = arith.mulf %173, %1849 : vector<8x128xf32>
    %cst_351 = arith.constant 1.000000e+00 : f32
    %1851 = vector.broadcast %cst_351 : f32 to vector<8x128xf32>
    %1852 = arith.subf %1851, %182 : vector<8x128xf32>
    %1853 = arith.mulf %1852, %1737 : vector<8x128xf32>
    %1854 = arith.addf %182, %1853 : vector<8x128xf32>
    %cst_352 = arith.constant 1.000000e+00 : f32
    %1855 = vector.broadcast %cst_352 : f32 to vector<8x128xf32>
    %1856 = arith.subf %1855, %189 : vector<8x128xf32>
    %1857 = arith.mulf %1856, %1737 : vector<8x128xf32>
    %1858 = arith.addf %189, %1857 : vector<8x128xf32>
    %cst_353 = arith.constant 1.000000e+00 : f32
    %1859 = vector.broadcast %cst_353 : f32 to vector<8x128xf32>
    %1860 = arith.subf %1859, %196 : vector<8x128xf32>
    %1861 = arith.mulf %1860, %1737 : vector<8x128xf32>
    %1862 = arith.addf %196, %1861 : vector<8x128xf32>
    %1863 = arith.mulf %1854, %1850 : vector<8x128xf32>
    %1864 = arith.addf %146, %1863 : vector<8x128xf32>
    %1865 = arith.mulf %1864, %1817 : vector<8x128xf32>
    %1866 = vector.broadcast %1672 : f32 to vector<8x128xf32>
    %1867 = arith.mulf %1865, %1866 : vector<8x128xf32>
    %1868 = arith.mulf %1858, %1850 : vector<8x128xf32>
    %1869 = arith.addf %155, %1868 : vector<8x128xf32>
    %1870 = arith.mulf %1869, %1817 : vector<8x128xf32>
    %1871 = vector.broadcast %1673 : f32 to vector<8x128xf32>
    %1872 = arith.mulf %1870, %1871 : vector<8x128xf32>
    %1873 = arith.mulf %1862, %1850 : vector<8x128xf32>
    %1874 = arith.addf %164, %1873 : vector<8x128xf32>
    %1875 = arith.mulf %1874, %1817 : vector<8x128xf32>
    %1876 = vector.broadcast %1674 : f32 to vector<8x128xf32>
    %1877 = arith.mulf %1875, %1876 : vector<8x128xf32>
    %cst_354 = arith.constant 0.000000e+00 : f32
    %1878 = vector.broadcast %cst_354 : f32 to vector<8x128xf32>
    %1879 = arith.maximumf %1867, %1878 : vector<8x128xf32>
    %cst_355 = arith.constant 0.000000e+00 : f32
    %1880 = vector.broadcast %cst_355 : f32 to vector<8x128xf32>
    %1881 = arith.maximumf %1872, %1880 : vector<8x128xf32>
    %cst_356 = arith.constant 0.000000e+00 : f32
    %1882 = vector.broadcast %cst_356 : f32 to vector<8x128xf32>
    %1883 = arith.maximumf %1877, %1882 : vector<8x128xf32>
    %cst_357 = arith.constant 9.99999974E-6 : f32
    %1884 = vector.broadcast %cst_357 : f32 to vector<8x128xf32>
    %1885 = arith.addf %1806, %1884 : vector<8x128xf32>
    %1886 = math.log %1885 : vector<8x128xf32>
    %cst_358 = arith.constant 9.99999974E-6 : f32
    %1887 = vector.broadcast %cst_358 : f32 to vector<8x128xf32>
    %1888 = arith.addf %1879, %1887 : vector<8x128xf32>
    %1889 = math.log %1888 : vector<8x128xf32>
    %1890 = arith.subf %1886, %1889 : vector<8x128xf32>
    %1891 = math.absf %1890 : vector<8x128xf32>
    %1892 = arith.addf %1665, %1891 : vector<8x128xf32>
    %cst_359 = arith.constant 9.99999974E-6 : f32
    %1893 = vector.broadcast %cst_359 : f32 to vector<8x128xf32>
    %1894 = arith.addf %1808, %1893 : vector<8x128xf32>
    %1895 = math.log %1894 : vector<8x128xf32>
    %cst_360 = arith.constant 9.99999974E-6 : f32
    %1896 = vector.broadcast %cst_360 : f32 to vector<8x128xf32>
    %1897 = arith.addf %1881, %1896 : vector<8x128xf32>
    %1898 = math.log %1897 : vector<8x128xf32>
    %1899 = arith.subf %1895, %1898 : vector<8x128xf32>
    %1900 = math.absf %1899 : vector<8x128xf32>
    %1901 = arith.addf %1892, %1900 : vector<8x128xf32>
    %cst_361 = arith.constant 9.99999974E-6 : f32
    %1902 = vector.broadcast %cst_361 : f32 to vector<8x128xf32>
    %1903 = arith.addf %1810, %1902 : vector<8x128xf32>
    %1904 = math.log %1903 : vector<8x128xf32>
    %cst_362 = arith.constant 9.99999974E-6 : f32
    %1905 = vector.broadcast %cst_362 : f32 to vector<8x128xf32>
    %1906 = arith.addf %1883, %1905 : vector<8x128xf32>
    %1907 = math.log %1906 : vector<8x128xf32>
    %1908 = arith.subf %1904, %1907 : vector<8x128xf32>
    %1909 = math.absf %1908 : vector<8x128xf32>
    %1910 = arith.addf %1901, %1909 : vector<8x128xf32>
    %c63 = arith.constant 63 : index
    %1911 = memref.load %arg1[%c63] : memref<81xf32, #tpu.memory_space<smem>>
    %c64 = arith.constant 64 : index
    %1912 = memref.load %arg1[%c64] : memref<81xf32, #tpu.memory_space<smem>>
    %c65 = arith.constant 65 : index
    %1913 = memref.load %arg1[%c65] : memref<81xf32, #tpu.memory_space<smem>>
    %c66 = arith.constant 66 : index
    %1914 = memref.load %arg1[%c66] : memref<81xf32, #tpu.memory_space<smem>>
    %c67 = arith.constant 67 : index
    %1915 = memref.load %arg1[%c67] : memref<81xf32, #tpu.memory_space<smem>>
    %c68 = arith.constant 68 : index
    %1916 = memref.load %arg1[%c68] : memref<81xf32, #tpu.memory_space<smem>>
    %c69 = arith.constant 69 : index
    %1917 = memref.load %arg1[%c69] : memref<81xf32, #tpu.memory_space<smem>>
    %c70 = arith.constant 70 : index
    %1918 = memref.load %arg1[%c70] : memref<81xf32, #tpu.memory_space<smem>>
    %c71 = arith.constant 71 : index
    %1919 = memref.load %arg1[%c71] : memref<81xf32, #tpu.memory_space<smem>>
    %1920 = vector.broadcast %1914 : f32 to vector<8x128xf32>
    %1921 = arith.subf %1920, %34 : vector<8x128xf32>
    %1922 = vector.broadcast %1915 : f32 to vector<8x128xf32>
    %1923 = arith.subf %1922, %38 : vector<8x128xf32>
    %1924 = arith.mulf %1921, %1921 : vector<8x128xf32>
    %1925 = arith.mulf %1923, %1923 : vector<8x128xf32>
    %1926 = arith.addf %1924, %1925 : vector<8x128xf32>
    %1927 = arith.mulf %1916, %1916 : f32
    %1928 = vector.broadcast %1927 : f32 to vector<8x128xf32>
    %1929 = arith.addf %1926, %1928 : vector<8x128xf32>
    %cst_363 = arith.constant 9.99999996E-13 : f32
    %1930 = vector.broadcast %cst_363 : f32 to vector<8x128xf32>
    %1931 = arith.addf %1929, %1930 : vector<8x128xf32>
    %1932 = math.rsqrt %1931 : vector<8x128xf32>
    %1933 = arith.mulf %1921, %1932 : vector<8x128xf32>
    %1934 = arith.mulf %1923, %1932 : vector<8x128xf32>
    %1935 = vector.broadcast %1916 : f32 to vector<8x128xf32>
    %1936 = arith.mulf %1935, %1932 : vector<8x128xf32>
    %1937 = vector.broadcast %1911 : f32 to vector<8x128xf32>
    %1938 = arith.subf %1937, %34 : vector<8x128xf32>
    %1939 = vector.broadcast %1912 : f32 to vector<8x128xf32>
    %1940 = arith.subf %1939, %38 : vector<8x128xf32>
    %1941 = arith.mulf %1938, %1938 : vector<8x128xf32>
    %1942 = arith.mulf %1940, %1940 : vector<8x128xf32>
    %1943 = arith.addf %1941, %1942 : vector<8x128xf32>
    %1944 = arith.mulf %1913, %1913 : f32
    %1945 = vector.broadcast %1944 : f32 to vector<8x128xf32>
    %1946 = arith.addf %1943, %1945 : vector<8x128xf32>
    %cst_364 = arith.constant 9.99999996E-13 : f32
    %1947 = vector.broadcast %cst_364 : f32 to vector<8x128xf32>
    %1948 = arith.addf %1946, %1947 : vector<8x128xf32>
    %1949 = math.rsqrt %1948 : vector<8x128xf32>
    %1950 = arith.mulf %1938, %1949 : vector<8x128xf32>
    %1951 = arith.mulf %1940, %1949 : vector<8x128xf32>
    %1952 = vector.broadcast %1913 : f32 to vector<8x128xf32>
    %1953 = arith.mulf %1952, %1949 : vector<8x128xf32>
    %1954 = arith.addf %1933, %1950 : vector<8x128xf32>
    %1955 = arith.addf %1934, %1951 : vector<8x128xf32>
    %1956 = arith.addf %1936, %1953 : vector<8x128xf32>
    %1957 = arith.mulf %1954, %1954 : vector<8x128xf32>
    %1958 = arith.mulf %1955, %1955 : vector<8x128xf32>
    %1959 = arith.addf %1957, %1958 : vector<8x128xf32>
    %1960 = arith.mulf %1956, %1956 : vector<8x128xf32>
    %1961 = arith.addf %1959, %1960 : vector<8x128xf32>
    %cst_365 = arith.constant 9.99999996E-13 : f32
    %1962 = vector.broadcast %cst_365 : f32 to vector<8x128xf32>
    %1963 = arith.addf %1961, %1962 : vector<8x128xf32>
    %1964 = math.rsqrt %1963 : vector<8x128xf32>
    %1965 = arith.mulf %1954, %1964 : vector<8x128xf32>
    %1966 = arith.mulf %1955, %1964 : vector<8x128xf32>
    %1967 = arith.mulf %1956, %1964 : vector<8x128xf32>
    %1968 = arith.mulf %1950, %1965 : vector<8x128xf32>
    %1969 = arith.mulf %1951, %1966 : vector<8x128xf32>
    %1970 = arith.addf %1968, %1969 : vector<8x128xf32>
    %1971 = arith.mulf %1953, %1967 : vector<8x128xf32>
    %1972 = arith.addf %1970, %1971 : vector<8x128xf32>
    %cst_366 = arith.constant 9.99999974E-5 : f32
    %1973 = vector.broadcast %cst_366 : f32 to vector<8x128xf32>
    %1974 = arith.maximumf %1972, %1973 : vector<8x128xf32>
    %cst_367 = arith.constant -5.554730e+00 : f32
    %1975 = vector.broadcast %cst_367 : f32 to vector<8x128xf32>
    %1976 = arith.mulf %1975, %1974 : vector<8x128xf32>
    %cst_368 = arith.constant 6.983160e+00 : f32
    %1977 = vector.broadcast %cst_368 : f32 to vector<8x128xf32>
    %1978 = arith.subf %1976, %1977 : vector<8x128xf32>
    %1979 = arith.mulf %1978, %1974 : vector<8x128xf32>
    %cst_369 = arith.constant 0.693147182 : f32
    %1980 = vector.broadcast %cst_369 : f32 to vector<8x128xf32>
    %1981 = arith.mulf %1979, %1980 : vector<8x128xf32>
    %1982 = math.exp %1981 : vector<8x128xf32>
    %1983 = arith.mulf %56, %1933 : vector<8x128xf32>
    %1984 = arith.mulf %57, %1934 : vector<8x128xf32>
    %1985 = arith.addf %1983, %1984 : vector<8x128xf32>
    %1986 = arith.mulf %58, %1936 : vector<8x128xf32>
    %1987 = arith.addf %1985, %1986 : vector<8x128xf32>
    %cst_370 = arith.constant 9.99999974E-5 : f32
    %1988 = vector.broadcast %cst_370 : f32 to vector<8x128xf32>
    %1989 = arith.maximumf %1987, %1988 : vector<8x128xf32>
    %1990 = arith.mulf %56, %1950 : vector<8x128xf32>
    %1991 = arith.mulf %57, %1951 : vector<8x128xf32>
    %1992 = arith.addf %1990, %1991 : vector<8x128xf32>
    %1993 = arith.mulf %58, %1953 : vector<8x128xf32>
    %1994 = arith.addf %1992, %1993 : vector<8x128xf32>
    %cst_371 = arith.constant 9.99999974E-5 : f32
    %1995 = vector.broadcast %cst_371 : f32 to vector<8x128xf32>
    %1996 = arith.maximumf %1994, %1995 : vector<8x128xf32>
    %1997 = arith.mulf %56, %1965 : vector<8x128xf32>
    %1998 = arith.mulf %57, %1966 : vector<8x128xf32>
    %1999 = arith.addf %1997, %1998 : vector<8x128xf32>
    %2000 = arith.mulf %58, %1967 : vector<8x128xf32>
    %2001 = arith.addf %1999, %2000 : vector<8x128xf32>
    %cst_372 = arith.constant 9.99999974E-5 : f32
    %2002 = vector.broadcast %cst_372 : f32 to vector<8x128xf32>
    %2003 = arith.maximumf %2001, %2002 : vector<8x128xf32>
    %2004 = arith.mulf %2003, %2003 : vector<8x128xf32>
    %cst_373 = arith.constant 1.000000e+00 : f32
    %2005 = vector.broadcast %cst_373 : f32 to vector<8x128xf32>
    %2006 = arith.subf %94, %2005 : vector<8x128xf32>
    %2007 = arith.mulf %2004, %2006 : vector<8x128xf32>
    %cst_374 = arith.constant 1.000000e+00 : f32
    %2008 = vector.broadcast %cst_374 : f32 to vector<8x128xf32>
    %2009 = arith.addf %2007, %2008 : vector<8x128xf32>
    %cst_375 = arith.constant 1.000000e+00 : f32
    %2010 = vector.broadcast %cst_375 : f32 to vector<8x128xf32>
    %2011 = arith.subf %2010, %96 : vector<8x128xf32>
    %2012 = arith.mulf %1989, %2011 : vector<8x128xf32>
    %2013 = arith.addf %2012, %96 : vector<8x128xf32>
    %2014 = arith.mulf %1996, %2011 : vector<8x128xf32>
    %2015 = arith.addf %2014, %96 : vector<8x128xf32>
    %cst_376 = arith.constant 12.566371 : f32
    %2016 = vector.broadcast %cst_376 : f32 to vector<8x128xf32>
    %2017 = arith.mulf %2016, %2009 : vector<8x128xf32>
    %2018 = arith.mulf %2017, %2009 : vector<8x128xf32>
    %2019 = arith.mulf %2018, %2013 : vector<8x128xf32>
    %2020 = arith.mulf %2019, %2015 : vector<8x128xf32>
    %2021 = tpu.reciprocal %2020 {approx = true} : vector<8x128xf32> -> vector<8x128xf32>
    %2022 = arith.mulf %94, %2021 : vector<8x128xf32>
    %cst_377 = arith.constant 1.000000e+00 : f32
    %2023 = vector.broadcast %cst_377 : f32 to vector<8x128xf32>
    %2024 = arith.subf %2023, %103 : vector<8x128xf32>
    %2025 = arith.mulf %2024, %1982 : vector<8x128xf32>
    %2026 = arith.addf %103, %2025 : vector<8x128xf32>
    %cst_378 = arith.constant 1.000000e+00 : f32
    %2027 = vector.broadcast %cst_378 : f32 to vector<8x128xf32>
    %2028 = arith.subf %2027, %110 : vector<8x128xf32>
    %2029 = arith.mulf %2028, %1982 : vector<8x128xf32>
    %2030 = arith.addf %110, %2029 : vector<8x128xf32>
    %cst_379 = arith.constant 1.000000e+00 : f32
    %2031 = vector.broadcast %cst_379 : f32 to vector<8x128xf32>
    %2032 = arith.subf %2031, %117 : vector<8x128xf32>
    %2033 = arith.mulf %2032, %1982 : vector<8x128xf32>
    %2034 = arith.addf %117, %2033 : vector<8x128xf32>
    %2035 = arith.mulf %2026, %2022 : vector<8x128xf32>
    %2036 = arith.addf %67, %2035 : vector<8x128xf32>
    %2037 = arith.mulf %2036, %1989 : vector<8x128xf32>
    %2038 = vector.broadcast %1917 : f32 to vector<8x128xf32>
    %2039 = arith.mulf %2037, %2038 : vector<8x128xf32>
    %2040 = arith.mulf %2030, %2022 : vector<8x128xf32>
    %2041 = arith.addf %76, %2040 : vector<8x128xf32>
    %2042 = arith.mulf %2041, %1989 : vector<8x128xf32>
    %2043 = vector.broadcast %1918 : f32 to vector<8x128xf32>
    %2044 = arith.mulf %2042, %2043 : vector<8x128xf32>
    %2045 = arith.mulf %2034, %2022 : vector<8x128xf32>
    %2046 = arith.addf %85, %2045 : vector<8x128xf32>
    %2047 = arith.mulf %2046, %1989 : vector<8x128xf32>
    %2048 = vector.broadcast %1919 : f32 to vector<8x128xf32>
    %2049 = arith.mulf %2047, %2048 : vector<8x128xf32>
    %cst_380 = arith.constant 0.000000e+00 : f32
    %2050 = vector.broadcast %cst_380 : f32 to vector<8x128xf32>
    %2051 = arith.maximumf %2039, %2050 : vector<8x128xf32>
    %cst_381 = arith.constant 0.000000e+00 : f32
    %2052 = vector.broadcast %cst_381 : f32 to vector<8x128xf32>
    %2053 = arith.maximumf %2044, %2052 : vector<8x128xf32>
    %cst_382 = arith.constant 0.000000e+00 : f32
    %2054 = vector.broadcast %cst_382 : f32 to vector<8x128xf32>
    %2055 = arith.maximumf %2049, %2054 : vector<8x128xf32>
    %2056 = arith.mulf %135, %1933 : vector<8x128xf32>
    %2057 = arith.mulf %136, %1934 : vector<8x128xf32>
    %2058 = arith.addf %2056, %2057 : vector<8x128xf32>
    %2059 = arith.mulf %137, %1936 : vector<8x128xf32>
    %2060 = arith.addf %2058, %2059 : vector<8x128xf32>
    %cst_383 = arith.constant 9.99999974E-5 : f32
    %2061 = vector.broadcast %cst_383 : f32 to vector<8x128xf32>
    %2062 = arith.maximumf %2060, %2061 : vector<8x128xf32>
    %2063 = arith.mulf %135, %1950 : vector<8x128xf32>
    %2064 = arith.mulf %136, %1951 : vector<8x128xf32>
    %2065 = arith.addf %2063, %2064 : vector<8x128xf32>
    %2066 = arith.mulf %137, %1953 : vector<8x128xf32>
    %2067 = arith.addf %2065, %2066 : vector<8x128xf32>
    %cst_384 = arith.constant 9.99999974E-5 : f32
    %2068 = vector.broadcast %cst_384 : f32 to vector<8x128xf32>
    %2069 = arith.maximumf %2067, %2068 : vector<8x128xf32>
    %2070 = arith.mulf %135, %1965 : vector<8x128xf32>
    %2071 = arith.mulf %136, %1966 : vector<8x128xf32>
    %2072 = arith.addf %2070, %2071 : vector<8x128xf32>
    %2073 = arith.mulf %137, %1967 : vector<8x128xf32>
    %2074 = arith.addf %2072, %2073 : vector<8x128xf32>
    %cst_385 = arith.constant 9.99999974E-5 : f32
    %2075 = vector.broadcast %cst_385 : f32 to vector<8x128xf32>
    %2076 = arith.maximumf %2074, %2075 : vector<8x128xf32>
    %2077 = arith.mulf %2076, %2076 : vector<8x128xf32>
    %cst_386 = arith.constant 1.000000e+00 : f32
    %2078 = vector.broadcast %cst_386 : f32 to vector<8x128xf32>
    %2079 = arith.subf %173, %2078 : vector<8x128xf32>
    %2080 = arith.mulf %2077, %2079 : vector<8x128xf32>
    %cst_387 = arith.constant 1.000000e+00 : f32
    %2081 = vector.broadcast %cst_387 : f32 to vector<8x128xf32>
    %2082 = arith.addf %2080, %2081 : vector<8x128xf32>
    %cst_388 = arith.constant 1.000000e+00 : f32
    %2083 = vector.broadcast %cst_388 : f32 to vector<8x128xf32>
    %2084 = arith.subf %2083, %175 : vector<8x128xf32>
    %2085 = arith.mulf %2062, %2084 : vector<8x128xf32>
    %2086 = arith.addf %2085, %175 : vector<8x128xf32>
    %2087 = arith.mulf %2069, %2084 : vector<8x128xf32>
    %2088 = arith.addf %2087, %175 : vector<8x128xf32>
    %cst_389 = arith.constant 12.566371 : f32
    %2089 = vector.broadcast %cst_389 : f32 to vector<8x128xf32>
    %2090 = arith.mulf %2089, %2082 : vector<8x128xf32>
    %2091 = arith.mulf %2090, %2082 : vector<8x128xf32>
    %2092 = arith.mulf %2091, %2086 : vector<8x128xf32>
    %2093 = arith.mulf %2092, %2088 : vector<8x128xf32>
    %2094 = tpu.reciprocal %2093 {approx = true} : vector<8x128xf32> -> vector<8x128xf32>
    %2095 = arith.mulf %173, %2094 : vector<8x128xf32>
    %cst_390 = arith.constant 1.000000e+00 : f32
    %2096 = vector.broadcast %cst_390 : f32 to vector<8x128xf32>
    %2097 = arith.subf %2096, %182 : vector<8x128xf32>
    %2098 = arith.mulf %2097, %1982 : vector<8x128xf32>
    %2099 = arith.addf %182, %2098 : vector<8x128xf32>
    %cst_391 = arith.constant 1.000000e+00 : f32
    %2100 = vector.broadcast %cst_391 : f32 to vector<8x128xf32>
    %2101 = arith.subf %2100, %189 : vector<8x128xf32>
    %2102 = arith.mulf %2101, %1982 : vector<8x128xf32>
    %2103 = arith.addf %189, %2102 : vector<8x128xf32>
    %cst_392 = arith.constant 1.000000e+00 : f32
    %2104 = vector.broadcast %cst_392 : f32 to vector<8x128xf32>
    %2105 = arith.subf %2104, %196 : vector<8x128xf32>
    %2106 = arith.mulf %2105, %1982 : vector<8x128xf32>
    %2107 = arith.addf %196, %2106 : vector<8x128xf32>
    %2108 = arith.mulf %2099, %2095 : vector<8x128xf32>
    %2109 = arith.addf %146, %2108 : vector<8x128xf32>
    %2110 = arith.mulf %2109, %2062 : vector<8x128xf32>
    %2111 = vector.broadcast %1917 : f32 to vector<8x128xf32>
    %2112 = arith.mulf %2110, %2111 : vector<8x128xf32>
    %2113 = arith.mulf %2103, %2095 : vector<8x128xf32>
    %2114 = arith.addf %155, %2113 : vector<8x128xf32>
    %2115 = arith.mulf %2114, %2062 : vector<8x128xf32>
    %2116 = vector.broadcast %1918 : f32 to vector<8x128xf32>
    %2117 = arith.mulf %2115, %2116 : vector<8x128xf32>
    %2118 = arith.mulf %2107, %2095 : vector<8x128xf32>
    %2119 = arith.addf %164, %2118 : vector<8x128xf32>
    %2120 = arith.mulf %2119, %2062 : vector<8x128xf32>
    %2121 = vector.broadcast %1919 : f32 to vector<8x128xf32>
    %2122 = arith.mulf %2120, %2121 : vector<8x128xf32>
    %cst_393 = arith.constant 0.000000e+00 : f32
    %2123 = vector.broadcast %cst_393 : f32 to vector<8x128xf32>
    %2124 = arith.maximumf %2112, %2123 : vector<8x128xf32>
    %cst_394 = arith.constant 0.000000e+00 : f32
    %2125 = vector.broadcast %cst_394 : f32 to vector<8x128xf32>
    %2126 = arith.maximumf %2117, %2125 : vector<8x128xf32>
    %cst_395 = arith.constant 0.000000e+00 : f32
    %2127 = vector.broadcast %cst_395 : f32 to vector<8x128xf32>
    %2128 = arith.maximumf %2122, %2127 : vector<8x128xf32>
    %cst_396 = arith.constant 9.99999974E-6 : f32
    %2129 = vector.broadcast %cst_396 : f32 to vector<8x128xf32>
    %2130 = arith.addf %2051, %2129 : vector<8x128xf32>
    %2131 = math.log %2130 : vector<8x128xf32>
    %cst_397 = arith.constant 9.99999974E-6 : f32
    %2132 = vector.broadcast %cst_397 : f32 to vector<8x128xf32>
    %2133 = arith.addf %2124, %2132 : vector<8x128xf32>
    %2134 = math.log %2133 : vector<8x128xf32>
    %2135 = arith.subf %2131, %2134 : vector<8x128xf32>
    %2136 = math.absf %2135 : vector<8x128xf32>
    %2137 = arith.addf %1910, %2136 : vector<8x128xf32>
    %cst_398 = arith.constant 9.99999974E-6 : f32
    %2138 = vector.broadcast %cst_398 : f32 to vector<8x128xf32>
    %2139 = arith.addf %2053, %2138 : vector<8x128xf32>
    %2140 = math.log %2139 : vector<8x128xf32>
    %cst_399 = arith.constant 9.99999974E-6 : f32
    %2141 = vector.broadcast %cst_399 : f32 to vector<8x128xf32>
    %2142 = arith.addf %2126, %2141 : vector<8x128xf32>
    %2143 = math.log %2142 : vector<8x128xf32>
    %2144 = arith.subf %2140, %2143 : vector<8x128xf32>
    %2145 = math.absf %2144 : vector<8x128xf32>
    %2146 = arith.addf %2137, %2145 : vector<8x128xf32>
    %cst_400 = arith.constant 9.99999974E-6 : f32
    %2147 = vector.broadcast %cst_400 : f32 to vector<8x128xf32>
    %2148 = arith.addf %2055, %2147 : vector<8x128xf32>
    %2149 = math.log %2148 : vector<8x128xf32>
    %cst_401 = arith.constant 9.99999974E-6 : f32
    %2150 = vector.broadcast %cst_401 : f32 to vector<8x128xf32>
    %2151 = arith.addf %2128, %2150 : vector<8x128xf32>
    %2152 = math.log %2151 : vector<8x128xf32>
    %2153 = arith.subf %2149, %2152 : vector<8x128xf32>
    %2154 = math.absf %2153 : vector<8x128xf32>
    %2155 = arith.addf %2146, %2154 : vector<8x128xf32>
    %c72 = arith.constant 72 : index
    %2156 = memref.load %arg1[%c72] : memref<81xf32, #tpu.memory_space<smem>>
    %c73 = arith.constant 73 : index
    %2157 = memref.load %arg1[%c73] : memref<81xf32, #tpu.memory_space<smem>>
    %c74 = arith.constant 74 : index
    %2158 = memref.load %arg1[%c74] : memref<81xf32, #tpu.memory_space<smem>>
    %c75 = arith.constant 75 : index
    %2159 = memref.load %arg1[%c75] : memref<81xf32, #tpu.memory_space<smem>>
    %c76 = arith.constant 76 : index
    %2160 = memref.load %arg1[%c76] : memref<81xf32, #tpu.memory_space<smem>>
    %c77 = arith.constant 77 : index
    %2161 = memref.load %arg1[%c77] : memref<81xf32, #tpu.memory_space<smem>>
    %c78 = arith.constant 78 : index
    %2162 = memref.load %arg1[%c78] : memref<81xf32, #tpu.memory_space<smem>>
    %c79 = arith.constant 79 : index
    %2163 = memref.load %arg1[%c79] : memref<81xf32, #tpu.memory_space<smem>>
    %c80 = arith.constant 80 : index
    %2164 = memref.load %arg1[%c80] : memref<81xf32, #tpu.memory_space<smem>>
    %2165 = vector.broadcast %2159 : f32 to vector<8x128xf32>
    %2166 = arith.subf %2165, %34 : vector<8x128xf32>
    %2167 = vector.broadcast %2160 : f32 to vector<8x128xf32>
    %2168 = arith.subf %2167, %38 : vector<8x128xf32>
    %2169 = arith.mulf %2166, %2166 : vector<8x128xf32>
    %2170 = arith.mulf %2168, %2168 : vector<8x128xf32>
    %2171 = arith.addf %2169, %2170 : vector<8x128xf32>
    %2172 = arith.mulf %2161, %2161 : f32
    %2173 = vector.broadcast %2172 : f32 to vector<8x128xf32>
    %2174 = arith.addf %2171, %2173 : vector<8x128xf32>
    %cst_402 = arith.constant 9.99999996E-13 : f32
    %2175 = vector.broadcast %cst_402 : f32 to vector<8x128xf32>
    %2176 = arith.addf %2174, %2175 : vector<8x128xf32>
    %2177 = math.rsqrt %2176 : vector<8x128xf32>
    %2178 = arith.mulf %2166, %2177 : vector<8x128xf32>
    %2179 = arith.mulf %2168, %2177 : vector<8x128xf32>
    %2180 = vector.broadcast %2161 : f32 to vector<8x128xf32>
    %2181 = arith.mulf %2180, %2177 : vector<8x128xf32>
    %2182 = vector.broadcast %2156 : f32 to vector<8x128xf32>
    %2183 = arith.subf %2182, %34 : vector<8x128xf32>
    %2184 = vector.broadcast %2157 : f32 to vector<8x128xf32>
    %2185 = arith.subf %2184, %38 : vector<8x128xf32>
    %2186 = arith.mulf %2183, %2183 : vector<8x128xf32>
    %2187 = arith.mulf %2185, %2185 : vector<8x128xf32>
    %2188 = arith.addf %2186, %2187 : vector<8x128xf32>
    %2189 = arith.mulf %2158, %2158 : f32
    %2190 = vector.broadcast %2189 : f32 to vector<8x128xf32>
    %2191 = arith.addf %2188, %2190 : vector<8x128xf32>
    %cst_403 = arith.constant 9.99999996E-13 : f32
    %2192 = vector.broadcast %cst_403 : f32 to vector<8x128xf32>
    %2193 = arith.addf %2191, %2192 : vector<8x128xf32>
    %2194 = math.rsqrt %2193 : vector<8x128xf32>
    %2195 = arith.mulf %2183, %2194 : vector<8x128xf32>
    %2196 = arith.mulf %2185, %2194 : vector<8x128xf32>
    %2197 = vector.broadcast %2158 : f32 to vector<8x128xf32>
    %2198 = arith.mulf %2197, %2194 : vector<8x128xf32>
    %2199 = arith.addf %2178, %2195 : vector<8x128xf32>
    %2200 = arith.addf %2179, %2196 : vector<8x128xf32>
    %2201 = arith.addf %2181, %2198 : vector<8x128xf32>
    %2202 = arith.mulf %2199, %2199 : vector<8x128xf32>
    %2203 = arith.mulf %2200, %2200 : vector<8x128xf32>
    %2204 = arith.addf %2202, %2203 : vector<8x128xf32>
    %2205 = arith.mulf %2201, %2201 : vector<8x128xf32>
    %2206 = arith.addf %2204, %2205 : vector<8x128xf32>
    %cst_404 = arith.constant 9.99999996E-13 : f32
    %2207 = vector.broadcast %cst_404 : f32 to vector<8x128xf32>
    %2208 = arith.addf %2206, %2207 : vector<8x128xf32>
    %2209 = math.rsqrt %2208 : vector<8x128xf32>
    %2210 = arith.mulf %2199, %2209 : vector<8x128xf32>
    %2211 = arith.mulf %2200, %2209 : vector<8x128xf32>
    %2212 = arith.mulf %2201, %2209 : vector<8x128xf32>
    %2213 = arith.mulf %2195, %2210 : vector<8x128xf32>
    %2214 = arith.mulf %2196, %2211 : vector<8x128xf32>
    %2215 = arith.addf %2213, %2214 : vector<8x128xf32>
    %2216 = arith.mulf %2198, %2212 : vector<8x128xf32>
    %2217 = arith.addf %2215, %2216 : vector<8x128xf32>
    %cst_405 = arith.constant 9.99999974E-5 : f32
    %2218 = vector.broadcast %cst_405 : f32 to vector<8x128xf32>
    %2219 = arith.maximumf %2217, %2218 : vector<8x128xf32>
    %cst_406 = arith.constant -5.554730e+00 : f32
    %2220 = vector.broadcast %cst_406 : f32 to vector<8x128xf32>
    %2221 = arith.mulf %2220, %2219 : vector<8x128xf32>
    %cst_407 = arith.constant 6.983160e+00 : f32
    %2222 = vector.broadcast %cst_407 : f32 to vector<8x128xf32>
    %2223 = arith.subf %2221, %2222 : vector<8x128xf32>
    %2224 = arith.mulf %2223, %2219 : vector<8x128xf32>
    %cst_408 = arith.constant 0.693147182 : f32
    %2225 = vector.broadcast %cst_408 : f32 to vector<8x128xf32>
    %2226 = arith.mulf %2224, %2225 : vector<8x128xf32>
    %2227 = math.exp %2226 : vector<8x128xf32>
    %2228 = arith.mulf %56, %2178 : vector<8x128xf32>
    %2229 = arith.mulf %57, %2179 : vector<8x128xf32>
    %2230 = arith.addf %2228, %2229 : vector<8x128xf32>
    %2231 = arith.mulf %58, %2181 : vector<8x128xf32>
    %2232 = arith.addf %2230, %2231 : vector<8x128xf32>
    %cst_409 = arith.constant 9.99999974E-5 : f32
    %2233 = vector.broadcast %cst_409 : f32 to vector<8x128xf32>
    %2234 = arith.maximumf %2232, %2233 : vector<8x128xf32>
    %2235 = arith.mulf %56, %2195 : vector<8x128xf32>
    %2236 = arith.mulf %57, %2196 : vector<8x128xf32>
    %2237 = arith.addf %2235, %2236 : vector<8x128xf32>
    %2238 = arith.mulf %58, %2198 : vector<8x128xf32>
    %2239 = arith.addf %2237, %2238 : vector<8x128xf32>
    %cst_410 = arith.constant 9.99999974E-5 : f32
    %2240 = vector.broadcast %cst_410 : f32 to vector<8x128xf32>
    %2241 = arith.maximumf %2239, %2240 : vector<8x128xf32>
    %2242 = arith.mulf %56, %2210 : vector<8x128xf32>
    %2243 = arith.mulf %57, %2211 : vector<8x128xf32>
    %2244 = arith.addf %2242, %2243 : vector<8x128xf32>
    %2245 = arith.mulf %58, %2212 : vector<8x128xf32>
    %2246 = arith.addf %2244, %2245 : vector<8x128xf32>
    %cst_411 = arith.constant 9.99999974E-5 : f32
    %2247 = vector.broadcast %cst_411 : f32 to vector<8x128xf32>
    %2248 = arith.maximumf %2246, %2247 : vector<8x128xf32>
    %2249 = arith.mulf %2248, %2248 : vector<8x128xf32>
    %cst_412 = arith.constant 1.000000e+00 : f32
    %2250 = vector.broadcast %cst_412 : f32 to vector<8x128xf32>
    %2251 = arith.subf %94, %2250 : vector<8x128xf32>
    %2252 = arith.mulf %2249, %2251 : vector<8x128xf32>
    %cst_413 = arith.constant 1.000000e+00 : f32
    %2253 = vector.broadcast %cst_413 : f32 to vector<8x128xf32>
    %2254 = arith.addf %2252, %2253 : vector<8x128xf32>
    %cst_414 = arith.constant 1.000000e+00 : f32
    %2255 = vector.broadcast %cst_414 : f32 to vector<8x128xf32>
    %2256 = arith.subf %2255, %96 : vector<8x128xf32>
    %2257 = arith.mulf %2234, %2256 : vector<8x128xf32>
    %2258 = arith.addf %2257, %96 : vector<8x128xf32>
    %2259 = arith.mulf %2241, %2256 : vector<8x128xf32>
    %2260 = arith.addf %2259, %96 : vector<8x128xf32>
    %cst_415 = arith.constant 12.566371 : f32
    %2261 = vector.broadcast %cst_415 : f32 to vector<8x128xf32>
    %2262 = arith.mulf %2261, %2254 : vector<8x128xf32>
    %2263 = arith.mulf %2262, %2254 : vector<8x128xf32>
    %2264 = arith.mulf %2263, %2258 : vector<8x128xf32>
    %2265 = arith.mulf %2264, %2260 : vector<8x128xf32>
    %2266 = tpu.reciprocal %2265 {approx = true} : vector<8x128xf32> -> vector<8x128xf32>
    %2267 = arith.mulf %94, %2266 : vector<8x128xf32>
    %cst_416 = arith.constant 1.000000e+00 : f32
    %2268 = vector.broadcast %cst_416 : f32 to vector<8x128xf32>
    %2269 = arith.subf %2268, %103 : vector<8x128xf32>
    %2270 = arith.mulf %2269, %2227 : vector<8x128xf32>
    %2271 = arith.addf %103, %2270 : vector<8x128xf32>
    %cst_417 = arith.constant 1.000000e+00 : f32
    %2272 = vector.broadcast %cst_417 : f32 to vector<8x128xf32>
    %2273 = arith.subf %2272, %110 : vector<8x128xf32>
    %2274 = arith.mulf %2273, %2227 : vector<8x128xf32>
    %2275 = arith.addf %110, %2274 : vector<8x128xf32>
    %cst_418 = arith.constant 1.000000e+00 : f32
    %2276 = vector.broadcast %cst_418 : f32 to vector<8x128xf32>
    %2277 = arith.subf %2276, %117 : vector<8x128xf32>
    %2278 = arith.mulf %2277, %2227 : vector<8x128xf32>
    %2279 = arith.addf %117, %2278 : vector<8x128xf32>
    %2280 = arith.mulf %2271, %2267 : vector<8x128xf32>
    %2281 = arith.addf %67, %2280 : vector<8x128xf32>
    %2282 = arith.mulf %2281, %2234 : vector<8x128xf32>
    %2283 = vector.broadcast %2162 : f32 to vector<8x128xf32>
    %2284 = arith.mulf %2282, %2283 : vector<8x128xf32>
    %2285 = arith.mulf %2275, %2267 : vector<8x128xf32>
    %2286 = arith.addf %76, %2285 : vector<8x128xf32>
    %2287 = arith.mulf %2286, %2234 : vector<8x128xf32>
    %2288 = vector.broadcast %2163 : f32 to vector<8x128xf32>
    %2289 = arith.mulf %2287, %2288 : vector<8x128xf32>
    %2290 = arith.mulf %2279, %2267 : vector<8x128xf32>
    %2291 = arith.addf %85, %2290 : vector<8x128xf32>
    %2292 = arith.mulf %2291, %2234 : vector<8x128xf32>
    %2293 = vector.broadcast %2164 : f32 to vector<8x128xf32>
    %2294 = arith.mulf %2292, %2293 : vector<8x128xf32>
    %cst_419 = arith.constant 0.000000e+00 : f32
    %2295 = vector.broadcast %cst_419 : f32 to vector<8x128xf32>
    %2296 = arith.maximumf %2284, %2295 : vector<8x128xf32>
    %cst_420 = arith.constant 0.000000e+00 : f32
    %2297 = vector.broadcast %cst_420 : f32 to vector<8x128xf32>
    %2298 = arith.maximumf %2289, %2297 : vector<8x128xf32>
    %cst_421 = arith.constant 0.000000e+00 : f32
    %2299 = vector.broadcast %cst_421 : f32 to vector<8x128xf32>
    %2300 = arith.maximumf %2294, %2299 : vector<8x128xf32>
    %2301 = arith.mulf %135, %2178 : vector<8x128xf32>
    %2302 = arith.mulf %136, %2179 : vector<8x128xf32>
    %2303 = arith.addf %2301, %2302 : vector<8x128xf32>
    %2304 = arith.mulf %137, %2181 : vector<8x128xf32>
    %2305 = arith.addf %2303, %2304 : vector<8x128xf32>
    %cst_422 = arith.constant 9.99999974E-5 : f32
    %2306 = vector.broadcast %cst_422 : f32 to vector<8x128xf32>
    %2307 = arith.maximumf %2305, %2306 : vector<8x128xf32>
    %2308 = arith.mulf %135, %2195 : vector<8x128xf32>
    %2309 = arith.mulf %136, %2196 : vector<8x128xf32>
    %2310 = arith.addf %2308, %2309 : vector<8x128xf32>
    %2311 = arith.mulf %137, %2198 : vector<8x128xf32>
    %2312 = arith.addf %2310, %2311 : vector<8x128xf32>
    %cst_423 = arith.constant 9.99999974E-5 : f32
    %2313 = vector.broadcast %cst_423 : f32 to vector<8x128xf32>
    %2314 = arith.maximumf %2312, %2313 : vector<8x128xf32>
    %2315 = arith.mulf %135, %2210 : vector<8x128xf32>
    %2316 = arith.mulf %136, %2211 : vector<8x128xf32>
    %2317 = arith.addf %2315, %2316 : vector<8x128xf32>
    %2318 = arith.mulf %137, %2212 : vector<8x128xf32>
    %2319 = arith.addf %2317, %2318 : vector<8x128xf32>
    %cst_424 = arith.constant 9.99999974E-5 : f32
    %2320 = vector.broadcast %cst_424 : f32 to vector<8x128xf32>
    %2321 = arith.maximumf %2319, %2320 : vector<8x128xf32>
    %2322 = arith.mulf %2321, %2321 : vector<8x128xf32>
    %cst_425 = arith.constant 1.000000e+00 : f32
    %2323 = vector.broadcast %cst_425 : f32 to vector<8x128xf32>
    %2324 = arith.subf %173, %2323 : vector<8x128xf32>
    %2325 = arith.mulf %2322, %2324 : vector<8x128xf32>
    %cst_426 = arith.constant 1.000000e+00 : f32
    %2326 = vector.broadcast %cst_426 : f32 to vector<8x128xf32>
    %2327 = arith.addf %2325, %2326 : vector<8x128xf32>
    %cst_427 = arith.constant 1.000000e+00 : f32
    %2328 = vector.broadcast %cst_427 : f32 to vector<8x128xf32>
    %2329 = arith.subf %2328, %175 : vector<8x128xf32>
    %2330 = arith.mulf %2307, %2329 : vector<8x128xf32>
    %2331 = arith.addf %2330, %175 : vector<8x128xf32>
    %2332 = arith.mulf %2314, %2329 : vector<8x128xf32>
    %2333 = arith.addf %2332, %175 : vector<8x128xf32>
    %cst_428 = arith.constant 12.566371 : f32
    %2334 = vector.broadcast %cst_428 : f32 to vector<8x128xf32>
    %2335 = arith.mulf %2334, %2327 : vector<8x128xf32>
    %2336 = arith.mulf %2335, %2327 : vector<8x128xf32>
    %2337 = arith.mulf %2336, %2331 : vector<8x128xf32>
    %2338 = arith.mulf %2337, %2333 : vector<8x128xf32>
    %2339 = tpu.reciprocal %2338 {approx = true} : vector<8x128xf32> -> vector<8x128xf32>
    %2340 = arith.mulf %173, %2339 : vector<8x128xf32>
    %cst_429 = arith.constant 1.000000e+00 : f32
    %2341 = vector.broadcast %cst_429 : f32 to vector<8x128xf32>
    %2342 = arith.subf %2341, %182 : vector<8x128xf32>
    %2343 = arith.mulf %2342, %2227 : vector<8x128xf32>
    %2344 = arith.addf %182, %2343 : vector<8x128xf32>
    %cst_430 = arith.constant 1.000000e+00 : f32
    %2345 = vector.broadcast %cst_430 : f32 to vector<8x128xf32>
    %2346 = arith.subf %2345, %189 : vector<8x128xf32>
    %2347 = arith.mulf %2346, %2227 : vector<8x128xf32>
    %2348 = arith.addf %189, %2347 : vector<8x128xf32>
    %cst_431 = arith.constant 1.000000e+00 : f32
    %2349 = vector.broadcast %cst_431 : f32 to vector<8x128xf32>
    %2350 = arith.subf %2349, %196 : vector<8x128xf32>
    %2351 = arith.mulf %2350, %2227 : vector<8x128xf32>
    %2352 = arith.addf %196, %2351 : vector<8x128xf32>
    %2353 = arith.mulf %2344, %2340 : vector<8x128xf32>
    %2354 = arith.addf %146, %2353 : vector<8x128xf32>
    %2355 = arith.mulf %2354, %2307 : vector<8x128xf32>
    %2356 = vector.broadcast %2162 : f32 to vector<8x128xf32>
    %2357 = arith.mulf %2355, %2356 : vector<8x128xf32>
    %2358 = arith.mulf %2348, %2340 : vector<8x128xf32>
    %2359 = arith.addf %155, %2358 : vector<8x128xf32>
    %2360 = arith.mulf %2359, %2307 : vector<8x128xf32>
    %2361 = vector.broadcast %2163 : f32 to vector<8x128xf32>
    %2362 = arith.mulf %2360, %2361 : vector<8x128xf32>
    %2363 = arith.mulf %2352, %2340 : vector<8x128xf32>
    %2364 = arith.addf %164, %2363 : vector<8x128xf32>
    %2365 = arith.mulf %2364, %2307 : vector<8x128xf32>
    %2366 = vector.broadcast %2164 : f32 to vector<8x128xf32>
    %2367 = arith.mulf %2365, %2366 : vector<8x128xf32>
    %cst_432 = arith.constant 0.000000e+00 : f32
    %2368 = vector.broadcast %cst_432 : f32 to vector<8x128xf32>
    %2369 = arith.maximumf %2357, %2368 : vector<8x128xf32>
    %cst_433 = arith.constant 0.000000e+00 : f32
    %2370 = vector.broadcast %cst_433 : f32 to vector<8x128xf32>
    %2371 = arith.maximumf %2362, %2370 : vector<8x128xf32>
    %cst_434 = arith.constant 0.000000e+00 : f32
    %2372 = vector.broadcast %cst_434 : f32 to vector<8x128xf32>
    %2373 = arith.maximumf %2367, %2372 : vector<8x128xf32>
    %cst_435 = arith.constant 9.99999974E-6 : f32
    %2374 = vector.broadcast %cst_435 : f32 to vector<8x128xf32>
    %2375 = arith.addf %2296, %2374 : vector<8x128xf32>
    %2376 = math.log %2375 : vector<8x128xf32>
    %cst_436 = arith.constant 9.99999974E-6 : f32
    %2377 = vector.broadcast %cst_436 : f32 to vector<8x128xf32>
    %2378 = arith.addf %2369, %2377 : vector<8x128xf32>
    %2379 = math.log %2378 : vector<8x128xf32>
    %2380 = arith.subf %2376, %2379 : vector<8x128xf32>
    %2381 = math.absf %2380 : vector<8x128xf32>
    %2382 = arith.addf %2155, %2381 : vector<8x128xf32>
    %cst_437 = arith.constant 9.99999974E-6 : f32
    %2383 = vector.broadcast %cst_437 : f32 to vector<8x128xf32>
    %2384 = arith.addf %2298, %2383 : vector<8x128xf32>
    %2385 = math.log %2384 : vector<8x128xf32>
    %cst_438 = arith.constant 9.99999974E-6 : f32
    %2386 = vector.broadcast %cst_438 : f32 to vector<8x128xf32>
    %2387 = arith.addf %2371, %2386 : vector<8x128xf32>
    %2388 = math.log %2387 : vector<8x128xf32>
    %2389 = arith.subf %2385, %2388 : vector<8x128xf32>
    %2390 = math.absf %2389 : vector<8x128xf32>
    %2391 = arith.addf %2382, %2390 : vector<8x128xf32>
    %cst_439 = arith.constant 9.99999974E-6 : f32
    %2392 = vector.broadcast %cst_439 : f32 to vector<8x128xf32>
    %2393 = arith.addf %2300, %2392 : vector<8x128xf32>
    %2394 = math.log %2393 : vector<8x128xf32>
    %cst_440 = arith.constant 9.99999974E-6 : f32
    %2395 = vector.broadcast %cst_440 : f32 to vector<8x128xf32>
    %2396 = arith.addf %2373, %2395 : vector<8x128xf32>
    %2397 = math.log %2396 : vector<8x128xf32>
    %2398 = arith.subf %2394, %2397 : vector<8x128xf32>
    %2399 = math.absf %2398 : vector<8x128xf32>
    %2400 = arith.addf %2391, %2399 : vector<8x128xf32>
    %2401 = arith.index_cast %3 : i32 to index
    %c0_441 = arith.constant 0 : index
    %2402 = vector.load %arg4[%2401, %c0_441] : memref<8x128xf32, #tpu.memory_space<vmem>>, vector<8x128xf32>
    tpu.vector_store %arg4[%2401, %c0_441], %2400 {strides = array<i32>} : memref<8x128xf32, #tpu.memory_space<vmem>>, vector<8x128xf32>,
    %c1_i32_442 = arith.constant 1 : i32
    return
  }
  func.func @transform_0(%arg0: i32) -> i32 {
    %c0_i32 = arith.constant 0 : i32
    %c0_i32_0 = arith.constant 0 : i32
    return %c0_i32 : i32
  }
  func.func @transform_1(%arg0: i32) -> (i32, i32, i32) {
    %c0_i32 = arith.constant 0 : i32
    %c0_i32_0 = arith.constant 0 : i32
    %c0_i32_1 = arith.constant 0 : i32
    return %c0_i32, %arg0, %c0_i32_0 : i32, i32, i32
  }
  func.func @transform_2(%arg0: i32) -> (i32, i32, i32) {
    %c0_i32 = arith.constant 0 : i32
    %c0_i32_0 = arith.constant 0 : i32
    %c0_i32_1 = arith.constant 0 : i32
    return %c0_i32, %arg0, %c0_i32_0 : i32, i32, i32
  }
  func.func @transform_3(%arg0: i32) -> (i32, i32) {
    %c0_i32 = arith.constant 0 : i32
    %c0_i32_0 = arith.constant 0 : i32
    return %arg0, %c0_i32 : i32, i32
  }
}

</mosaic_0001>

<llo_original>
// kernel: tpu_custom_call.1
$region0: #{tpu_custom_call.1}
  #allocation0 [shape = 'u32[]', space=smem, size = 0x4, offset = 0x4, fixed_abs, tag = 'smem constant byte address 0x4 - core index']
  #allocation1 [shape = 'u32[144,128]{1,0:T(1,128)}', space=vmem, size = 0x12000, scoped, tag = 'internal scratch']
  %s0 = inlined_call_operand.hbm [shape: f32[81], index: 0, kind: input, shape index: {}]
  %s1 = inlined_call_operand.hbm [shape: f32[12,8,128], index: 1, kind: input, shape index: {}]
  %s2 = inlined_call_operand.hbm [shape: f32[12,8,128], index: 2, kind: input, shape index: {}]
  %s3 = inlined_call_operand.hbm [shape: f32[8,128], index: 3, kind: output, shape index: {}]
  %s4 = sld [smem:[#allocation0]]
  $region34: #{tpu_custom_call.1} parent=0
    _
  %s6 = ssub.s32 1, %s4
  %s7 = scalar_select 0, %s6, %s4
  $region1: #{tpu_custom_call.1} parent=0
    #allocation2 [shape = 'u8[512]{0}', space=smem, size = 0x200, scoped, tag = 'input window, operand 0, single buffered']
    #allocation3 [shape = 's32[1]{0}', space=sflag, size = 0x4, scoped, tag = 'scoped memory for tpu_custom_call.1']
    #allocation4 [shape = 's32[1]{0}', space=sflag, size = 0x4, scoped, tag = 'scoped memory for tpu_custom_call.1']
    #allocation5 [shape = 's32[1]{0}', space=sflag, size = 0x4, scoped, tag = 'scoped memory for tpu_custom_call.1']
    #allocation6 [shape = 'u8[49152]{0}', space=vmem, size = 0xc000, scoped, tag = 'input window, operand 1, single buffered']
    #allocation7 [shape = 'u8[49152]{0}', space=vmem, size = 0xc000, scoped, tag = 'input window, operand 2, single buffered']
    #allocation8 [shape = 's32[1]{0}', space=sflag, size = 0x4, scoped, tag = 'scoped memory for tpu_custom_call.1']
    #allocation9 [shape = 'u8[4096]{0}', space=vmem, size = 0x1000, scoped, tag = 'output window, operand 0, single buffered']
    %8 = vsyncpa [#allocation5], 0
    %9 = vsyncpa [#allocation3], 0
    %10 = vsyncpa [#allocation8], 0
    %11 = vsyncpa [#allocation4], 0
    // Predicated region
    $region2: #{tpu_custom_call.1} parent=1 // pred_check
      _
    $region3: #{tpu_custom_call.1} parent=1 // pred_check_branch
      %13 = sbr.rel (0) target = $region5
    $region4: #{tpu_custom_call.1} parent=1 // pred_region
      %s15 = ssub.s32 16, 16
      %16 = vsyncadd [#allocation5], %s15
      %19 = dma.hbm_to_smem %s0, 16, [#allocation2], [#allocation5]
    $region5: #{tpu_custom_call.1} parent=1 // pred_fallthru
      _
    // Predicated region
    $region6: #{tpu_custom_call.1} parent=1 // pred_check
      _
    $region7: #{tpu_custom_call.1} parent=1 // pred_check_branch
      %21 = sbr.rel (0) target = $region9
    $region8: #{tpu_custom_call.1} parent=1 // pred_region
      %s23 = ssub.s32 1536, 1536
      %24 = vsyncadd [#allocation3], %s23
      %s25 = sshll.u32 [#allocation6], 4
      %s26 = int_to_ptr.vmem [resolvable:$true] %s25
      %31 = dma.hbm_to_vmem [thread:$0]  %s1, 1536, %s26, [#allocation3], 128, 128, 8
    $region9: #{tpu_custom_call.1} parent=1 // pred_fallthru
      _
    // Predicated region
    $region10: #{tpu_custom_call.1} parent=1 // pred_check
      _
    $region11: #{tpu_custom_call.1} parent=1 // pred_check_branch
      %33 = sbr.rel (0) target = $region13
    $region12: #{tpu_custom_call.1} parent=1 // pred_region
      %s35 = ssub.s32 1536, 1536
      %36 = vsyncadd [#allocation8], %s35
      %s37 = sshll.u32 [#allocation7], 4
      %s38 = int_to_ptr.vmem [resolvable:$true] %s37
      %43 = dma.hbm_to_vmem [thread:$0]  %s2, 1536, %s38, [#allocation8], 128, 128, 8
    $region13: #{tpu_custom_call.1} parent=1 // pred_fallthru
      _
    // Predicated region
    $region14: #{tpu_custom_call.1} parent=1 // pred_check
      _
    $region15: #{tpu_custom_call.1} parent=1 // pred_check_branch
      %45 = sbr.rel (0) target = $region17
    $region16: #{tpu_custom_call.1} parent=1 // pred_region
      %46 = dma.done [#allocation5], 16
    $region17: #{tpu_custom_call.1} parent=1 // pred_fallthru
      _
    // Predicated region
    $region18: #{tpu_custom_call.1} parent=1 // pred_check
      _
    $region19: #{tpu_custom_call.1} parent=1 // pred_check_branch
      %48 = sbr.rel (0) target = $region21
    $region20: #{tpu_custom_call.1} parent=1 // pred_region
      %49 = dma.done [#allocation3], 1536
    $region21: #{tpu_custom_call.1} parent=1 // pred_fallthru
      _
    // Predicated region
    $region22: #{tpu_custom_call.1} parent=1 // pred_check
      _
    $region23: #{tpu_custom_call.1} parent=1 // pred_check_branch
      %51 = sbr.rel (0) target = $region25
    $region24: #{tpu_custom_call.1} parent=1 // pred_region
      %52 = dma.done [#allocation8], 1536
    $region25: #{tpu_custom_call.1} parent=1 // pred_fallthru
      _
    %53 = sfence
    %v54 = vlaneseq
    %v55 = vshrl.u32 %v54, 7
    %v56 = vlaneseq
    %v57 = vand.u32 %v56, 127
    %s58 = smul.u32 0, 1024
    %v59 = vmul.u32 %v55, 128
    %v60 = vstv %s58
    %v61 = vadd.s32 %v60, %v59
    %v62 = vadd.s32 %v61, %v57
    %v63 = vcvt.s32.f32 %v62
    %v64 = vadd.f32 %v63, 0.5
    %v65 = vmul.f32 %v64, 0.0625
    %v66 = vfloor.f32 %v65
    %v67 = vmul.f32 %v66, 16.0
    %v68 = vsub.f32 %v63, %v67
    %v69 = vadd.f32 %v66, 0.5
    %v70 = vmul.f32 %v69, 0.0625
    %v71 = vfloor.f32 %v70
    %v72 = vmul.f32 %v71, 16.0
    %v73 = vsub.f32 %v66, %v72
    %v74 = vmul.f32 %v68, 0.13333334
    %v75 = vsub.f32 %v74, 1.0
    %v76 = vmul.f32 %v73, 0.13333334
    %v77 = vsub.f32 %v76, 1.0
    %v78 = vld [vmem:[#allocation6] sm:$0xff]
    %s79 = sadd.s32 0, 8
    %s80 = scalar_lea.vmem [#allocation6], %s79
    %v81 = vld [vmem:[%s80] sm:$0xff]
    %s82 = sadd.s32 0, 16
    %s83 = scalar_lea.vmem [#allocation6], %s82
    %v84 = vld [vmem:[%s83] sm:$0xff]
    %v85 = vmul.f32 %v78, %v78
    %v86 = vmul.f32 %v81, %v81
    %v87 = vadd.f32 %v85, %v86
    %v88 = vmul.f32 %v84, %v84
    %v89 = vadd.f32 %v87, %v88
    %v90 = vadd.f32 %v89, 1e-12
    %v91 = vrsqrt.pop %v90
    %v92 = vmul.f32 %v78, %v91
    %v93 = vmul.f32 %v81, %v91
    %v94 = vmul.f32 %v84, %v91
    %s95 = sadd.s32 0, 24
    %s96 = scalar_lea.vmem [#allocation6], %s95
    %v97 = vld [vmem:[%s96] sm:$0xff]
    %v98 = vmax.f32 %v97, 0.0
    %v99 = vmin.f32 %v98, 1.0
    %v100 = vmul.f32 %v99, 0.31830987
    %s101 = sadd.s32 0, 32
    %s102 = scalar_lea.vmem [#allocation6], %s101
    %v103 = vld [vmem:[%s102] sm:$0xff]
    %v104 = vmax.f32 %v103, 0.0
    %v105 = vmin.f32 %v104, 1.0
    %v106 = vmul.f32 %v105, 0.31830987
    %s107 = sadd.s32 0, 40
    %s108 = scalar_lea.vmem [#allocation6], %s107
    %v109 = vld [vmem:[%s108] sm:$0xff]
    %v110 = vmax.f32 %v109, 0.0
    %v111 = vmin.f32 %v110, 1.0
    %v112 = vmul.f32 %v111, 0.31830987
    %s113 = sadd.s32 0, 48
    %s114 = scalar_lea.vmem [#allocation6], %s113
    %v115 = vld [vmem:[%s114] sm:$0xff]
    %v116 = vmax.f32 %v115, 0.05
    %v117 = vmin.f32 %v116, 1.0
    %v118 = vmul.f32 %v117, %v117
    %v119 = vmul.f32 %v118, %v118
    %v120 = vmul.f32 %v118, 0.5
    %s121 = sadd.s32 0, 72
    %s122 = scalar_lea.vmem [#allocation6], %s121
    %v123 = vld [vmem:[%s122] sm:$0xff]
    %v124 = vmax.f32 %v123, 0.0
    %v125 = vmin.f32 %v124, 1.0
    %s126 = sadd.s32 0, 80
    %s127 = scalar_lea.vmem [#allocation6], %s126
    %v128 = vld [vmem:[%s127] sm:$0xff]
    %v129 = vmax.f32 %v128, 0.0
    %v130 = vmin.f32 %v129, 1.0
    %s131 = sadd.s32 0, 88
    %s132 = scalar_lea.vmem [#allocation6], %s131
    %v133 = vld [vmem:[%s132] sm:$0xff]
    %v134 = vmax.f32 %v133, 0.0
    %v135 = vmin.f32 %v134, 1.0
    %v136 = vld [vmem:[#allocation7] sm:$0xff]
    %s137 = scalar_lea.vmem [#allocation7], %s79
    %v138 = vld [vmem:[%s137] sm:$0xff]
    %s139 = scalar_lea.vmem [#allocation7], %s82
    %v140 = vld [vmem:[%s139] sm:$0xff]
    %v141 = vmul.f32 %v136, %v136
    %v142 = vmul.f32 %v138, %v138
    %v143 = vadd.f32 %v141, %v142
    %v144 = vmul.f32 %v140, %v140
    %v145 = vadd.f32 %v143, %v144
    %v146 = vadd.f32 %v145, 1e-12
    %v147 = vrsqrt.pop %v146
    %v148 = vmul.f32 %v136, %v147
    %v149 = vmul.f32 %v138, %v147
    %v150 = vmul.f32 %v140, %v147
    %s151 = scalar_lea.vmem [#allocation7], %s95
    %v152 = vld [vmem:[%s151] sm:$0xff]
    %v153 = vmax.f32 %v152, 0.0
    %v154 = vmin.f32 %v153, 1.0
    %v155 = vmul.f32 %v154, 0.31830987
    %s156 = scalar_lea.vmem [#allocation7], %s101
    %v157 = vld [vmem:[%s156] sm:$0xff]
    %v158 = vmax.f32 %v157, 0.0
    %v159 = vmin.f32 %v158, 1.0
    %v160 = vmul.f32 %v159, 0.31830987
    %s161 = scalar_lea.vmem [#allocation7], %s107
    %v162 = vld [vmem:[%s161] sm:$0xff]
    %v163 = vmax.f32 %v162, 0.0
    %v164 = vmin.f32 %v163, 1.0
    %v165 = vmul.f32 %v164, 0.31830987
    %s166 = scalar_lea.vmem [#allocation7], %s113
    %v167 = vld [vmem:[%s166] sm:$0xff]
    %v168 = vmax.f32 %v167, 0.05
    %v169 = vmin.f32 %v168, 1.0
    %v170 = vmul.f32 %v169, %v169
    %v171 = vmul.f32 %v170, %v170
    %v172 = vmul.f32 %v170, 0.5
    %s173 = scalar_lea.vmem [#allocation7], %s121
    %v174 = vld [vmem:[%s173] sm:$0xff]
    %v175 = vmax.f32 %v174, 0.0
    %v176 = vmin.f32 %v175, 1.0
    %s177 = scalar_lea.vmem [#allocation7], %s126
    %v178 = vld [vmem:[%s177] sm:$0xff]
    %v179 = vmax.f32 %v178, 0.0
    %v180 = vmin.f32 %v179, 1.0
    %s181 = scalar_lea.vmem [#allocation7], %s131
    %v182 = vld [vmem:[%s181] sm:$0xff]
    %v183 = vmax.f32 %v182, 0.0
    %v184 = vmin.f32 %v183, 1.0
    %s185 = sld [smem:[#allocation2]]
    %s186 = sld [smem:[#allocation2 + $0x1]]
    %s187 = sld [smem:[#allocation2 + $0x2]]
    %s188 = sld [smem:[#allocation2 + $0x3]]
    %s189 = sld [smem:[#allocation2 + $0x4]]
    %s190 = sld [smem:[#allocation2 + $0x5]]
    %s191 = sld [smem:[#allocation2 + $0x6]]
    %s192 = sld [smem:[#allocation2 + $0x7]]
    %s193 = sld [smem:[#allocation2 + $0x8]]
    %v194 = vstv %s188
    %v195 = vsub.f32 %v194, %v75
    %v196 = vstv %s189
    %v197 = vsub.f32 %v196, %v77
    %v198 = vmul.f32 %v195, %v195
    %v199 = vmul.f32 %v197, %v197
    %v200 = vadd.f32 %v198, %v199
    %s201 = smul.f32 %s190, %s190
    %v202 = vstv %s201
    %v203 = vadd.f32 %v200, %v202
    %v204 = vadd.f32 %v203, 1e-12
    %v205 = vrsqrt.pop %v204
    %v206 = vmul.f32 %v195, %v205
    %v207 = vmul.f32 %v197, %v205
    %v208 = vstv %s190
    %v209 = vmul.f32 %v208, %v205
    %v210 = vstv %s185
    %v211 = vsub.f32 %v210, %v75
    %v212 = vstv %s186
    %v213 = vsub.f32 %v212, %v77
    %v214 = vmul.f32 %v211, %v211
    %v215 = vmul.f32 %v213, %v213
    %v216 = vadd.f32 %v214, %v215
    %s217 = smul.f32 %s187, %s187
    %v218 = vstv %s217
    %v219 = vadd.f32 %v216, %v218
    %v220 = vadd.f32 %v219, 1e-12
    %v221 = vrsqrt.pop %v220
    %v222 = vmul.f32 %v211, %v221
    %v223 = vmul.f32 %v213, %v221
    %v224 = vstv %s187
    %v225 = vmul.f32 %v224, %v221
    %v226 = vadd.f32 %v206, %v222
    %v227 = vadd.f32 %v207, %v223
    %v228 = vadd.f32 %v209, %v225
    %v229 = vmul.f32 %v226, %v226
    %v230 = vmul.f32 %v227, %v227
    %v231 = vadd.f32 %v229, %v230
    %v232 = vmul.f32 %v228, %v228
    %v233 = vadd.f32 %v231, %v232
    %v234 = vadd.f32 %v233, 1e-12
    %v235 = vrsqrt.pop %v234
    %v236 = vmul.f32 %v226, %v235
    %v237 = vmul.f32 %v227, %v235
    %v238 = vmul.f32 %v228, %v235
    %v239 = vmul.f32 %v222, %v236
    %v240 = vmul.f32 %v223, %v237
    %v241 = vadd.f32 %v239, %v240
    %v242 = vmul.f32 %v225, %v238
    %v243 = vadd.f32 %v241, %v242
    %v244 = vmax.f32 %v243, 0.0001
    %v245 = vmul.f32 %v244, -5.55473
    %v246 = vsub.f32 %v245, 6.98316
    %v247 = vmul.f32 %v246, %v244
    %v248 = vmul.f32 %v247, 0.6931472
    %v249 = vmul.f32 %v248, 1.442695
    %v250 = vpow.pop %v249
    %v251 = vmul.f32 %v92, %v206
    %v252 = vmul.f32 %v93, %v207
    %v253 = vadd.f32 %v251, %v252
    %v254 = vmul.f32 %v94, %v209
    %v255 = vadd.f32 %v253, %v254
    %v256 = vmax.f32 %v255, 0.0001
    %v257 = vmul.f32 %v92, %v222
    %v258 = vmul.f32 %v93, %v223
    %v259 = vadd.f32 %v257, %v258
    %v260 = vmul.f32 %v94, %v225
    %v261 = vadd.f32 %v259, %v260
    %v262 = vmax.f32 %v261, 0.0001
    %v263 = vmul.f32 %v92, %v236
    %v264 = vmul.f32 %v93, %v237
    %v265 = vadd.f32 %v263, %v264
    %v266 = vmul.f32 %v94, %v238
    %v267 = vadd.f32 %v265, %v266
    %v268 = vmax.f32 %v267, 0.0001
    %v269 = vmul.f32 %v268, %v268
    %v270 = vsub.f32 %v119, 1.0
    %v271 = vmul.f32 %v269, %v270
    %v272 = vadd.f32 %v271, 1.0
    %v273 = vsub.f32 1.0, %v120
    %v274 = vmul.f32 %v256, %v273
    %v275 = vadd.f32 %v274, %v120
    %v276 = vmul.f32 %v262, %v273
    %v277 = vadd.f32 %v276, %v120
    %v278 = vmul.f32 %v272, 12.566371
    %v279 = vmul.f32 %v278, %v272
    %v280 = vmul.f32 %v279, %v275
    %v281 = vmul.f32 %v280, %v277
    %v282 = vrcp.pop %v281
    %v283 = vmul.f32 %v119, %v282
    %v284 = vsub.f32 1.0, %v125
    %v285 = vmul.f32 %v284, %v250
    %v286 = vadd.f32 %v125, %v285
    %v287 = vsub.f32 1.0, %v130
    %v288 = vmul.f32 %v287, %v250
    %v289 = vadd.f32 %v130, %v288
    %v290 = vsub.f32 1.0, %v135
    %v291 = vmul.f32 %v290, %v250
    %v292 = vadd.f32 %v135, %v291
    %v293 = vmul.f32 %v286, %v283
    %v294 = vadd.f32 %v100, %v293
    %v295 = vmul.f32 %v294, %v256
    %v296 = vstv %s191
    %v297 = vmul.f32 %v295, %v296
    %v298 = vmul.f32 %v289, %v283
    %v299 = vadd.f32 %v106, %v298
    %v300 = vmul.f32 %v299, %v256
    %v301 = vstv %s192
    %v302 = vmul.f32 %v300, %v301
    %v303 = vmul.f32 %v292, %v283
    %v304 = vadd.f32 %v112, %v303
    %v305 = vmul.f32 %v304, %v256
    %v306 = vstv %s193
    %v307 = vmul.f32 %v305, %v306
    %v308 = vmax.f32 %v297, 0.0
    %v309 = vmax.f32 %v302, 0.0
    %v310 = vmax.f32 %v307, 0.0
    %v311 = vmul.f32 %v148, %v206
    %v312 = vmul.f32 %v149, %v207
    %v313 = vadd.f32 %v311, %v312
    %v314 = vmul.f32 %v150, %v209
    %v315 = vadd.f32 %v313, %v314
    %v316 = vmax.f32 %v315, 0.0001
    %v317 = vmul.f32 %v148, %v222
    %v318 = vmul.f32 %v149, %v223
    %v319 = vadd.f32 %v317, %v318
    %v320 = vmul.f32 %v150, %v225
    %v321 = vadd.f32 %v319, %v320
    %v322 = vmax.f32 %v321, 0.0001
    %v323 = vmul.f32 %v148, %v236
    %v324 = vmul.f32 %v149, %v237
    %v325 = vadd.f32 %v323, %v324
    %v326 = vmul.f32 %v150, %v238
    %v327 = vadd.f32 %v325, %v326
    %v328 = vmax.f32 %v327, 0.0001
    %v329 = vmul.f32 %v328, %v328
    %v330 = vsub.f32 %v171, 1.0
    %v331 = vmul.f32 %v329, %v330
    %v332 = vadd.f32 %v331, 1.0
    %v333 = vsub.f32 1.0, %v172
    %v334 = vmul.f32 %v316, %v333
    %v335 = vadd.f32 %v334, %v172
    %v336 = vmul.f32 %v322, %v333
    %v337 = vadd.f32 %v336, %v172
    %v338 = vmul.f32 %v332, 12.566371
    %v339 = vmul.f32 %v338, %v332
    %v340 = vmul.f32 %v339, %v335
    %v341 = vmul.f32 %v340, %v337
    %v342 = vrcp.pop %v341
    %v343 = vmul.f32 %v171, %v342
    %v344 = vsub.f32 1.0, %v176
    %v345 = vmul.f32 %v344, %v250
    %v346 = vadd.f32 %v176, %v345
    %v347 = vsub.f32 1.0, %v180
    %v348 = vmul.f32 %v347, %v250
    %v349 = vadd.f32 %v180, %v348
    %v350 = vsub.f32 1.0, %v184
    %v351 = vmul.f32 %v350, %v250
    %v352 = vadd.f32 %v184, %v351
    %v353 = vmul.f32 %v346, %v343
    %v354 = vadd.f32 %v155, %v353
    %v355 = vmul.f32 %v354, %v316
    %v356 = vmul.f32 %v355, %v296
    %v357 = vmul.f32 %v349, %v343
    %v358 = vadd.f32 %v160, %v357
    %v359 = vmul.f32 %v358, %v316
    %v360 = vmul.f32 %v359, %v301
    %v361 = vmul.f32 %v352, %v343
    %v362 = vadd.f32 %v165, %v361
    %v363 = vmul.f32 %v362, %v316
    %v364 = vmul.f32 %v363, %v306
    %v365 = vmax.f32 %v356, 0.0
    %v366 = vmax.f32 %v360, 0.0
    %v367 = vmax.f32 %v364, 0.0
    %v368 = vadd.f32 %v308, 1e-05
    %v369 = vlog2.pop %v368
    %v370 = vmul.f32 %v369, 0.6931472
    %v371 = vadd.f32 %v365, 1e-05
    %v372 = vlog2.pop %v371
    %v373 = vmul.f32 %v372, 0.6931472
    %v374 = vsub.f32 %v370, %v373
    %v375 = vand.u32 2147483647, %v374
    %v376 = vadd.f32 %v309, 1e-05
    %v377 = vlog2.pop %v376
    %v378 = vmul.f32 %v377, 0.6931472
    %v379 = vadd.f32 %v366, 1e-05
    %v380 = vlog2.pop %v379
    %v381 = vmul.f32 %v380, 0.6931472
    %v382 = vsub.f32 %v378, %v381
    %v383 = vand.u32 2147483647, %v382
    %v384 = vadd.f32 %v375, %v383
    %v385 = vadd.f32 %v310, 1e-05
    %v386 = vlog2.pop %v385
    %v387 = vmul.f32 %v386, 0.6931472
    %v388 = vadd.f32 %v367, 1e-05
    %v389 = vlog2.pop %v388
    %v390 = vmul.f32 %v389, 0.6931472
    %v391 = vsub.f32 %v387, %v390
    %v392 = vand.u32 2147483647, %v391
    %v393 = vadd.f32 %v384, %v392
    %s394 = sld [smem:[#allocation2 + $0x9]]
    %s395 = sld [smem:[#allocation2 + $0xa]]
    %s396 = sld [smem:[#allocation2 + $0xb]]
    %s397 = sld [smem:[#allocation2 + $0xc]]
    %s398 = sld [smem:[#allocation2 + $0xd]]
    %s399 = sld [smem:[#allocation2 + $0xe]]
    %s400 = sld [smem:[#allocation2 + $0xf]]
    %s401 = sld [smem:[#allocation2 + $0x10]]
    %s402 = sld [smem:[#allocation2 + $0x11]]
    %v403 = vstv %s397
    %v404 = vsub.f32 %v403, %v75
    %v405 = vstv %s398
    %v406 = vsub.f32 %v405, %v77
    %v407 = vmul.f32 %v404, %v404
    %v408 = vmul.f32 %v406, %v406
    %v409 = vadd.f32 %v407, %v408
    %s410 = smul.f32 %s399, %s399
    %v411 = vstv %s410
    %v412 = vadd.f32 %v409, %v411
    %v413 = vadd.f32 %v412, 1e-12
    %v414 = vrsqrt.pop %v413
    %v415 = vmul.f32 %v404, %v414
    %v416 = vmul.f32 %v406, %v414
    %v417 = vstv %s399
    %v418 = vmul.f32 %v417, %v414
    %v419 = vstv %s394
    %v420 = vsub.f32 %v419, %v75
    %v421 = vstv %s395
    %v422 = vsub.f32 %v421, %v77
    %v423 = vmul.f32 %v420, %v420
    %v424 = vmul.f32 %v422, %v422
    %v425 = vadd.f32 %v423, %v424
    %s426 = smul.f32 %s396, %s396
    %v427 = vstv %s426
    %v428 = vadd.f32 %v425, %v427
    %v429 = vadd.f32 %v428, 1e-12
    %v430 = vrsqrt.pop %v429
    %v431 = vmul.f32 %v420, %v430
    %v432 = vmul.f32 %v422, %v430
    %v433 = vstv %s396
    %v434 = vmul.f32 %v433, %v430
    %v435 = vadd.f32 %v415, %v431
    %v436 = vadd.f32 %v416, %v432
    %v437 = vadd.f32 %v418, %v434
    %v438 = vmul.f32 %v435, %v435
    %v439 = vmul.f32 %v436, %v436
    %v440 = vadd.f32 %v438, %v439
    %v441 = vmul.f32 %v437, %v437
    %v442 = vadd.f32 %v440, %v441
    %v443 = vadd.f32 %v442, 1e-12
    %v444 = vrsqrt.pop %v443
    %v445 = vmul.f32 %v435, %v444
    %v446 = vmul.f32 %v436, %v444
    %v447 = vmul.f32 %v437, %v444
    %v448 = vmul.f32 %v431, %v445
    %v449 = vmul.f32 %v432, %v446
    %v450 = vadd.f32 %v448, %v449
    %v451 = vmul.f32 %v434, %v447
    %v452 = vadd.f32 %v450, %v451
    %v453 = vmax.f32 %v452, 0.0001
    %v454 = vmul.f32 %v453, -5.55473
    %v455 = vsub.f32 %v454, 6.98316
    %v456 = vmul.f32 %v455, %v453
    %v457 = vmul.f32 %v456, 0.6931472
    %v458 = vmul.f32 %v457, 1.442695
    %v459 = vpow.pop %v458
    %v460 = vmul.f32 %v92, %v415
    %v461 = vmul.f32 %v93, %v416
    %v462 = vadd.f32 %v460, %v461
    %v463 = vmul.f32 %v94, %v418
    %v464 = vadd.f32 %v462, %v463
    %v465 = vmax.f32 %v464, 0.0001
    %v466 = vmul.f32 %v92, %v431
    %v467 = vmul.f32 %v93, %v432
    %v468 = vadd.f32 %v466, %v467
    %v469 = vmul.f32 %v94, %v434
    %v470 = vadd.f32 %v468, %v469
    %v471 = vmax.f32 %v470, 0.0001
    %v472 = vmul.f32 %v92, %v445
    %v473 = vmul.f32 %v93, %v446
    %v474 = vadd.f32 %v472, %v473
    %v475 = vmul.f32 %v94, %v447
    %v476 = vadd.f32 %v474, %v475
    %v477 = vmax.f32 %v476, 0.0001
    %v478 = vmul.f32 %v477, %v477
    %v479 = vmul.f32 %v478, %v270
    %v480 = vadd.f32 %v479, 1.0
    %v481 = vmul.f32 %v465, %v273
    %v482 = vadd.f32 %v481, %v120
    %v483 = vmul.f32 %v471, %v273
    %v484 = vadd.f32 %v483, %v120
    %v485 = vmul.f32 %v480, 12.566371
    %v486 = vmul.f32 %v485, %v480
    %v487 = vmul.f32 %v486, %v482
    %v488 = vmul.f32 %v487, %v484
    %v489 = vrcp.pop %v488
    %v490 = vmul.f32 %v119, %v489
    %v491 = vmul.f32 %v284, %v459
    %v492 = vadd.f32 %v125, %v491
    %v493 = vmul.f32 %v287, %v459
    %v494 = vadd.f32 %v130, %v493
    %v495 = vmul.f32 %v290, %v459
    %v496 = vadd.f32 %v135, %v495
    %v497 = vmul.f32 %v492, %v490
    %v498 = vadd.f32 %v100, %v497
    %v499 = vmul.f32 %v498, %v465
    %v500 = vstv %s400
    %v501 = vmul.f32 %v499, %v500
    %v502 = vmul.f32 %v494, %v490
    %v503 = vadd.f32 %v106, %v502
    %v504 = vmul.f32 %v503, %v465
    %v505 = vstv %s401
    %v506 = vmul.f32 %v504, %v505
    %v507 = vmul.f32 %v496, %v490
    %v508 = vadd.f32 %v112, %v507
    %v509 = vmul.f32 %v508, %v465
    %v510 = vstv %s402
    %v511 = vmul.f32 %v509, %v510
    %v512 = vmax.f32 %v501, 0.0
    %v513 = vmax.f32 %v506, 0.0
    %v514 = vmax.f32 %v511, 0.0
    %v515 = vmul.f32 %v148, %v415
    %v516 = vmul.f32 %v149, %v416
    %v517 = vadd.f32 %v515, %v516
    %v518 = vmul.f32 %v150, %v418
    %v519 = vadd.f32 %v517, %v518
    %v520 = vmax.f32 %v519, 0.0001
    %v521 = vmul.f32 %v148, %v431
    %v522 = vmul.f32 %v149, %v432
    %v523 = vadd.f32 %v521, %v522
    %v524 = vmul.f32 %v150, %v434
    %v525 = vadd.f32 %v523, %v524
    %v526 = vmax.f32 %v525, 0.0001
    %v527 = vmul.f32 %v148, %v445
    %v528 = vmul.f32 %v149, %v446
    %v529 = vadd.f32 %v527, %v528
    %v530 = vmul.f32 %v150, %v447
    %v531 = vadd.f32 %v529, %v530
    %v532 = vmax.f32 %v531, 0.0001
    %v533 = vmul.f32 %v532, %v532
    %v534 = vmul.f32 %v533, %v330
    %v535 = vadd.f32 %v534, 1.0
    %v536 = vmul.f32 %v520, %v333
    %v537 = vadd.f32 %v536, %v172
    %v538 = vmul.f32 %v526, %v333
    %v539 = vadd.f32 %v538, %v172
    %v540 = vmul.f32 %v535, 12.566371
    %v541 = vmul.f32 %v540, %v535
    %v542 = vmul.f32 %v541, %v537
    %v543 = vmul.f32 %v542, %v539
    %v544 = vrcp.pop %v543
    %v545 = vmul.f32 %v171, %v544
    %v546 = vmul.f32 %v344, %v459
    %v547 = vadd.f32 %v176, %v546
    %v548 = vmul.f32 %v347, %v459
    %v549 = vadd.f32 %v180, %v548
    %v550 = vmul.f32 %v350, %v459
    %v551 = vadd.f32 %v184, %v550
    %v552 = vmul.f32 %v547, %v545
    %v553 = vadd.f32 %v155, %v552
    %v554 = vmul.f32 %v553, %v520
    %v555 = vmul.f32 %v554, %v500
    %v556 = vmul.f32 %v549, %v545
    %v557 = vadd.f32 %v160, %v556
    %v558 = vmul.f32 %v557, %v520
    %v559 = vmul.f32 %v558, %v505
    %v560 = vmul.f32 %v551, %v545
    %v561 = vadd.f32 %v165, %v560
    %v562 = vmul.f32 %v561, %v520
    %v563 = vmul.f32 %v562, %v510
    %v564 = vmax.f32 %v555, 0.0
    %v565 = vmax.f32 %v559, 0.0
    %v566 = vmax.f32 %v563, 0.0
    %v567 = vadd.f32 %v512, 1e-05
    %v568 = vlog2.pop %v567
    %v569 = vmul.f32 %v568, 0.6931472
    %v570 = vadd.f32 %v564, 1e-05
    %v571 = vlog2.pop %v570
    %v572 = vmul.f32 %v571, 0.6931472
    %v573 = vsub.f32 %v569, %v572
    %v574 = vand.u32 2147483647, %v573
    %v575 = vadd.f32 %v393, %v574
    %v576 = vadd.f32 %v513, 1e-05
    %v577 = vlog2.pop %v576
    %v578 = vmul.f32 %v577, 0.6931472
    %v579 = vadd.f32 %v565, 1e-05
    %v580 = vlog2.pop %v579
    %v581 = vmul.f32 %v580, 0.6931472
    %v582 = vsub.f32 %v578, %v581
    %v583 = vand.u32 2147483647, %v582
    %v584 = vadd.f32 %v575, %v583
    %v585 = vadd.f32 %v514, 1e-05
    %v586 = vlog2.pop %v585
    %v587 = vmul.f32 %v586, 0.6931472
    %v588 = vadd.f32 %v566, 1e-05
    %v589 = vlog2.pop %v588
    %v590 = vmul.f32 %v589, 0.6931472
    %v591 = vsub.f32 %v587, %v590
    %v592 = vand.u32 2147483647, %v591
    %v593 = vadd.f32 %v584, %v592
    %s594 = sld [smem:[#allocation2 + $0x12]]
    %s595 = sld [smem:[#allocation2 + $0x13]]
    %s596 = sld [smem:[#allocation2 + $0x14]]
    %s597 = sld [smem:[#allocation2 + $0x15]]
    %s598 = sld [smem:[#allocation2 + $0x16]]
    %s599 = sld [smem:[#allocation2 + $0x17]]
    %s600 = sld [smem:[#allocation2 + $0x18]]
    %s601 = sld [smem:[#allocation2 + $0x19]]
    %s602 = sld [smem:[#allocation2 + $0x1a]]
    %v603 = vstv %s597
    %v604 = vsub.f32 %v603, %v75
    %v605 = vstv %s598
    %v606 = vsub.f32 %v605, %v77
    %v607 = vmul.f32 %v604, %v604
    %v608 = vmul.f32 %v606, %v606
    %v609 = vadd.f32 %v607, %v608
    %s610 = smul.f32 %s599, %s599
    %v611 = vstv %s610
    %v612 = vadd.f32 %v609, %v611
    %v613 = vadd.f32 %v612, 1e-12
    %v614 = vrsqrt.pop %v613
    %v615 = vmul.f32 %v604, %v614
    %v616 = vmul.f32 %v606, %v614
    %v617 = vstv %s599
    %v618 = vmul.f32 %v617, %v614
    %v619 = vstv %s594
    %v620 = vsub.f32 %v619, %v75
    %v621 = vstv %s595
    %v622 = vsub.f32 %v621, %v77
    %v623 = vmul.f32 %v620, %v620
    %v624 = vmul.f32 %v622, %v622
    %v625 = vadd.f32 %v623, %v624
    %s626 = smul.f32 %s596, %s596
    %v627 = vstv %s626
    %v628 = vadd.f32 %v625, %v627
    %v629 = vadd.f32 %v628, 1e-12
    %v630 = vrsqrt.pop %v629
    %v631 = vmul.f32 %v620, %v630
    %v632 = vmul.f32 %v622, %v630
    %v633 = vstv %s596
    %v634 = vmul.f32 %v633, %v630
    %v635 = vadd.f32 %v615, %v631
    %v636 = vadd.f32 %v616, %v632
    %v637 = vadd.f32 %v618, %v634
    %v638 = vmul.f32 %v635, %v635
    %v639 = vmul.f32 %v636, %v636
    %v640 = vadd.f32 %v638, %v639
    %v641 = vmul.f32 %v637, %v637
    %v642 = vadd.f32 %v640, %v641
    %v643 = vadd.f32 %v642, 1e-12
    %v644 = vrsqrt.pop %v643
    %v645 = vmul.f32 %v635, %v644
    %v646 = vmul.f32 %v636, %v644
    %v647 = vmul.f32 %v637, %v644
    %v648 = vmul.f32 %v631, %v645
    %v649 = vmul.f32 %v632, %v646
    %v650 = vadd.f32 %v648, %v649
    %v651 = vmul.f32 %v634, %v647
    %v652 = vadd.f32 %v650, %v651
    %v653 = vmax.f32 %v652, 0.0001
    %v654 = vmul.f32 %v653, -5.55473
    %v655 = vsub.f32 %v654, 6.98316
    %v656 = vmul.f32 %v655, %v653
    %v657 = vmul.f32 %v656, 0.6931472
    %v658 = vmul.f32 %v657, 1.442695
    %v659 = vpow.pop %v658
    %v660 = vmul.f32 %v92, %v615
    %v661 = vmul.f32 %v93, %v616
    %v662 = vadd.f32 %v660, %v661
    %v663 = vmul.f32 %v94, %v618
    %v664 = vadd.f32 %v662, %v663
    %v665 = vmax.f32 %v664, 0.0001
    %v666 = vmul.f32 %v92, %v631
    %v667 = vmul.f32 %v93, %v632
    %v668 = vadd.f32 %v666, %v667
    %v669 = vmul.f32 %v94, %v634
    %v670 = vadd.f32 %v668, %v669
    %v671 = vmax.f32 %v670, 0.0001
    %v672 = vmul.f32 %v92, %v645
    %v673 = vmul.f32 %v93, %v646
    %v674 = vadd.f32 %v672, %v673
    %v675 = vmul.f32 %v94, %v647
    %v676 = vadd.f32 %v674, %v675
    %v677 = vmax.f32 %v676, 0.0001
    %v678 = vmul.f32 %v677, %v677
    %v679 = vmul.f32 %v678, %v270
    %v680 = vadd.f32 %v679, 1.0
    %v681 = vmul.f32 %v665, %v273
    %v682 = vadd.f32 %v681, %v120
    %v683 = vmul.f32 %v671, %v273
    %v684 = vadd.f32 %v683, %v120
    %v685 = vmul.f32 %v680, 12.566371
    %v686 = vmul.f32 %v685, %v680
    %v687 = vmul.f32 %v686, %v682
    %v688 = vmul.f32 %v687, %v684
    %v689 = vrcp.pop %v688
    %v690 = vmul.f32 %v119, %v689
    %v691 = vmul.f32 %v284, %v659
    %v692 = vadd.f32 %v125, %v691
    %v693 = vmul.f32 %v287, %v659
    %v694 = vadd.f32 %v130, %v693
    %v695 = vmul.f32 %v290, %v659
    %v696 = vadd.f32 %v135, %v695
    %v697 = vmul.f32 %v692, %v690
    %v698 = vadd.f32 %v100, %v697
    %v699 = vmul.f32 %v698, %v665
    %v700 = vstv %s600
    %v701 = vmul.f32 %v699, %v700
    %v702 = vmul.f32 %v694, %v690
    %v703 = vadd.f32 %v106, %v702
    %v704 = vmul.f32 %v703, %v665
    %v705 = vstv %s601
    %v706 = vmul.f32 %v704, %v705
    %v707 = vmul.f32 %v696, %v690
    %v708 = vadd.f32 %v112, %v707
    %v709 = vmul.f32 %v708, %v665
    %v710 = vstv %s602
    %v711 = vmul.f32 %v709, %v710
    %v712 = vmax.f32 %v701, 0.0
    %v713 = vmax.f32 %v706, 0.0
    %v714 = vmax.f32 %v711, 0.0
    %v715 = vmul.f32 %v148, %v615
    %v716 = vmul.f32 %v149, %v616
    %v717 = vadd.f32 %v715, %v716
    %v718 = vmul.f32 %v150, %v618
    %v719 = vadd.f32 %v717, %v718
    %v720 = vmax.f32 %v719, 0.0001
    %v721 = vmul.f32 %v148, %v631
    %v722 = vmul.f32 %v149, %v632
    %v723 = vadd.f32 %v721, %v722
    %v724 = vmul.f32 %v150, %v634
    %v725 = vadd.f32 %v723, %v724
    %v726 = vmax.f32 %v725, 0.0001
    %v727 = vmul.f32 %v148, %v645
    %v728 = vmul.f32 %v149, %v646
    %v729 = vadd.f32 %v727, %v728
    %v730 = vmul.f32 %v150, %v647
    %v731 = vadd.f32 %v729, %v730
    %v732 = vmax.f32 %v731, 0.0001
    %v733 = vmul.f32 %v732, %v732
    %v734 = vmul.f32 %v733, %v330
    %v735 = vadd.f32 %v734, 1.0
    %v736 = vmul.f32 %v720, %v333
    %v737 = vadd.f32 %v736, %v172
    %v738 = vmul.f32 %v726, %v333
    %v739 = vadd.f32 %v738, %v172
    %v740 = vmul.f32 %v735, 12.566371
    %v741 = vmul.f32 %v740, %v735
    %v742 = vmul.f32 %v741, %v737
    %v743 = vmul.f32 %v742, %v739
    %v744 = vrcp.pop %v743
    %v745 = vmul.f32 %v171, %v744
    %v746 = vmul.f32 %v344, %v659
    %v747 = vadd.f32 %v176, %v746
    %v748 = vmul.f32 %v347, %v659
    %v749 = vadd.f32 %v180, %v748
    %v750 = vmul.f32 %v350, %v659
    %v751 = vadd.f32 %v184, %v750
    %v752 = vmul.f32 %v747, %v745
    %v753 = vadd.f32 %v155, %v752
    %v754 = vmul.f32 %v753, %v720
    %v755 = vmul.f32 %v754, %v700
    %v756 = vmul.f32 %v749, %v745
    %v757 = vadd.f32 %v160, %v756
    %v758 = vmul.f32 %v757, %v720
    %v759 = vmul.f32 %v758, %v705
    %v760 = vmul.f32 %v751, %v745
    %v761 = vadd.f32 %v165, %v760
    %v762 = vmul.f32 %v761, %v720
    %v763 = vmul.f32 %v762, %v710
    %v764 = vmax.f32 %v755, 0.0
    %v765 = vmax.f32 %v759, 0.0
    %v766 = vmax.f32 %v763, 0.0
    %v767 = vadd.f32 %v712, 1e-05
    %v768 = vlog2.pop %v767
    %v769 = vmul.f32 %v768, 0.6931472
    %v770 = vadd.f32 %v764, 1e-05
    %v771 = vlog2.pop %v770
    %v772 = vmul.f32 %v771, 0.6931472
    %v773 = vsub.f32 %v769, %v772
    %v774 = vand.u32 2147483647, %v773
    %v775 = vadd.f32 %v593, %v774
    %v776 = vadd.f32 %v713, 1e-05
    %v777 = vlog2.pop %v776
    %v778 = vmul.f32 %v777, 0.6931472
    %v779 = vadd.f32 %v765, 1e-05
    %v780 = vlog2.pop %v779
    %v781 = vmul.f32 %v780, 0.6931472
    %v782 = vsub.f32 %v778, %v781
    %v783 = vand.u32 2147483647, %v782
    %v784 = vadd.f32 %v775, %v783
    %v785 = vadd.f32 %v714, 1e-05
    %v786 = vlog2.pop %v785
    %v787 = vmul.f32 %v786, 0.6931472
    %v788 = vadd.f32 %v766, 1e-05
    %v789 = vlog2.pop %v788
    %v790 = vmul.f32 %v789, 0.6931472
    %v791 = vsub.f32 %v787, %v790
    %v792 = vand.u32 2147483647, %v791
    %v793 = vadd.f32 %v784, %v792
    %s794 = sld [smem:[#allocation2 + $0x1b]]
    %s795 = sld [smem:[#allocation2 + $0x1c]]
    %s796 = sld [smem:[#allocation2 + $0x1d]]
    %s797 = sld [smem:[#allocation2 + $0x1e]]
    %s798 = sld [smem:[#allocation2 + $0x1f]]
    %s799 = sld [smem:[#allocation2 + $0x20]]
    %s800 = sld [smem:[#allocation2 + $0x21]]
    %s801 = sld [smem:[#allocation2 + $0x22]]
    %s802 = sld [smem:[#allocation2 + $0x23]]
    %v803 = vstv %s797
    %v804 = vsub.f32 %v803, %v75
    %v805 = vstv %s798
    %v806 = vsub.f32 %v805, %v77
    %v807 = vmul.f32 %v804, %v804
    %v808 = vmul.f32 %v806, %v806
    %v809 = vadd.f32 %v807, %v808
    %s810 = smul.f32 %s799, %s799
    %v811 = vstv %s810
    %v812 = vadd.f32 %v809, %v811
    %v813 = vadd.f32 %v812, 1e-12
    %v814 = vrsqrt.pop %v813
    %v815 = vmul.f32 %v804, %v814
    %v816 = vmul.f32 %v806, %v814
    %v817 = vstv %s799
    %v818 = vmul.f32 %v817, %v814
    %v819 = vstv %s794
    %v820 = vsub.f32 %v819, %v75
    %v821 = vstv %s795
    %v822 = vsub.f32 %v821, %v77
    %v823 = vmul.f32 %v820, %v820
    %v824 = vmul.f32 %v822, %v822
    %v825 = vadd.f32 %v823, %v824
    %s826 = smul.f32 %s796, %s796
    %v827 = vstv %s826
    %v828 = vadd.f32 %v825, %v827
    %v829 = vadd.f32 %v828, 1e-12
    %v830 = vrsqrt.pop %v829
    %v831 = vmul.f32 %v820, %v830
    %v832 = vmul.f32 %v822, %v830
    %v833 = vstv %s796
    %v834 = vmul.f32 %v833, %v830
    %v835 = vadd.f32 %v815, %v831
    %v836 = vadd.f32 %v816, %v832
    %v837 = vadd.f32 %v818, %v834
    %v838 = vmul.f32 %v835, %v835
    %v839 = vmul.f32 %v836, %v836
    %v840 = vadd.f32 %v838, %v839
    %v841 = vmul.f32 %v837, %v837
    %v842 = vadd.f32 %v840, %v841
    %v843 = vadd.f32 %v842, 1e-12
    %v844 = vrsqrt.pop %v843
    %v845 = vmul.f32 %v835, %v844
    %v846 = vmul.f32 %v836, %v844
    %v847 = vmul.f32 %v837, %v844
    %v848 = vmul.f32 %v831, %v845
    %v849 = vmul.f32 %v832, %v846
    %v850 = vadd.f32 %v848, %v849
    %v851 = vmul.f32 %v834, %v847
    %v852 = vadd.f32 %v850, %v851
    %v853 = vmax.f32 %v852, 0.0001
    %v854 = vmul.f32 %v853, -5.55473
    %v855 = vsub.f32 %v854, 6.98316
    %v856 = vmul.f32 %v855, %v853
    %v857 = vmul.f32 %v856, 0.6931472
    %v858 = vmul.f32 %v857, 1.442695
    %v859 = vpow.pop %v858
    %v860 = vmul.f32 %v92, %v815
    %v861 = vmul.f32 %v93, %v816
    %v862 = vadd.f32 %v860, %v861
    %v863 = vmul.f32 %v94, %v818
    %v864 = vadd.f32 %v862, %v863
    %v865 = vmax.f32 %v864, 0.0001
    %v866 = vmul.f32 %v92, %v831
    %v867 = vmul.f32 %v93, %v832
    %v868 = vadd.f32 %v866, %v867
    %v869 = vmul.f32 %v94, %v834
    %v870 = vadd.f32 %v868, %v869
    %v871 = vmax.f32 %v870, 0.0001
    %v872 = vmul.f32 %v92, %v845
    %v873 = vmul.f32 %v93, %v846
    %v874 = vadd.f32 %v872, %v873
    %v875 = vmul.f32 %v94, %v847
    %v876 = vadd.f32 %v874, %v875
    %v877 = vmax.f32 %v876, 0.0001
    %v878 = vmul.f32 %v877, %v877
    %v879 = vmul.f32 %v878, %v270
    %v880 = vadd.f32 %v879, 1.0
    %v881 = vmul.f32 %v865, %v273
    %v882 = vadd.f32 %v881, %v120
    %v883 = vmul.f32 %v871, %v273
    %v884 = vadd.f32 %v883, %v120
    %v885 = vmul.f32 %v880, 12.566371
    %v886 = vmul.f32 %v885, %v880
    %v887 = vmul.f32 %v886, %v882
    %v888 = vmul.f32 %v887, %v884
    %v889 = vrcp.pop %v888
    %v890 = vmul.f32 %v119, %v889
    %v891 = vmul.f32 %v284, %v859
    %v892 = vadd.f32 %v125, %v891
    %v893 = vmul.f32 %v287, %v859
    %v894 = vadd.f32 %v130, %v893
    %v895 = vmul.f32 %v290, %v859
    %v896 = vadd.f32 %v135, %v895
    %v897 = vmul.f32 %v892, %v890
    %v898 = vadd.f32 %v100, %v897
    %v899 = vmul.f32 %v898, %v865
    %v900 = vstv %s800
    %v901 = vmul.f32 %v899, %v900
    %v902 = vmul.f32 %v894, %v890
    %v903 = vadd.f32 %v106, %v902
    %v904 = vmul.f32 %v903, %v865
    %v905 = vstv %s801
    %v906 = vmul.f32 %v904, %v905
    %v907 = vmul.f32 %v896, %v890
    %v908 = vadd.f32 %v112, %v907
    %v909 = vmul.f32 %v908, %v865
    %v910 = vstv %s802
    %v911 = vmul.f32 %v909, %v910
    %v912 = vmax.f32 %v901, 0.0
    %v913 = vmax.f32 %v906, 0.0
    %v914 = vmax.f32 %v911, 0.0
    %v915 = vmul.f32 %v148, %v815
    %v916 = vmul.f32 %v149, %v816
    %v917 = vadd.f32 %v915, %v916
    %v918 = vmul.f32 %v150, %v818
    %v919 = vadd.f32 %v917, %v918
    %v920 = vmax.f32 %v919, 0.0001
    %v921 = vmul.f32 %v148, %v831
    %v922 = vmul.f32 %v149, %v832
    %v923 = vadd.f32 %v921, %v922
    %v924 = vmul.f32 %v150, %v834
    %v925 = vadd.f32 %v923, %v924
    %v926 = vmax.f32 %v925, 0.0001
    %v927 = vmul.f32 %v148, %v845
    %v928 = vmul.f32 %v149, %v846
    %v929 = vadd.f32 %v927, %v928
    %v930 = vmul.f32 %v150, %v847
    %v931 = vadd.f32 %v929, %v930
    %v932 = vmax.f32 %v931, 0.0001
    %v933 = vmul.f32 %v932, %v932
    %v934 = vmul.f32 %v933, %v330
    %v935 = vadd.f32 %v934, 1.0
    %v936 = vmul.f32 %v920, %v333
    %v937 = vadd.f32 %v936, %v172
    %v938 = vmul.f32 %v926, %v333
    %v939 = vadd.f32 %v938, %v172
    %v940 = vmul.f32 %v935, 12.566371
    %v941 = vmul.f32 %v940, %v935
    %v942 = vmul.f32 %v941, %v937
    %v943 = vmul.f32 %v942, %v939
    %v944 = vrcp.pop %v943
    %v945 = vmul.f32 %v171, %v944
    %v946 = vmul.f32 %v344, %v859
    %v947 = vadd.f32 %v176, %v946
    %v948 = vmul.f32 %v347, %v859
    %v949 = vadd.f32 %v180, %v948
    %v950 = vmul.f32 %v350, %v859
    %v951 = vadd.f32 %v184, %v950
    %v952 = vmul.f32 %v947, %v945
    %v953 = vadd.f32 %v155, %v952
    %v954 = vmul.f32 %v953, %v920
    %v955 = vmul.f32 %v954, %v900
    %v956 = vmul.f32 %v949, %v945
    %v957 = vadd.f32 %v160, %v956
    %v958 = vmul.f32 %v957, %v920
    %v959 = vmul.f32 %v958, %v905
    %v960 = vmul.f32 %v951, %v945
    %v961 = vadd.f32 %v165, %v960
    %v962 = vmul.f32 %v961, %v920
    %v963 = vmul.f32 %v962, %v910
    %v964 = vmax.f32 %v955, 0.0
    %v965 = vmax.f32 %v959, 0.0
    %v966 = vmax.f32 %v963, 0.0
    %v967 = vadd.f32 %v912, 1e-05
    %v968 = vlog2.pop %v967
    %v969 = vmul.f32 %v968, 0.6931472
    %v970 = vadd.f32 %v964, 1e-05
    %v971 = vlog2.pop %v970
    %v972 = vmul.f32 %v971, 0.6931472
    %v973 = vsub.f32 %v969, %v972
    %v974 = vand.u32 2147483647, %v973
    %v975 = vadd.f32 %v793, %v974
    %v976 = vadd.f32 %v913, 1e-05
    %v977 = vlog2.pop %v976
    %v978 = vmul.f32 %v977, 0.6931472
    %v979 = vadd.f32 %v965, 1e-05
    %v980 = vlog2.pop %v979
    %v981 = vmul.f32 %v980, 0.6931472
    %v982 = vsub.f32 %v978, %v981
    %v983 = vand.u32 2147483647, %v982
    %v984 = vadd.f32 %v975, %v983
    %v985 = vadd.f32 %v914, 1e-05
    %v986 = vlog2.pop %v985
    %v987 = vmul.f32 %v986, 0.6931472
    %v988 = vadd.f32 %v966, 1e-05
    %v989 = vlog2.pop %v988
    %v990 = vmul.f32 %v989, 0.6931472
    %v991 = vsub.f32 %v987, %v990
    %v992 = vand.u32 2147483647, %v991
    %v993 = vadd.f32 %v984, %v992
    %s994 = sld [smem:[#allocation2 + $0x24]]
    %s995 = sld [smem:[#allocation2 + $0x25]]
    %s996 = sld [smem:[#allocation2 + $0x26]]
    %s997 = sld [smem:[#allocation2 + $0x27]]
    %s998 = sld [smem:[#allocation2 + $0x28]]
    %s999 = sld [smem:[#allocation2 + $0x29]]
    %s1000 = sld [smem:[#allocation2 + $0x2a]]
    %s1001 = sld [smem:[#allocation2 + $0x2b]]
    %s1002 = sld [smem:[#allocation2 + $0x2c]]
    %v1003 = vstv %s997
    %v1004 = vsub.f32 %v1003, %v75
    %v1005 = vstv %s998
    %v1006 = vsub.f32 %v1005, %v77
    %v1007 = vmul.f32 %v1004, %v1004
    %v1008 = vmul.f32 %v1006, %v1006
    %v1009 = vadd.f32 %v1007, %v1008
    %s1010 = smul.f32 %s999, %s999
    %v1011 = vstv %s1010
    %v1012 = vadd.f32 %v1009, %v1011
    %v1013 = vadd.f32 %v1012, 1e-12
    %v1014 = vrsqrt.pop %v1013
    %v1015 = vmul.f32 %v1004, %v1014
    %v1016 = vmul.f32 %v1006, %v1014
    %v1017 = vstv %s999
    %v1018 = vmul.f32 %v1017, %v1014
    %v1019 = vstv %s994
    %v1020 = vsub.f32 %v1019, %v75
    %v1021 = vstv %s995
    %v1022 = vsub.f32 %v1021, %v77
    %v1023 = vmul.f32 %v1020, %v1020
    %v1024 = vmul.f32 %v1022, %v1022
    %v1025 = vadd.f32 %v1023, %v1024
    %s1026 = smul.f32 %s996, %s996
    %v1027 = vstv %s1026
    %v1028 = vadd.f32 %v1025, %v1027
    %v1029 = vadd.f32 %v1028, 1e-12
    %v1030 = vrsqrt.pop %v1029
    %v1031 = vmul.f32 %v1020, %v1030
    %v1032 = vmul.f32 %v1022, %v1030
    %v1033 = vstv %s996
    %v1034 = vmul.f32 %v1033, %v1030
    %v1035 = vadd.f32 %v1015, %v1031
    %v1036 = vadd.f32 %v1016, %v1032
    %v1037 = vadd.f32 %v1018, %v1034
    %v1038 = vmul.f32 %v1035, %v1035
    %v1039 = vmul.f32 %v1036, %v1036
    %v1040 = vadd.f32 %v1038, %v1039
    %v1041 = vmul.f32 %v1037, %v1037
    %v1042 = vadd.f32 %v1040, %v1041
    %v1043 = vadd.f32 %v1042, 1e-12
    %v1044 = vrsqrt.pop %v1043
    %v1045 = vmul.f32 %v1035, %v1044
    %v1046 = vmul.f32 %v1036, %v1044
    %v1047 = vmul.f32 %v1037, %v1044
    %v1048 = vmul.f32 %v1031, %v1045
    %v1049 = vmul.f32 %v1032, %v1046
    %v1050 = vadd.f32 %v1048, %v1049
    %v1051 = vmul.f32 %v1034, %v1047
    %v1052 = vadd.f32 %v1050, %v1051
    %v1053 = vmax.f32 %v1052, 0.0001
    %v1054 = vmul.f32 %v1053, -5.55473
    %v1055 = vsub.f32 %v1054, 6.98316
    %v1056 = vmul.f32 %v1055, %v1053
    %v1057 = vmul.f32 %v1056, 0.6931472
    %v1058 = vmul.f32 %v1057, 1.442695
    %v1059 = vpow.pop %v1058
    %v1060 = vmul.f32 %v92, %v1015
    %v1061 = vmul.f32 %v93, %v1016
    %v1062 = vadd.f32 %v1060, %v1061
    %v1063 = vmul.f32 %v94, %v1018
    %v1064 = vadd.f32 %v1062, %v1063
    %v1065 = vmax.f32 %v1064, 0.0001
    %v1066 = vmul.f32 %v92, %v1031
    %v1067 = vmul.f32 %v93, %v1032
    %v1068 = vadd.f32 %v1066, %v1067
    %v1069 = vmul.f32 %v94, %v1034
    %v1070 = vadd.f32 %v1068, %v1069
    %v1071 = vmax.f32 %v1070, 0.0001
    %v1072 = vmul.f32 %v92, %v1045
    %v1073 = vmul.f32 %v93, %v1046
    %v1074 = vadd.f32 %v1072, %v1073
    %v1075 = vmul.f32 %v94, %v1047
    %v1076 = vadd.f32 %v1074, %v1075
    %v1077 = vmax.f32 %v1076, 0.0001
    %v1078 = vmul.f32 %v1077, %v1077
    %v1079 = vmul.f32 %v1078, %v270
    %v1080 = vadd.f32 %v1079, 1.0
    %v1081 = vmul.f32 %v1065, %v273
    %v1082 = vadd.f32 %v1081, %v120
    %v1083 = vmul.f32 %v1071, %v273
    %v1084 = vadd.f32 %v1083, %v120
    %v1085 = vmul.f32 %v1080, 12.566371
    %v1086 = vmul.f32 %v1085, %v1080
    %v1087 = vmul.f32 %v1086, %v1082
    %v1088 = vmul.f32 %v1087, %v1084
    %v1089 = vrcp.pop %v1088
    %v1090 = vmul.f32 %v119, %v1089
    %v1091 = vmul.f32 %v284, %v1059
    %v1092 = vadd.f32 %v125, %v1091
    %v1093 = vmul.f32 %v287, %v1059
    %v1094 = vadd.f32 %v130, %v1093
    %v1095 = vmul.f32 %v290, %v1059
    %v1096 = vadd.f32 %v135, %v1095
    %v1097 = vmul.f32 %v1092, %v1090
    %v1098 = vadd.f32 %v100, %v1097
    %v1099 = vmul.f32 %v1098, %v1065
    %v1100 = vstv %s1000
    %v1101 = vmul.f32 %v1099, %v1100
    %v1102 = vmul.f32 %v1094, %v1090
    %v1103 = vadd.f32 %v106, %v1102
    %v1104 = vmul.f32 %v1103, %v1065
    %v1105 = vstv %s1001
    %v1106 = vmul.f32 %v1104, %v1105
    %v1107 = vmul.f32 %v1096, %v1090
    %v1108 = vadd.f32 %v112, %v1107
    %v1109 = vmul.f32 %v1108, %v1065
    %v1110 = vstv %s1002
    %v1111 = vmul.f32 %v1109, %v1110
    %v1112 = vmax.f32 %v1101, 0.0
    %v1113 = vmax.f32 %v1106, 0.0
    %v1114 = vmax.f32 %v1111, 0.0
    %v1115 = vmul.f32 %v148, %v1015
    %v1116 = vmul.f32 %v149, %v1016
    %v1117 = vadd.f32 %v1115, %v1116
    %v1118 = vmul.f32 %v150, %v1018
    %v1119 = vadd.f32 %v1117, %v1118
    %v1120 = vmax.f32 %v1119, 0.0001
    %v1121 = vmul.f32 %v148, %v1031
    %v1122 = vmul.f32 %v149, %v1032
    %v1123 = vadd.f32 %v1121, %v1122
    %v1124 = vmul.f32 %v150, %v1034
    %v1125 = vadd.f32 %v1123, %v1124
    %v1126 = vmax.f32 %v1125, 0.0001
    %v1127 = vmul.f32 %v148, %v1045
    %v1128 = vmul.f32 %v149, %v1046
    %v1129 = vadd.f32 %v1127, %v1128
    %v1130 = vmul.f32 %v150, %v1047
    %v1131 = vadd.f32 %v1129, %v1130
    %v1132 = vmax.f32 %v1131, 0.0001
    %v1133 = vmul.f32 %v1132, %v1132
    %v1134 = vmul.f32 %v1133, %v330
    %v1135 = vadd.f32 %v1134, 1.0
    %v1136 = vmul.f32 %v1120, %v333
    %v1137 = vadd.f32 %v1136, %v172
    %v1138 = vmul.f32 %v1126, %v333
    %v1139 = vadd.f32 %v1138, %v172
    %v1140 = vmul.f32 %v1135, 12.566371
    %v1141 = vmul.f32 %v1140, %v1135
    %v1142 = vmul.f32 %v1141, %v1137
    %v1143 = vmul.f32 %v1142, %v1139
    %v1144 = vrcp.pop %v1143
    %v1145 = vmul.f32 %v171, %v1144
    %v1146 = vmul.f32 %v344, %v1059
    %v1147 = vadd.f32 %v176, %v1146
    %v1148 = vmul.f32 %v347, %v1059
    %v1149 = vadd.f32 %v180, %v1148
    %v1150 = vmul.f32 %v350, %v1059
    %v1151 = vadd.f32 %v184, %v1150
    %v1152 = vmul.f32 %v1147, %v1145
    %v1153 = vadd.f32 %v155, %v1152
    %v1154 = vmul.f32 %v1153, %v1120
    %v1155 = vmul.f32 %v1154, %v1100
    %v1156 = vmul.f32 %v1149, %v1145
    %v1157 = vadd.f32 %v160, %v1156
    %v1158 = vmul.f32 %v1157, %v1120
    %v1159 = vmul.f32 %v1158, %v1105
    %v1160 = vmul.f32 %v1151, %v1145
    %v1161 = vadd.f32 %v165, %v1160
    %v1162 = vmul.f32 %v1161, %v1120
    %v1163 = vmul.f32 %v1162, %v1110
    %v1164 = vmax.f32 %v1155, 0.0
    %v1165 = vmax.f32 %v1159, 0.0
    %v1166 = vmax.f32 %v1163, 0.0
    %v1167 = vadd.f32 %v1112, 1e-05
    %v1168 = vlog2.pop %v1167
    %v1169 = vmul.f32 %v1168, 0.6931472
    %v1170 = vadd.f32 %v1164, 1e-05
    %v1171 = vlog2.pop %v1170
    %v1172 = vmul.f32 %v1171, 0.6931472
    %v1173 = vsub.f32 %v1169, %v1172
    %v1174 = vand.u32 2147483647, %v1173
    %v1175 = vadd.f32 %v993, %v1174
    %v1176 = vadd.f32 %v1113, 1e-05
    %v1177 = vlog2.pop %v1176
    %v1178 = vmul.f32 %v1177, 0.6931472
    %v1179 = vadd.f32 %v1165, 1e-05
    %v1180 = vlog2.pop %v1179
    %v1181 = vmul.f32 %v1180, 0.6931472
    %v1182 = vsub.f32 %v1178, %v1181
    %v1183 = vand.u32 2147483647, %v1182
    %v1184 = vadd.f32 %v1175, %v1183
    %v1185 = vadd.f32 %v1114, 1e-05
    %v1186 = vlog2.pop %v1185
    %v1187 = vmul.f32 %v1186, 0.6931472
    %v1188 = vadd.f32 %v1166, 1e-05
    %v1189 = vlog2.pop %v1188
    %v1190 = vmul.f32 %v1189, 0.6931472
    %v1191 = vsub.f32 %v1187, %v1190
    %v1192 = vand.u32 2147483647, %v1191
    %v1193 = vadd.f32 %v1184, %v1192
    %s1194 = sld [smem:[#allocation2 + $0x2d]]
    %s1195 = sld [smem:[#allocation2 + $0x2e]]
    %s1196 = sld [smem:[#allocation2 + $0x2f]]
    %s1197 = sld [smem:[#allocation2 + $0x30]]
    %s1198 = sld [smem:[#allocation2 + $0x31]]
    %s1199 = sld [smem:[#allocation2 + $0x32]]
    %s1200 = sld [smem:[#allocation2 + $0x33]]
    %s1201 = sld [smem:[#allocation2 + $0x34]]
    %s1202 = sld [smem:[#allocation2 + $0x35]]
    %v1203 = vstv %s1197
    %v1204 = vsub.f32 %v1203, %v75
    %v1205 = vstv %s1198
    %v1206 = vsub.f32 %v1205, %v77
    %v1207 = vmul.f32 %v1204, %v1204
    %v1208 = vmul.f32 %v1206, %v1206
    %v1209 = vadd.f32 %v1207, %v1208
    %s1210 = smul.f32 %s1199, %s1199
    %v1211 = vstv %s1210
    %v1212 = vadd.f32 %v1209, %v1211
    %v1213 = vadd.f32 %v1212, 1e-12
    %v1214 = vrsqrt.pop %v1213
    %v1215 = vmul.f32 %v1204, %v1214
    %v1216 = vmul.f32 %v1206, %v1214
    %v1217 = vstv %s1199
    %v1218 = vmul.f32 %v1217, %v1214
    %v1219 = vstv %s1194
    %v1220 = vsub.f32 %v1219, %v75
    %v1221 = vstv %s1195
    %v1222 = vsub.f32 %v1221, %v77
    %v1223 = vmul.f32 %v1220, %v1220
    %v1224 = vmul.f32 %v1222, %v1222
    %v1225 = vadd.f32 %v1223, %v1224
    %s1226 = smul.f32 %s1196, %s1196
    %v1227 = vstv %s1226
    %v1228 = vadd.f32 %v1225, %v1227
    %v1229 = vadd.f32 %v1228, 1e-12
    %v1230 = vrsqrt.pop %v1229
    %v1231 = vmul.f32 %v1220, %v1230
    %v1232 = vmul.f32 %v1222, %v1230
    %v1233 = vstv %s1196
    %v1234 = vmul.f32 %v1233, %v1230
    %v1235 = vadd.f32 %v1215, %v1231
    %v1236 = vadd.f32 %v1216, %v1232
    %v1237 = vadd.f32 %v1218, %v1234
    %v1238 = vmul.f32 %v1235, %v1235
    %v1239 = vmul.f32 %v1236, %v1236
    %v1240 = vadd.f32 %v1238, %v1239
    %v1241 = vmul.f32 %v1237, %v1237
    %v1242 = vadd.f32 %v1240, %v1241
    %v1243 = vadd.f32 %v1242, 1e-12
    %v1244 = vrsqrt.pop %v1243
    %v1245 = vmul.f32 %v1235, %v1244
    %v1246 = vmul.f32 %v1236, %v1244
    %v1247 = vmul.f32 %v1237, %v1244
    %v1248 = vmul.f32 %v1231, %v1245
    %v1249 = vmul.f32 %v1232, %v1246
    %v1250 = vadd.f32 %v1248, %v1249
    %v1251 = vmul.f32 %v1234, %v1247
    %v1252 = vadd.f32 %v1250, %v1251
    %v1253 = vmax.f32 %v1252, 0.0001
    %v1254 = vmul.f32 %v1253, -5.55473
    %v1255 = vsub.f32 %v1254, 6.98316
    %v1256 = vmul.f32 %v1255, %v1253
    %v1257 = vmul.f32 %v1256, 0.6931472
    %v1258 = vmul.f32 %v1257, 1.442695
    %v1259 = vpow.pop %v1258
    %v1260 = vmul.f32 %v92, %v1215
    %v1261 = vmul.f32 %v93, %v1216
    %v1262 = vadd.f32 %v1260, %v1261
    %v1263 = vmul.f32 %v94, %v1218
    %v1264 = vadd.f32 %v1262, %v1263
    %v1265 = vmax.f32 %v1264, 0.0001
    %v1266 = vmul.f32 %v92, %v1231
    %v1267 = vmul.f32 %v93, %v1232
    %v1268 = vadd.f32 %v1266, %v1267
    %v1269 = vmul.f32 %v94, %v1234
    %v1270 = vadd.f32 %v1268, %v1269
    %v1271 = vmax.f32 %v1270, 0.0001
    %v1272 = vmul.f32 %v92, %v1245
    %v1273 = vmul.f32 %v93, %v1246
    %v1274 = vadd.f32 %v1272, %v1273
    %v1275 = vmul.f32 %v94, %v1247
    %v1276 = vadd.f32 %v1274, %v1275
    %v1277 = vmax.f32 %v1276, 0.0001
    %v1278 = vmul.f32 %v1277, %v1277
    %v1279 = vmul.f32 %v1278, %v270
    %v1280 = vadd.f32 %v1279, 1.0
    %v1281 = vmul.f32 %v1265, %v273
    %v1282 = vadd.f32 %v1281, %v120
    %v1283 = vmul.f32 %v1271, %v273
    %v1284 = vadd.f32 %v1283, %v120
    %v1285 = vmul.f32 %v1280, 12.566371
    %v1286 = vmul.f32 %v1285, %v1280
    %v1287 = vmul.f32 %v1286, %v1282
    %v1288 = vmul.f32 %v1287, %v1284
    %v1289 = vrcp.pop %v1288
    %v1290 = vmul.f32 %v119, %v1289
    %v1291 = vmul.f32 %v284, %v1259
    %v1292 = vadd.f32 %v125, %v1291
    %v1293 = vmul.f32 %v287, %v1259
    %v1294 = vadd.f32 %v130, %v1293
    %v1295 = vmul.f32 %v290, %v1259
    %v1296 = vadd.f32 %v135, %v1295
    %v1297 = vmul.f32 %v1292, %v1290
    %v1298 = vadd.f32 %v100, %v1297
    %v1299 = vmul.f32 %v1298, %v1265
    %v1300 = vstv %s1200
    %v1301 = vmul.f32 %v1299, %v1300
    %v1302 = vmul.f32 %v1294, %v1290
    %v1303 = vadd.f32 %v106, %v1302
    %v1304 = vmul.f32 %v1303, %v1265
    %v1305 = vstv %s1201
    %v1306 = vmul.f32 %v1304, %v1305
    %v1307 = vmul.f32 %v1296, %v1290
    %v1308 = vadd.f32 %v112, %v1307
    %v1309 = vmul.f32 %v1308, %v1265
    %v1310 = vstv %s1202
    %v1311 = vmul.f32 %v1309, %v1310
    %v1312 = vmax.f32 %v1301, 0.0
    %v1313 = vmax.f32 %v1306, 0.0
    %v1314 = vmax.f32 %v1311, 0.0
    %v1315 = vmul.f32 %v148, %v1215
    %v1316 = vmul.f32 %v149, %v1216
    %v1317 = vadd.f32 %v1315, %v1316
    %v1318 = vmul.f32 %v150, %v1218
    %v1319 = vadd.f32 %v1317, %v1318
    %v1320 = vmax.f32 %v1319, 0.0001
    %v1321 = vmul.f32 %v148, %v1231
    %v1322 = vmul.f32 %v149, %v1232
    %v1323 = vadd.f32 %v1321, %v1322
    %v1324 = vmul.f32 %v150, %v1234
    %v1325 = vadd.f32 %v1323, %v1324
    %v1326 = vmax.f32 %v1325, 0.0001
    %v1327 = vmul.f32 %v148, %v1245
    %v1328 = vmul.f32 %v149, %v1246
    %v1329 = vadd.f32 %v1327, %v1328
    %v1330 = vmul.f32 %v150, %v1247
    %v1331 = vadd.f32 %v1329, %v1330
    %v1332 = vmax.f32 %v1331, 0.0001
    %v1333 = vmul.f32 %v1332, %v1332
    %v1334 = vmul.f32 %v1333, %v330
    %v1335 = vadd.f32 %v1334, 1.0
    %v1336 = vmul.f32 %v1320, %v333
    %v1337 = vadd.f32 %v1336, %v172
    %v1338 = vmul.f32 %v1326, %v333
    %v1339 = vadd.f32 %v1338, %v172
    %v1340 = vmul.f32 %v1335, 12.566371
    %v1341 = vmul.f32 %v1340, %v1335
    %v1342 = vmul.f32 %v1341, %v1337
    %v1343 = vmul.f32 %v1342, %v1339
    %v1344 = vrcp.pop %v1343
    %v1345 = vmul.f32 %v171, %v1344
    %v1346 = vmul.f32 %v344, %v1259
    %v1347 = vadd.f32 %v176, %v1346
    %v1348 = vmul.f32 %v347, %v1259
    %v1349 = vadd.f32 %v180, %v1348
    %v1350 = vmul.f32 %v350, %v1259
    %v1351 = vadd.f32 %v184, %v1350
    %v1352 = vmul.f32 %v1347, %v1345
    %v1353 = vadd.f32 %v155, %v1352
    %v1354 = vmul.f32 %v1353, %v1320
    %v1355 = vmul.f32 %v1354, %v1300
    %v1356 = vmul.f32 %v1349, %v1345
    %v1357 = vadd.f32 %v160, %v1356
    %v1358 = vmul.f32 %v1357, %v1320
    %v1359 = vmul.f32 %v1358, %v1305
    %v1360 = vmul.f32 %v1351, %v1345
    %v1361 = vadd.f32 %v165, %v1360
    %v1362 = vmul.f32 %v1361, %v1320
    %v1363 = vmul.f32 %v1362, %v1310
    %v1364 = vmax.f32 %v1355, 0.0
    %v1365 = vmax.f32 %v1359, 0.0
    %v1366 = vmax.f32 %v1363, 0.0
    %v1367 = vadd.f32 %v1312, 1e-05
    %v1368 = vlog2.pop %v1367
    %v1369 = vmul.f32 %v1368, 0.6931472
    %v1370 = vadd.f32 %v1364, 1e-05
    %v1371 = vlog2.pop %v1370
    %v1372 = vmul.f32 %v1371, 0.6931472
    %v1373 = vsub.f32 %v1369, %v1372
    %v1374 = vand.u32 2147483647, %v1373
    %v1375 = vadd.f32 %v1193, %v1374
    %v1376 = vadd.f32 %v1313, 1e-05
    %v1377 = vlog2.pop %v1376
    %v1378 = vmul.f32 %v1377, 0.6931472
    %v1379 = vadd.f32 %v1365, 1e-05
    %v1380 = vlog2.pop %v1379
    %v1381 = vmul.f32 %v1380, 0.6931472
    %v1382 = vsub.f32 %v1378, %v1381
    %v1383 = vand.u32 2147483647, %v1382
    %v1384 = vadd.f32 %v1375, %v1383
    %v1385 = vadd.f32 %v1314, 1e-05
    %v1386 = vlog2.pop %v1385
    %v1387 = vmul.f32 %v1386, 0.6931472
    %v1388 = vadd.f32 %v1366, 1e-05
    %v1389 = vlog2.pop %v1388
    %v1390 = vmul.f32 %v1389, 0.6931472
    %v1391 = vsub.f32 %v1387, %v1390
    %v1392 = vand.u32 2147483647, %v1391
    %v1393 = vadd.f32 %v1384, %v1392
    %s1394 = sld [smem:[#allocation2 + $0x36]]
    %s1395 = sld [smem:[#allocation2 + $0x37]]
    %s1396 = sld [smem:[#allocation2 + $0x38]]
    %s1397 = sld [smem:[#allocation2 + $0x39]]
    %s1398 = sld [smem:[#allocation2 + $0x3a]]
    %s1399 = sld [smem:[#allocation2 + $0x3b]]
    %s1400 = sld [smem:[#allocation2 + $0x3c]]
    %s1401 = sld [smem:[#allocation2 + $0x3d]]
    %s1402 = sld [smem:[#allocation2 + $0x3e]]
    %v1403 = vstv %s1397
    %v1404 = vsub.f32 %v1403, %v75
    %v1405 = vstv %s1398
    %v1406 = vsub.f32 %v1405, %v77
    %v1407 = vmul.f32 %v1404, %v1404
    %v1408 = vmul.f32 %v1406, %v1406
    %v1409 = vadd.f32 %v1407, %v1408
    %s1410 = smul.f32 %s1399, %s1399
    %v1411 = vstv %s1410
    %v1412 = vadd.f32 %v1409, %v1411
    %v1413 = vadd.f32 %v1412, 1e-12
    %v1414 = vrsqrt.pop %v1413
    %v1415 = vmul.f32 %v1404, %v1414
    %v1416 = vmul.f32 %v1406, %v1414
    %v1417 = vstv %s1399
    %v1418 = vmul.f32 %v1417, %v1414
    %v1419 = vstv %s1394
    %v1420 = vsub.f32 %v1419, %v75
    %v1421 = vstv %s1395
    %v1422 = vsub.f32 %v1421, %v77
    %v1423 = vmul.f32 %v1420, %v1420
    %v1424 = vmul.f32 %v1422, %v1422
    %v1425 = vadd.f32 %v1423, %v1424
    %s1426 = smul.f32 %s1396, %s1396
    %v1427 = vstv %s1426
    %v1428 = vadd.f32 %v1425, %v1427
    %v1429 = vadd.f32 %v1428, 1e-12
    %v1430 = vrsqrt.pop %v1429
    %v1431 = vmul.f32 %v1420, %v1430
    %v1432 = vmul.f32 %v1422, %v1430
    %v1433 = vstv %s1396
    %v1434 = vmul.f32 %v1433, %v1430
    %v1435 = vadd.f32 %v1415, %v1431
    %v1436 = vadd.f32 %v1416, %v1432
    %v1437 = vadd.f32 %v1418, %v1434
    %v1438 = vmul.f32 %v1435, %v1435
    %v1439 = vmul.f32 %v1436, %v1436
    %v1440 = vadd.f32 %v1438, %v1439
    %v1441 = vmul.f32 %v1437, %v1437
    %v1442 = vadd.f32 %v1440, %v1441
    %v1443 = vadd.f32 %v1442, 1e-12
    %v1444 = vrsqrt.pop %v1443
    %v1445 = vmul.f32 %v1435, %v1444
    %v1446 = vmul.f32 %v1436, %v1444
    %v1447 = vmul.f32 %v1437, %v1444
    %v1448 = vmul.f32 %v1431, %v1445
    %v1449 = vmul.f32 %v1432, %v1446
    %v1450 = vadd.f32 %v1448, %v1449
    %v1451 = vmul.f32 %v1434, %v1447
    %v1452 = vadd.f32 %v1450, %v1451
    %v1453 = vmax.f32 %v1452, 0.0001
    %v1454 = vmul.f32 %v1453, -5.55473
    %v1455 = vsub.f32 %v1454, 6.98316
    %v1456 = vmul.f32 %v1455, %v1453
    %v1457 = vmul.f32 %v1456, 0.6931472
    %v1458 = vmul.f32 %v1457, 1.442695
    %v1459 = vpow.pop %v1458
    %v1460 = vmul.f32 %v92, %v1415
    %v1461 = vmul.f32 %v93, %v1416
    %v1462 = vadd.f32 %v1460, %v1461
    %v1463 = vmul.f32 %v94, %v1418
    %v1464 = vadd.f32 %v1462, %v1463
    %v1465 = vmax.f32 %v1464, 0.0001
    %v1466 = vmul.f32 %v92, %v1431
    %v1467 = vmul.f32 %v93, %v1432
    %v1468 = vadd.f32 %v1466, %v1467
    %v1469 = vmul.f32 %v94, %v1434
    %v1470 = vadd.f32 %v1468, %v1469
    %v1471 = vmax.f32 %v1470, 0.0001
    %v1472 = vmul.f32 %v92, %v1445
    %v1473 = vmul.f32 %v93, %v1446
    %v1474 = vadd.f32 %v1472, %v1473
    %v1475 = vmul.f32 %v94, %v1447
    %v1476 = vadd.f32 %v1474, %v1475
    %v1477 = vmax.f32 %v1476, 0.0001
    %v1478 = vmul.f32 %v1477, %v1477
    %v1479 = vmul.f32 %v1478, %v270
    %v1480 = vadd.f32 %v1479, 1.0
    %v1481 = vmul.f32 %v1465, %v273
    %v1482 = vadd.f32 %v1481, %v120
    %v1483 = vmul.f32 %v1471, %v273
    %v1484 = vadd.f32 %v1483, %v120
    %v1485 = vmul.f32 %v1480, 12.566371
    %v1486 = vmul.f32 %v1485, %v1480
    %v1487 = vmul.f32 %v1486, %v1482
    %v1488 = vmul.f32 %v1487, %v1484
    %v1489 = vrcp.pop %v1488
    %v1490 = vmul.f32 %v119, %v1489
    %v1491 = vmul.f32 %v284, %v1459
    %v1492 = vadd.f32 %v125, %v1491
    %v1493 = vmul.f32 %v287, %v1459
    %v1494 = vadd.f32 %v130, %v1493
    %v1495 = vmul.f32 %v290, %v1459
    %v1496 = vadd.f32 %v135, %v1495
    %v1497 = vmul.f32 %v1492, %v1490
    %v1498 = vadd.f32 %v100, %v1497
    %v1499 = vmul.f32 %v1498, %v1465
    %v1500 = vstv %s1400
    %v1501 = vmul.f32 %v1499, %v1500
    %v1502 = vmul.f32 %v1494, %v1490
    %v1503 = vadd.f32 %v106, %v1502
    %v1504 = vmul.f32 %v1503, %v1465
    %v1505 = vstv %s1401
    %v1506 = vmul.f32 %v1504, %v1505
    %v1507 = vmul.f32 %v1496, %v1490
    %v1508 = vadd.f32 %v112, %v1507
    %v1509 = vmul.f32 %v1508, %v1465
    %v1510 = vstv %s1402
    %v1511 = vmul.f32 %v1509, %v1510
    %v1512 = vmax.f32 %v1501, 0.0
    %v1513 = vmax.f32 %v1506, 0.0
    %v1514 = vmax.f32 %v1511, 0.0
    %v1515 = vmul.f32 %v148, %v1415
    %v1516 = vmul.f32 %v149, %v1416
    %v1517 = vadd.f32 %v1515, %v1516
    %v1518 = vmul.f32 %v150, %v1418
    %v1519 = vadd.f32 %v1517, %v1518
    %v1520 = vmax.f32 %v1519, 0.0001
    %v1521 = vmul.f32 %v148, %v1431
    %v1522 = vmul.f32 %v149, %v1432
    %v1523 = vadd.f32 %v1521, %v1522
    %v1524 = vmul.f32 %v150, %v1434
    %v1525 = vadd.f32 %v1523, %v1524
    %v1526 = vmax.f32 %v1525, 0.0001
    %v1527 = vmul.f32 %v148, %v1445
    %v1528 = vmul.f32 %v149, %v1446
    %v1529 = vadd.f32 %v1527, %v1528
    %v1530 = vmul.f32 %v150, %v1447
    %v1531 = vadd.f32 %v1529, %v1530
    %v1532 = vmax.f32 %v1531, 0.0001
    %v1533 = vmul.f32 %v1532, %v1532
    %v1534 = vmul.f32 %v1533, %v330
    %v1535 = vadd.f32 %v1534, 1.0
    %v1536 = vmul.f32 %v1520, %v333
    %v1537 = vadd.f32 %v1536, %v172
    %v1538 = vmul.f32 %v1526, %v333
    %v1539 = vadd.f32 %v1538, %v172
    %v1540 = vmul.f32 %v1535, 12.566371
    %v1541 = vmul.f32 %v1540, %v1535
    %v1542 = vmul.f32 %v1541, %v1537
    %v1543 = vmul.f32 %v1542, %v1539
    %v1544 = vrcp.pop %v1543
    %v1545 = vmul.f32 %v171, %v1544
    %v1546 = vmul.f32 %v344, %v1459
    %v1547 = vadd.f32 %v176, %v1546
    %v1548 = vmul.f32 %v347, %v1459
    %v1549 = vadd.f32 %v180, %v1548
    %v1550 = vmul.f32 %v350, %v1459
    %v1551 = vadd.f32 %v184, %v1550
    %v1552 = vmul.f32 %v1547, %v1545
    %v1553 = vadd.f32 %v155, %v1552
    %v1554 = vmul.f32 %v1553, %v1520
    %v1555 = vmul.f32 %v1554, %v1500
    %v1556 = vmul.f32 %v1549, %v1545
    %v1557 = vadd.f32 %v160, %v1556
    %v1558 = vmul.f32 %v1557, %v1520
    %v1559 = vmul.f32 %v1558, %v1505
    %v1560 = vmul.f32 %v1551, %v1545
    %v1561 = vadd.f32 %v165, %v1560
    %v1562 = vmul.f32 %v1561, %v1520
    %v1563 = vmul.f32 %v1562, %v1510
    %v1564 = vmax.f32 %v1555, 0.0
    %v1565 = vmax.f32 %v1559, 0.0
    %v1566 = vmax.f32 %v1563, 0.0
    %v1567 = vadd.f32 %v1512, 1e-05
    %v1568 = vlog2.pop %v1567
    %v1569 = vmul.f32 %v1568, 0.6931472
    %v1570 = vadd.f32 %v1564, 1e-05
    %v1571 = vlog2.pop %v1570
    %v1572 = vmul.f32 %v1571, 0.6931472
    %v1573 = vsub.f32 %v1569, %v1572
    %v1574 = vand.u32 2147483647, %v1573
    %v1575 = vadd.f32 %v1393, %v1574
    %v1576 = vadd.f32 %v1513, 1e-05
    %v1577 = vlog2.pop %v1576
    %v1578 = vmul.f32 %v1577, 0.6931472
    %v1579 = vadd.f32 %v1565, 1e-05
    %v1580 = vlog2.pop %v1579
    %v1581 = vmul.f32 %v1580, 0.6931472
    %v1582 = vsub.f32 %v1578, %v1581
    %v1583 = vand.u32 2147483647, %v1582
    %v1584 = vadd.f32 %v1575, %v1583
    %v1585 = vadd.f32 %v1514, 1e-05
    %v1586 = vlog2.pop %v1585
    %v1587 = vmul.f32 %v1586, 0.6931472
    %v1588 = vadd.f32 %v1566, 1e-05
    %v1589 = vlog2.pop %v1588
    %v1590 = vmul.f32 %v1589, 0.6931472
    %v1591 = vsub.f32 %v1587, %v1590
    %v1592 = vand.u32 2147483647, %v1591
    %v1593 = vadd.f32 %v1584, %v1592
    %s1594 = sld [smem:[#allocation2 + $0x3f]]
    %s1595 = sld [smem:[#allocation2 + $0x40]]
    %s1596 = sld [smem:[#allocation2 + $0x41]]
    %s1597 = sld [smem:[#allocation2 + $0x42]]
    %s1598 = sld [smem:[#allocation2 + $0x43]]
    %s1599 = sld [smem:[#allocation2 + $0x44]]
    %s1600 = sld [smem:[#allocation2 + $0x45]]
    %s1601 = sld [smem:[#allocation2 + $0x46]]
    %s1602 = sld [smem:[#allocation2 + $0x47]]
    %v1603 = vstv %s1597
    %v1604 = vsub.f32 %v1603, %v75
    %v1605 = vstv %s1598
    %v1606 = vsub.f32 %v1605, %v77
    %v1607 = vmul.f32 %v1604, %v1604
    %v1608 = vmul.f32 %v1606, %v1606
    %v1609 = vadd.f32 %v1607, %v1608
    %s1610 = smul.f32 %s1599, %s1599
    %v1611 = vstv %s1610
    %v1612 = vadd.f32 %v1609, %v1611
    %v1613 = vadd.f32 %v1612, 1e-12
    %v1614 = vrsqrt.pop %v1613
    %v1615 = vmul.f32 %v1604, %v1614
    %v1616 = vmul.f32 %v1606, %v1614
    %v1617 = vstv %s1599
    %v1618 = vmul.f32 %v1617, %v1614
    %v1619 = vstv %s1594
    %v1620 = vsub.f32 %v1619, %v75
    %v1621 = vstv %s1595
    %v1622 = vsub.f32 %v1621, %v77
    %v1623 = vmul.f32 %v1620, %v1620
    %v1624 = vmul.f32 %v1622, %v1622
    %v1625 = vadd.f32 %v1623, %v1624
    %s1626 = smul.f32 %s1596, %s1596
    %v1627 = vstv %s1626
    %v1628 = vadd.f32 %v1625, %v1627
    %v1629 = vadd.f32 %v1628, 1e-12
    %v1630 = vrsqrt.pop %v1629
    %v1631 = vmul.f32 %v1620, %v1630
    %v1632 = vmul.f32 %v1622, %v1630
    %v1633 = vstv %s1596
    %v1634 = vmul.f32 %v1633, %v1630
    %v1635 = vadd.f32 %v1615, %v1631
    %v1636 = vadd.f32 %v1616, %v1632
    %v1637 = vadd.f32 %v1618, %v1634
    %v1638 = vmul.f32 %v1635, %v1635
    %v1639 = vmul.f32 %v1636, %v1636
    %v1640 = vadd.f32 %v1638, %v1639
    %v1641 = vmul.f32 %v1637, %v1637
    %v1642 = vadd.f32 %v1640, %v1641
    %v1643 = vadd.f32 %v1642, 1e-12
    %v1644 = vrsqrt.pop %v1643
    %v1645 = vmul.f32 %v1635, %v1644
    %v1646 = vmul.f32 %v1636, %v1644
    %v1647 = vmul.f32 %v1637, %v1644
    %v1648 = vmul.f32 %v1631, %v1645
    %v1649 = vmul.f32 %v1632, %v1646
    %v1650 = vadd.f32 %v1648, %v1649
    %v1651 = vmul.f32 %v1634, %v1647
    %v1652 = vadd.f32 %v1650, %v1651
    %v1653 = vmax.f32 %v1652, 0.0001
    %v1654 = vmul.f32 %v1653, -5.55473
    %v1655 = vsub.f32 %v1654, 6.98316
    %v1656 = vmul.f32 %v1655, %v1653
    %v1657 = vmul.f32 %v1656, 0.6931472
    %v1658 = vmul.f32 %v1657, 1.442695
    %v1659 = vpow.pop %v1658
    %v1660 = vmul.f32 %v92, %v1615
    %v1661 = vmul.f32 %v93, %v1616
    %v1662 = vadd.f32 %v1660, %v1661
    %v1663 = vmul.f32 %v94, %v1618
    %v1664 = vadd.f32 %v1662, %v1663
    %v1665 = vmax.f32 %v1664, 0.0001
    %v1666 = vmul.f32 %v92, %v1631
    %v1667 = vmul.f32 %v93, %v1632
    %v1668 = vadd.f32 %v1666, %v1667
    %v1669 = vmul.f32 %v94, %v1634
    %v1670 = vadd.f32 %v1668, %v1669
    %v1671 = vmax.f32 %v1670, 0.0001
    %v1672 = vmul.f32 %v92, %v1645
    %v1673 = vmul.f32 %v93, %v1646
    %v1674 = vadd.f32 %v1672, %v1673
    %v1675 = vmul.f32 %v94, %v1647
    %v1676 = vadd.f32 %v1674, %v1675
    %v1677 = vmax.f32 %v1676, 0.0001
    %v1678 = vmul.f32 %v1677, %v1677
    %v1679 = vmul.f32 %v1678, %v270
    %v1680 = vadd.f32 %v1679, 1.0
    %v1681 = vmul.f32 %v1665, %v273
    %v1682 = vadd.f32 %v1681, %v120
    %v1683 = vmul.f32 %v1671, %v273
    %v1684 = vadd.f32 %v1683, %v120
    %v1685 = vmul.f32 %v1680, 12.566371
    %v1686 = vmul.f32 %v1685, %v1680
    %v1687 = vmul.f32 %v1686, %v1682
    %v1688 = vmul.f32 %v1687, %v1684
    %v1689 = vrcp.pop %v1688
    %v1690 = vmul.f32 %v119, %v1689
    %v1691 = vmul.f32 %v284, %v1659
    %v1692 = vadd.f32 %v125, %v1691
    %v1693 = vmul.f32 %v287, %v1659
    %v1694 = vadd.f32 %v130, %v1693
    %v1695 = vmul.f32 %v290, %v1659
    %v1696 = vadd.f32 %v135, %v1695
    %v1697 = vmul.f32 %v1692, %v1690
    %v1698 = vadd.f32 %v100, %v1697
    %v1699 = vmul.f32 %v1698, %v1665
    %v1700 = vstv %s1600
    %v1701 = vmul.f32 %v1699, %v1700
    %v1702 = vmul.f32 %v1694, %v1690
    %v1703 = vadd.f32 %v106, %v1702
    %v1704 = vmul.f32 %v1703, %v1665
    %v1705 = vstv %s1601
    %v1706 = vmul.f32 %v1704, %v1705
    %v1707 = vmul.f32 %v1696, %v1690
    %v1708 = vadd.f32 %v112, %v1707
    %v1709 = vmul.f32 %v1708, %v1665
    %v1710 = vstv %s1602
    %v1711 = vmul.f32 %v1709, %v1710
    %v1712 = vmax.f32 %v1701, 0.0
    %v1713 = vmax.f32 %v1706, 0.0
    %v1714 = vmax.f32 %v1711, 0.0
    %v1715 = vmul.f32 %v148, %v1615
    %v1716 = vmul.f32 %v149, %v1616
    %v1717 = vadd.f32 %v1715, %v1716
    %v1718 = vmul.f32 %v150, %v1618
    %v1719 = vadd.f32 %v1717, %v1718
    %v1720 = vmax.f32 %v1719, 0.0001
    %v1721 = vmul.f32 %v148, %v1631
    %v1722 = vmul.f32 %v149, %v1632
    %v1723 = vadd.f32 %v1721, %v1722
    %v1724 = vmul.f32 %v150, %v1634
    %v1725 = vadd.f32 %v1723, %v1724
    %v1726 = vmax.f32 %v1725, 0.0001
    %v1727 = vmul.f32 %v148, %v1645
    %v1728 = vmul.f32 %v149, %v1646
    %v1729 = vadd.f32 %v1727, %v1728
    %v1730 = vmul.f32 %v150, %v1647
    %v1731 = vadd.f32 %v1729, %v1730
    %v1732 = vmax.f32 %v1731, 0.0001
    %v1733 = vmul.f32 %v1732, %v1732
    %v1734 = vmul.f32 %v1733, %v330
    %v1735 = vadd.f32 %v1734, 1.0
    %v1736 = vmul.f32 %v1720, %v333
    %v1737 = vadd.f32 %v1736, %v172
    %v1738 = vmul.f32 %v1726, %v333
    %v1739 = vadd.f32 %v1738, %v172
    %v1740 = vmul.f32 %v1735, 12.566371
    %v1741 = vmul.f32 %v1740, %v1735
    %v1742 = vmul.f32 %v1741, %v1737
    %v1743 = vmul.f32 %v1742, %v1739
    %v1744 = vrcp.pop %v1743
    %v1745 = vmul.f32 %v171, %v1744
    %v1746 = vmul.f32 %v344, %v1659
    %v1747 = vadd.f32 %v176, %v1746
    %v1748 = vmul.f32 %v347, %v1659
    %v1749 = vadd.f32 %v180, %v1748
    %v1750 = vmul.f32 %v350, %v1659
    %v1751 = vadd.f32 %v184, %v1750
    %v1752 = vmul.f32 %v1747, %v1745
    %v1753 = vadd.f32 %v155, %v1752
    %v1754 = vmul.f32 %v1753, %v1720
    %v1755 = vmul.f32 %v1754, %v1700
    %v1756 = vmul.f32 %v1749, %v1745
    %v1757 = vadd.f32 %v160, %v1756
    %v1758 = vmul.f32 %v1757, %v1720
    %v1759 = vmul.f32 %v1758, %v1705
    %v1760 = vmul.f32 %v1751, %v1745
    %v1761 = vadd.f32 %v165, %v1760
    %v1762 = vmul.f32 %v1761, %v1720
    %v1763 = vmul.f32 %v1762, %v1710
    %v1764 = vmax.f32 %v1755, 0.0
    %v1765 = vmax.f32 %v1759, 0.0
    %v1766 = vmax.f32 %v1763, 0.0
    %v1767 = vadd.f32 %v1712, 1e-05
    %v1768 = vlog2.pop %v1767
    %v1769 = vmul.f32 %v1768, 0.6931472
    %v1770 = vadd.f32 %v1764, 1e-05
    %v1771 = vlog2.pop %v1770
    %v1772 = vmul.f32 %v1771, 0.6931472
    %v1773 = vsub.f32 %v1769, %v1772
    %v1774 = vand.u32 2147483647, %v1773
    %v1775 = vadd.f32 %v1593, %v1774
    %v1776 = vadd.f32 %v1713, 1e-05
    %v1777 = vlog2.pop %v1776
    %v1778 = vmul.f32 %v1777, 0.6931472
    %v1779 = vadd.f32 %v1765, 1e-05
    %v1780 = vlog2.pop %v1779
    %v1781 = vmul.f32 %v1780, 0.6931472
    %v1782 = vsub.f32 %v1778, %v1781
    %v1783 = vand.u32 2147483647, %v1782
    %v1784 = vadd.f32 %v1775, %v1783
    %v1785 = vadd.f32 %v1714, 1e-05
    %v1786 = vlog2.pop %v1785
    %v1787 = vmul.f32 %v1786, 0.6931472
    %v1788 = vadd.f32 %v1766, 1e-05
    %v1789 = vlog2.pop %v1788
    %v1790 = vmul.f32 %v1789, 0.6931472
    %v1791 = vsub.f32 %v1787, %v1790
    %v1792 = vand.u32 2147483647, %v1791
    %v1793 = vadd.f32 %v1784, %v1792
    %s1794 = sld [smem:[#allocation2 + $0x48]]
    %s1795 = sld [smem:[#allocation2 + $0x49]]
    %s1796 = sld [smem:[#allocation2 + $0x4a]]
    %s1797 = sld [smem:[#allocation2 + $0x4b]]
    %s1798 = sld [smem:[#allocation2 + $0x4c]]
    %s1799 = sld [smem:[#allocation2 + $0x4d]]
    %s1800 = sld [smem:[#allocation2 + $0x4e]]
    %s1801 = sld [smem:[#allocation2 + $0x4f]]
    %s1802 = sld [smem:[#allocation2 + $0x50]]
    %v1803 = vstv %s1797
    %v1804 = vsub.f32 %v1803, %v75
    %v1805 = vstv %s1798
    %v1806 = vsub.f32 %v1805, %v77
    %v1807 = vmul.f32 %v1804, %v1804
    %v1808 = vmul.f32 %v1806, %v1806
    %v1809 = vadd.f32 %v1807, %v1808
    %s1810 = smul.f32 %s1799, %s1799
    %v1811 = vstv %s1810
    %v1812 = vadd.f32 %v1809, %v1811
    %v1813 = vadd.f32 %v1812, 1e-12
    %v1814 = vrsqrt.pop %v1813
    %v1815 = vmul.f32 %v1804, %v1814
    %v1816 = vmul.f32 %v1806, %v1814
    %v1817 = vstv %s1799
    %v1818 = vmul.f32 %v1817, %v1814
    %v1819 = vstv %s1794
    %v1820 = vsub.f32 %v1819, %v75
    %v1821 = vstv %s1795
    %v1822 = vsub.f32 %v1821, %v77
    %v1823 = vmul.f32 %v1820, %v1820
    %v1824 = vmul.f32 %v1822, %v1822
    %v1825 = vadd.f32 %v1823, %v1824
    %s1826 = smul.f32 %s1796, %s1796
    %v1827 = vstv %s1826
    %v1828 = vadd.f32 %v1825, %v1827
    %v1829 = vadd.f32 %v1828, 1e-12
    %v1830 = vrsqrt.pop %v1829
    %v1831 = vmul.f32 %v1820, %v1830
    %v1832 = vmul.f32 %v1822, %v1830
    %v1833 = vstv %s1796
    %v1834 = vmul.f32 %v1833, %v1830
    %v1835 = vadd.f32 %v1815, %v1831
    %v1836 = vadd.f32 %v1816, %v1832
    %v1837 = vadd.f32 %v1818, %v1834
    %v1838 = vmul.f32 %v1835, %v1835
    %v1839 = vmul.f32 %v1836, %v1836
    %v1840 = vadd.f32 %v1838, %v1839
    %v1841 = vmul.f32 %v1837, %v1837
    %v1842 = vadd.f32 %v1840, %v1841
    %v1843 = vadd.f32 %v1842, 1e-12
    %v1844 = vrsqrt.pop %v1843
    %v1845 = vmul.f32 %v1835, %v1844
    %v1846 = vmul.f32 %v1836, %v1844
    %v1847 = vmul.f32 %v1837, %v1844
    %v1848 = vmul.f32 %v1831, %v1845
    %v1849 = vmul.f32 %v1832, %v1846
    %v1850 = vadd.f32 %v1848, %v1849
    %v1851 = vmul.f32 %v1834, %v1847
    %v1852 = vadd.f32 %v1850, %v1851
    %v1853 = vmax.f32 %v1852, 0.0001
    %v1854 = vmul.f32 %v1853, -5.55473
    %v1855 = vsub.f32 %v1854, 6.98316
    %v1856 = vmul.f32 %v1855, %v1853
    %v1857 = vmul.f32 %v1856, 0.6931472
    %v1858 = vmul.f32 %v1857, 1.442695
    %v1859 = vpow.pop %v1858
    %v1860 = vmul.f32 %v92, %v1815
    %v1861 = vmul.f32 %v93, %v1816
    %v1862 = vadd.f32 %v1860, %v1861
    %v1863 = vmul.f32 %v94, %v1818
    %v1864 = vadd.f32 %v1862, %v1863
    %v1865 = vmax.f32 %v1864, 0.0001
    %v1866 = vmul.f32 %v92, %v1831
    %v1867 = vmul.f32 %v93, %v1832
    %v1868 = vadd.f32 %v1866, %v1867
    %v1869 = vmul.f32 %v94, %v1834
    %v1870 = vadd.f32 %v1868, %v1869
    %v1871 = vmax.f32 %v1870, 0.0001
    %v1872 = vmul.f32 %v92, %v1845
    %v1873 = vmul.f32 %v93, %v1846
    %v1874 = vadd.f32 %v1872, %v1873
    %v1875 = vmul.f32 %v94, %v1847
    %v1876 = vadd.f32 %v1874, %v1875
    %v1877 = vmax.f32 %v1876, 0.0001
    %v1878 = vmul.f32 %v1877, %v1877
    %v1879 = vmul.f32 %v1878, %v270
    %v1880 = vadd.f32 %v1879, 1.0
    %v1881 = vmul.f32 %v1865, %v273
    %v1882 = vadd.f32 %v1881, %v120
    %v1883 = vmul.f32 %v1871, %v273
    %v1884 = vadd.f32 %v1883, %v120
    %v1885 = vmul.f32 %v1880, 12.566371
    %v1886 = vmul.f32 %v1885, %v1880
    %v1887 = vmul.f32 %v1886, %v1882
    %v1888 = vmul.f32 %v1887, %v1884
    %v1889 = vrcp.pop %v1888
    %v1890 = vmul.f32 %v119, %v1889
    %v1891 = vmul.f32 %v284, %v1859
    %v1892 = vadd.f32 %v125, %v1891
    %v1893 = vmul.f32 %v287, %v1859
    %v1894 = vadd.f32 %v130, %v1893
    %v1895 = vmul.f32 %v290, %v1859
    %v1896 = vadd.f32 %v135, %v1895
    %v1897 = vmul.f32 %v1892, %v1890
    %v1898 = vadd.f32 %v100, %v1897
    %v1899 = vmul.f32 %v1898, %v1865
    %v1900 = vstv %s1800
    %v1901 = vmul.f32 %v1899, %v1900
    %v1902 = vmul.f32 %v1894, %v1890
    %v1903 = vadd.f32 %v106, %v1902
    %v1904 = vmul.f32 %v1903, %v1865
    %v1905 = vstv %s1801
    %v1906 = vmul.f32 %v1904, %v1905
    %v1907 = vmul.f32 %v1896, %v1890
    %v1908 = vadd.f32 %v112, %v1907
    %v1909 = vmul.f32 %v1908, %v1865
    %v1910 = vstv %s1802
    %v1911 = vmul.f32 %v1909, %v1910
    %v1912 = vmax.f32 %v1901, 0.0
    %v1913 = vmax.f32 %v1906, 0.0
    %v1914 = vmax.f32 %v1911, 0.0
    %v1915 = vmul.f32 %v148, %v1815
    %v1916 = vmul.f32 %v149, %v1816
    %v1917 = vadd.f32 %v1915, %v1916
    %v1918 = vmul.f32 %v150, %v1818
    %v1919 = vadd.f32 %v1917, %v1918
    %v1920 = vmax.f32 %v1919, 0.0001
    %v1921 = vmul.f32 %v148, %v1831
    %v1922 = vmul.f32 %v149, %v1832
    %v1923 = vadd.f32 %v1921, %v1922
    %v1924 = vmul.f32 %v150, %v1834
    %v1925 = vadd.f32 %v1923, %v1924
    %v1926 = vmax.f32 %v1925, 0.0001
    %v1927 = vmul.f32 %v148, %v1845
    %v1928 = vmul.f32 %v149, %v1846
    %v1929 = vadd.f32 %v1927, %v1928
    %v1930 = vmul.f32 %v150, %v1847
    %v1931 = vadd.f32 %v1929, %v1930
    %v1932 = vmax.f32 %v1931, 0.0001
    %v1933 = vmul.f32 %v1932, %v1932
    %v1934 = vmul.f32 %v1933, %v330
    %v1935 = vadd.f32 %v1934, 1.0
    %v1936 = vmul.f32 %v1920, %v333
    %v1937 = vadd.f32 %v1936, %v172
    %v1938 = vmul.f32 %v1926, %v333
    %v1939 = vadd.f32 %v1938, %v172
    %v1940 = vmul.f32 %v1935, 12.566371
    %v1941 = vmul.f32 %v1940, %v1935
    %v1942 = vmul.f32 %v1941, %v1937
    %v1943 = vmul.f32 %v1942, %v1939
    %v1944 = vrcp.pop %v1943
    %v1945 = vmul.f32 %v171, %v1944
    %v1946 = vmul.f32 %v344, %v1859
    %v1947 = vadd.f32 %v176, %v1946
    %v1948 = vmul.f32 %v347, %v1859
    %v1949 = vadd.f32 %v180, %v1948
    %v1950 = vmul.f32 %v350, %v1859
    %v1951 = vadd.f32 %v184, %v1950
    %v1952 = vmul.f32 %v1947, %v1945
    %v1953 = vadd.f32 %v155, %v1952
    %v1954 = vmul.f32 %v1953, %v1920
    %v1955 = vmul.f32 %v1954, %v1900
    %v1956 = vmul.f32 %v1949, %v1945
    %v1957 = vadd.f32 %v160, %v1956
    %v1958 = vmul.f32 %v1957, %v1920
    %v1959 = vmul.f32 %v1958, %v1905
    %v1960 = vmul.f32 %v1951, %v1945
    %v1961 = vadd.f32 %v165, %v1960
    %v1962 = vmul.f32 %v1961, %v1920
    %v1963 = vmul.f32 %v1962, %v1910
    %v1964 = vmax.f32 %v1955, 0.0
    %v1965 = vmax.f32 %v1959, 0.0
    %v1966 = vmax.f32 %v1963, 0.0
    %v1967 = vadd.f32 %v1912, 1e-05
    %v1968 = vlog2.pop %v1967
    %v1969 = vmul.f32 %v1968, 0.6931472
    %v1970 = vadd.f32 %v1964, 1e-05
    %v1971 = vlog2.pop %v1970
    %v1972 = vmul.f32 %v1971, 0.6931472
    %v1973 = vsub.f32 %v1969, %v1972
    %v1974 = vand.u32 2147483647, %v1973
    %v1975 = vadd.f32 %v1793, %v1974
    %v1976 = vadd.f32 %v1913, 1e-05
    %v1977 = vlog2.pop %v1976
    %v1978 = vmul.f32 %v1977, 0.6931472
    %v1979 = vadd.f32 %v1965, 1e-05
    %v1980 = vlog2.pop %v1979
    %v1981 = vmul.f32 %v1980, 0.6931472
    %v1982 = vsub.f32 %v1978, %v1981
    %v1983 = vand.u32 2147483647, %v1982
    %v1984 = vadd.f32 %v1975, %v1983
    %v1985 = vadd.f32 %v1914, 1e-05
    %v1986 = vlog2.pop %v1985
    %v1987 = vmul.f32 %v1986, 0.6931472
    %v1988 = vadd.f32 %v1966, 1e-05
    %v1989 = vlog2.pop %v1988
    %v1990 = vmul.f32 %v1989, 0.6931472
    %v1991 = vsub.f32 %v1987, %v1990
    %v1992 = vand.u32 2147483647, %v1991
    %v1993 = vadd.f32 %v1984, %v1992
    %1994 = vst [vmem:[#allocation9] sm:$0xff] %v1993
    // Predicated region
    $region26: #{tpu_custom_call.1} parent=1 // pred_check
      _
    $region27: #{tpu_custom_call.1} parent=1 // pred_check_branch
      %1996 = sbr.rel (0) target = $region29
    $region28: #{tpu_custom_call.1} parent=1 // pred_region
      %s1998 = ssub.s32 128, 128
      %1999 = vsyncadd [#allocation4], %s1998
      %s2001 = sshll.u32 [#allocation9], 4
      %s2002 = int_to_ptr.vmem [resolvable:$true] %s2001
      %2004 = dma.vmem_to_hbm [thread:$0]  %s2002, 128, %s3, [#allocation4]
    $region29: #{tpu_custom_call.1} parent=1 // pred_fallthru
      _
    // Predicated region
    $region30: #{tpu_custom_call.1} parent=1 // pred_check
      _
    $region31: #{tpu_custom_call.1} parent=1 // pred_check_branch
      %2006 = sbr.rel (0) target = $region33
    $region32: #{tpu_custom_call.1} parent=1 // pred_region
      %2007 = dma.done [#allocation4], 128
    $region33: #{tpu_custom_call.1} parent=1 // pred_fallthru
      _
    %2008 = vsyncpa [#allocation3], 1
    %2009 = vsyncpa [#allocation8], 1
    %2010 = vsyncpa [#allocation4], 1
    %2011 = vsyncpa [#allocation5], 1

</llo_original>
